<compile_context>
chip_gen: v7x
topology: tpu7x:2x2x1
jax: 0.10.0
libtpu: 0.0.40
codegen_flags: <defaults>
</compile_context>

<pallas_src>
import functools

import jax
import jax.numpy as jnp
from jax.experimental import pallas as pl
from jax.experimental.pallas import tpu as pltpu

_EPS = 1e-5
_LANE = 128


def _round_up(n: int, m: int) -> int:
    return ((n + m - 1) // m) * m


# ----------------------------------------------------------------------------
# Pallas kernel: fc1(pool folded) -> bn1 -> softsign -> fc2 -> bn2 -> softsign
#                -> fc3, on lane-dense, 128-padded tiles.  Each grid step
#                processes `groups` independent BatchNorm batches stacked into
#                a (groups*rows_per_group, F) slab to fill the MXU rows.
# ----------------------------------------------------------------------------
def _newsnet_kernel(x_ref, w1_ref, w2_ref, w3_ref, vec_ref, out_ref,
                    *, groups: int, rows_per_group: int):
    # Packed per-layer vectors: one (8, F) f32 slab, static row slices.
    b1, g1, be1 = vec_ref[0:1, :], vec_ref[1:2, :], vec_ref[2:3, :]
    b2, g2, be2 = vec_ref[3:4, :], vec_ref[4:5, :], vec_ref[5:6, :]
    b3 = vec_ref[6:7, :]

    def linear(h, w_ref, b):
        # bf16 operands into the MXU, f32 accumulation.
        return jnp.dot(h.astype(w_ref.dtype), w_ref[...],
                       preferred_element_type=jnp.float32) + b

    def bn_softsign(h, gamma, beta):
        # Training-mode BatchNorm1d, computed independently per packed batch:
        # (rows, F) -> (groups, rows_per_group, F), stats over axis=1 only.
        hg = h.reshape(groups, rows_per_group, h.shape[-1])
        mean = jnp.mean(hg, axis=1, keepdims=True)
        c = hg - mean                                     # centered, reused
        var = jnp.mean(c * c, axis=1, keepdims=True)
        scale = gamma * jax.lax.rsqrt(var + _EPS)         # folded gamma * rsqrt
        y = (c * scale + beta).reshape(h.shape)
        # Softsign; divide runs on the EUP slot via approx reciprocal.
        return y * pl.reciprocal(1.0 + jnp.abs(y), approx=True)

    x = x_ref[...]                                        # (rows, L*D) bf16
    h = bn_softsign(linear(x, w1_ref, b1), g1, be1)       # fc1 (pool folded) + bn1
    h = bn_softsign(linear(h, w2_ref, b2), g2, be2)       # fc2 + bn2
    out_ref[...] = linear(h, w3_ref, b3)                  # fc3 logits (128 lanes)


# ----------------------------------------------------------------------------
# Glue / parameter prep
# ----------------------------------------------------------------------------
def _adaptive_avg_pool_matrix(l_in: int, l_out: int) -> jnp.ndarray:
    """(l_in, l_out) matrix reproducing torch AdaptiveAvgPool1d exactly."""
    i = jnp.arange(l_out)
    starts = (i * l_in) // l_out
    ends = ((i + 1) * l_in + l_out - 1) // l_out          # ceil
    j = jnp.arange(l_in)[:, None]
    mask = (j >= starts[None, :]) & (j < ends[None, :])
    counts = (ends - starts).astype(jnp.float32)
    return mask.astype(jnp.float32) / counts[None, :]


def init_params(key, n_embed=100, d_embed=64, hidden_size=32, num_classes=7):
    """Raw (torch-equivalent) parameters; linear weights stored as (in, out)."""
    ks = jax.random.split(key, 8)
    h16, h4 = 16 * hidden_size, 4 * hidden_size

    def dense(k, fan_in, fan_out):
        kw, kb = jax.random.split(k)
        s = 1.0 / jnp.sqrt(float(fan_in))
        w = jax.random.uniform(kw, (fan_in, fan_out), jnp.float32, -s, s)
        b = jax.random.uniform(kb, (1, fan_out), jnp.float32, -s, s)
        return w, b

    w1, b1 = dense(ks[0], h16, h4)
    w2, b2 = dense(ks[1], h4, hidden_size)
    w3, b3 = dense(ks[2], hidden_size, num_classes)
    return dict(
        embedding=jax.random.normal(ks[3], (n_embed, d_embed), jnp.float32) * 0.1,
        w1=w1, b1=b1,
        g1=1.0 + 0.1 * jax.random.normal(ks[4], (1, h4), jnp.float32),
        be1=0.1 * jax.random.normal(ks[5], (1, h4), jnp.float32),
        w2=w2, b2=b2,
        g2=1.0 + 0.1 * jax.random.normal(ks[6], (1, hidden_size), jnp.float32),
        be2=0.1 * jax.random.normal(ks[7], (1, hidden_size), jnp.float32),
        w3=w3, b3=b3,
    )


def prepare_params(params, seq_len, weight_dtype=jnp.bfloat16):
    """One-time prep (hoisted out of the forward): fold pool into fc1, pad all
    feature widths to 128 lanes, pack small vectors into one slab, cast matmul
    weights AND the embedding table to `weight_dtype` (bf16 by default)."""
    emb = params["embedding"].astype(weight_dtype)
    d_embed = emb.shape[1]
    l_in = seq_len * d_embed
    h16, h4 = params["w1"].shape
    hidden = params["w2"].shape[1]
    num_classes = params["w3"].shape[1]
    feat = _round_up(max(h4, hidden, num_classes), _LANE)

    # Fold AdaptiveAvgPool1d into fc1: (x @ P) @ W1 == x @ (P @ W1).
    pool = _adaptive_avg_pool_matrix(l_in, h16)            # (L*D, 16H)
    w1f = pool @ params["w1"]                              # (L*D, 4H)

    def pad_to(a, rows, cols):
        return jnp.pad(a, ((0, rows - a.shape[0]), (0, cols - a.shape[1])))

    w1p = pad_to(w1f, l_in, feat).astype(weight_dtype)             # (L*D, F)
    w2p = pad_to(params["w2"], feat, feat).astype(weight_dtype)    # (F, F)
    w3p = pad_to(params["w3"], feat, feat).astype(weight_dtype)    # (F, F)

    def row(a):
        return pad_to(a, 1, feat)[0]

    # Zero-padded gamma/beta/bias lanes keep all padded features exactly 0.
    vecs = jnp.stack([row(params["b1"]), row(params["g1"]), row(params["be1"]),
                      row(params["b2"]), row(params["g2"]), row(params["be2"]),
                      row(params["b3"]), jnp.zeros((feat,), jnp.float32)]
                     ).astype(jnp.float32)                         # (8, F)

    return dict(embedding=emb, w1p=w1p, w2p=w2p, w3p=w3p, vecs=vecs,
                num_classes=num_classes, feat=feat, in_dim=l_in)


def _pick_groups_per_step(num_batches: int, rows_per_group: int,
                          max_rows_per_step: int = 256) -> int:
    """Largest number of independent BN batches packed per grid step such that
    the row-block fills the MXU (<= max_rows_per_step) and tiles legally.
    128 rows already fills v5e's MXU; 256 fills v6e/v7x and is fine on v5e."""
    best = num_batches          # one full-array step is always a legal block
    for g in range(1, num_batches + 1):
        if num_batches % g:
            continue
        rows = g * rows_per_group
        if rows > max_rows_per_step:
            break
        if num_batches // g > 1 and rows % 16 != 0:
            continue            # multi-step bf16 blocks: keep sublane-aligned
        best = g
    return best


def newsnet_forward_batched(x_tokens, prep, *, max_rows_per_step=256):
    """x_tokens: (num_batches, B, L) int32 — num_batches *independent*
    forward() calls (each its own training-mode BatchNorm batch), fused into a
    single pallas_call so weights stay VMEM-resident and MXU rows are full."""
    nb, bsz, seq = x_tokens.shape

    # Embedding lookup (+ .detach()) is plain-JAX glue feeding the kernel.
    # TODO(synk): fuse the gather via scalar-prefetched tokens + in-kernel
    # gather; kept in XLA because Mosaic's dynamic row-gather path is fragile
    # for this (100, 64) table and it is off the kernel's DMA critical path.
    emb = jax.lax.stop_gradient(prep["embedding"][x_tokens])     # (nb,B,L,D) bf16
    flat = emb.reshape(nb * bsz, seq * emb.shape[-1])            # (nb*B, L*D)
    assert flat.shape[1] == prep["in_dim"], "prep seq_len mismatch"

    feat, in_dim = prep["feat"], prep["in_dim"]
    groups = _pick_groups_per_step(nb, bsz, max_rows_per_step)
    rows = groups * bsz
    n_steps = nb // groups

    kernel = functools.partial(_newsnet_kernel,
                               groups=groups, rows_per_group=bsz)

    out = pl.pallas_call(
        kernel,
        grid=(n_steps,),
        in_specs=[
            # Activation stream: one (rows, L*D) tile per step, auto
            # double-buffered by the BlockSpec pipeline.
            pl.BlockSpec((rows, in_dim), lambda i: (i, 0)),
            # Weights / packed vectors: constant index_map -> DMA'd once and
            # VMEM-resident across all grid steps.
            pl.BlockSpec(prep["w1p"].shape, lambda i: (0, 0)),
            pl.BlockSpec(prep["w2p"].shape, lambda i: (0, 0)),
            pl.BlockSpec(prep["w3p"].shape, lambda i: (0, 0)),
            pl.BlockSpec(prep["vecs"].shape, lambda i: (0, 0)),
        ],
        out_specs=pl.BlockSpec((rows, feat), lambda i: (i, 0)),
        out_shape=jax.ShapeDtypeStruct((nb * bsz, feat), jnp.float32),
        compiler_params=pltpu.CompilerParams(
            # Steps are independent -> v7x megacore splits them; no-op on
            # v5e/v6e (single TensorCore).
            dimension_semantics=("parallel",)),
    )(flat, prep["w1p"], prep["w2p"], prep["w3p"], prep["vecs"])

    # Kernel writes lane-dense (.., 128) logits; keep only the real classes.
    return out[:, :prep["num_classes"]].reshape(nb, bsz, prep["num_classes"])


def newsnet_forward(x_tokens, prep):
    """Original module semantics: one (B, L) token batch -> (B, num_classes)."""
    return newsnet_forward_batched(x_tokens[None], prep)[0]


# ----------------------------------------------------------------------------
# Pure-JAX references for the self-test
# ----------------------------------------------------------------------------
def _prepared_reference(x_tokens, prep):
    """Same math / same dtypes as the kernel (exact-division softsign),
    vmapped over the independent batches."""
    def single(tok):
        emb = jax.lax.stop_gradient(prep["embedding"][tok])       # (B, L, D)
        flat = emb.reshape(emb.shape[0], -1)
        v = prep["vecs"]
        b1, g1, be1, b2, g2, be2, b3 = (v[i:i + 1] for i in range(7))

        def lin(h, w, b):
            return jnp.dot(h.astype(w.dtype), w,
                           preferred_element_type=jnp.float32) + b

        def bn_ss(h, g, be):
            m = h.mean(0, keepdims=True)
            c = h - m
            var = (c * c).mean(0, keepdims=True)
            y = c * (g * jax.lax.rsqrt(var + _EPS)) + be
            return y / (1.0 + jnp.abs(y))

        h = bn_ss(lin(flat, prep["w1p"], b1), g1, be1)
        h = bn_ss(lin(h, prep["w2p"], b2), g2, be2)
        return lin(h, prep["w3p"], b3)[:, :prep["num_classes"]]

    return jax.vmap(single)(x_tokens)


def _torch_reference(x_tokens, params):
    """f32 reference with the original (unfused, unpadded) torch math."""
    d_embed = params["embedding"].shape[1]
    l_in = x_tokens.shape[-1] * d_embed
    pool = _adaptive_avg_pool_matrix(l_in, params["w1"].shape[0])

    def single(tok):
        emb = params["embedding"][tok]
        flat = emb.reshape(emb.shape[0], -1).astype(jnp.float32)

        def bn(h, g, b):
            m = h.mean(0, keepdims=True)
            v = ((h - m) ** 2).mean(0, keepdims=True)
            return (h - m) / jnp.sqrt(v + _EPS) * g + b

        ss = lambda h: h / (1.0 + jnp.abs(h))
        h = flat @ pool
        h = ss(bn(h @ params["w1"] + params["b1"], params["g1"], params["be1"]))
        h = ss(bn(h @ params["w2"] + params["b2"], params["g2"], params["be2"]))
        return h @ params["w3"] + params["b3"]

    return jax.vmap(single)(x_tokens)


if __name__ == "__main__":
    # 64 independent forward() calls of (B=8, L=16) tokens; n_embed=100,
    # d_embed=64, hidden_size=32, num_classes=7.  The batched path packs
    # 32 batches (256 rows) per grid step -> grid=(2,), weights VMEM-resident.
    NB, B, L = 64, 8, 16
    N_EMBED, D_EMBED, HIDDEN, NUM_CLASSES = 100, 64, 32, 7

    key = jax.random.PRNGKey(0)
    k_tok, k_par = jax.random.split(key)
    x = jax.random.randint(k_tok, (NB, B, L), 0, N_EMBED, dtype=jnp.int32)
    params = init_params(k_par, N_EMBED, D_EMBED, HIDDEN, NUM_CLASSES)

    prep_bf16 = prepare_params(params, L, weight_dtype=jnp.bfloat16)
    prep_f32 = prepare_params(params, L, weight_dtype=jnp.float32)

    # Batched path.
    out = jax.block_until_ready(newsnet_forward_batched(x, prep_bf16))
    assert out.shape == (NB, B, NUM_CLASSES)

    # Single-batch path (original module semantics) must match batch 0.
    out_single = jax.block_until_ready(newsnet_forward(x[0], prep_bf16))
    assert out_single.shape == (B, NUM_CLASSES)
    assert jnp.allclose(out_single, out[0], rtol=1e-4, atol=1e-4)

    # (1) Kernel vs. same-math / same-dtype pure-JAX reference.  The only
    #     intended divergence is the EUP approx reciprocal inside softsign,
    #     whose error gets amplified by the per-batch BN rescale -> tolerance
    #     is a conservative 2e-2 on O(0.5) logits.
    ref_bf16 = jax.block_until_ready(_prepared_reference(x, prep_bf16))
    assert jnp.allclose(out, ref_bf16, rtol=2e-2, atol=2e-2)

    # (2) Prep math (pool fold + lane padding) vs. torch-semantics f32 math.
    ref_prep_f32 = _prepared_reference(x, prep_f32)
    ref_f32 = _torch_reference(x, params)
    assert jnp.allclose(ref_prep_f32, ref_f32, rtol=1e-3, atol=1e-3)

    # (3) Gross sanity: bf16-weight kernel vs. full-f32 torch reference.
    assert jnp.allclose(out, ref_f32, rtol=1e-1, atol=1e-1)

    print("KERNEL_OK")
</pallas_src>

<mosaic_0001>
module attributes {stable_mosaic.version = 11 : i64} {
  func.func @_newsnet_kernel(%arg0: i32, %arg1: memref<256x1024xbf16, #tpu.memory_space<vmem>>, %arg2: memref<1024x128xbf16, #tpu.memory_space<vmem>>, %arg3: memref<128x128xbf16, #tpu.memory_space<vmem>>, %arg4: memref<128x128xbf16, #tpu.memory_space<vmem>>, %arg5: memref<8x128xf32, #tpu.memory_space<vmem>>, %arg6: memref<256x128xf32, #tpu.memory_space<vmem>>) attributes {dimension_semantics = [#tpu.dimension_semantics<parallel>], iteration_bounds = array<i64: 2>, scalar_prefetch = 0 : i64, scratch_operands = 0 : i64, tpu.core_type = #tpu.core_type<tc>, window_params = [{transform_indices = @transform_0, window_bounds = array<i64: 256, 1024>}, {pipeline_mode = #tpu.pipeline_mode<synchronous>, transform_indices = @transform_1, window_bounds = array<i64: 1024, 128>}, {pipeline_mode = #tpu.pipeline_mode<synchronous>, transform_indices = @transform_2, window_bounds = array<i64: 128, 128>}, {pipeline_mode = #tpu.pipeline_mode<synchronous>, transform_indices = @transform_3, window_bounds = array<i64: 128, 128>}, {pipeline_mode = #tpu.pipeline_mode<synchronous>, transform_indices = @transform_4, window_bounds = array<i64: 8, 128>}, {transform_indices = @transform_5, window_bounds = array<i64: 256, 128>}]} {
    %c0 = arith.constant 0 : index
    %c0_0 = arith.constant 0 : index
    %0 = vector.load %arg5[%c0, %c0_0] : memref<8x128xf32, #tpu.memory_space<vmem>>, vector<1x128xf32>
    %c1 = arith.constant 1 : index
    %c0_1 = arith.constant 0 : index
    %1 = vector.load %arg5[%c1, %c0_1] : memref<8x128xf32, #tpu.memory_space<vmem>>, vector<1x128xf32>
    %c2 = arith.constant 2 : index
    %c0_2 = arith.constant 0 : index
    %2 = vector.load %arg5[%c2, %c0_2] : memref<8x128xf32, #tpu.memory_space<vmem>>, vector<1x128xf32>
    %c3 = arith.constant 3 : index
    %c0_3 = arith.constant 0 : index
    %3 = vector.load %arg5[%c3, %c0_3] : memref<8x128xf32, #tpu.memory_space<vmem>>, vector<1x128xf32>
    %c4 = arith.constant 4 : index
    %c0_4 = arith.constant 0 : index
    %4 = vector.load %arg5[%c4, %c0_4] : memref<8x128xf32, #tpu.memory_space<vmem>>, vector<1x128xf32>
    %c5 = arith.constant 5 : index
    %c0_5 = arith.constant 0 : index
    %5 = vector.load %arg5[%c5, %c0_5] : memref<8x128xf32, #tpu.memory_space<vmem>>, vector<1x128xf32>
    %c6 = arith.constant 6 : index
    %c0_6 = arith.constant 0 : index
    %6 = vector.load %arg5[%c6, %c0_6] : memref<8x128xf32, #tpu.memory_space<vmem>>, vector<1x128xf32>
    %c0_7 = arith.constant 0 : index
    %c0_8 = arith.constant 0 : index
    %7 = vector.load %arg1[%c0_7, %c0_8] : memref<256x1024xbf16, #tpu.memory_space<vmem>>, vector<256x1024xbf16>
    %c0_9 = arith.constant 0 : index
    %c0_10 = arith.constant 0 : index
    %8 = vector.load %arg2[%c0_9, %c0_10] : memref<1024x128xbf16, #tpu.memory_space<vmem>>, vector<1024x128xbf16>
    %cst = arith.constant dense<0.000000e+00> : vector<256x128xf32>
    %9 = tpu.matmul %7, %8, %cst {dimension_numbers = #tpu.dot_dimension_numbers<[1], [0], [0], [1], [0, 0, 1, 1], [], []>} : vector<256x1024xbf16>, vector<1024x128xbf16>, vector<256x128xf32> -> vector<256x128xf32>
    %10 = vector.broadcast %0 : vector<1x128xf32> to vector<256x128xf32>
    %11 = arith.addf %9, %10 : vector<256x128xf32>
    %12 = vector.shape_cast %11 : vector<256x128xf32> to vector<32x8x128xf32>
    %cst_11 = arith.constant dense<0.000000e+00> : vector<32x128xf32>
    %13 = vector.multi_reduction <add>, %12, %cst_11 [1] : vector<32x8x128xf32> to vector<32x128xf32>
    %14 = vector.shape_cast %13 : vector<32x128xf32> to vector<32x1x128xf32>
    %cst_12 = arith.constant 8.000000e+00 : f32
    %15 = vector.broadcast %cst_12 : f32 to vector<32x1x128xf32>
    %16 = arith.divf %14, %15 : vector<32x1x128xf32>
    %17 = vector.broadcast %16 : vector<32x1x128xf32> to vector<32x8x128xf32>
    %18 = arith.subf %12, %17 : vector<32x8x128xf32>
    %19 = arith.mulf %18, %18 : vector<32x8x128xf32>
    %cst_13 = arith.constant dense<0.000000e+00> : vector<32x128xf32>
    %20 = vector.multi_reduction <add>, %19, %cst_13 [1] : vector<32x8x128xf32> to vector<32x128xf32>
    %21 = vector.shape_cast %20 : vector<32x128xf32> to vector<32x1x128xf32>
    %cst_14 = arith.constant 8.000000e+00 : f32
    %22 = vector.broadcast %cst_14 : f32 to vector<32x1x128xf32>
    %23 = arith.divf %21, %22 : vector<32x1x128xf32>
    %cst_15 = arith.constant 9.99999974E-6 : f32
    %24 = vector.broadcast %cst_15 : f32 to vector<32x1x128xf32>
    %25 = arith.addf %23, %24 : vector<32x1x128xf32>
    %26 = math.rsqrt %25 : vector<32x1x128xf32>
    %27 = vector.shape_cast %1 : vector<1x128xf32> to vector<1x1x128xf32>
    %28 = vector.broadcast %27 : vector<1x1x128xf32> to vector<32x1x128xf32>
    %29 = arith.mulf %28, %26 : vector<32x1x128xf32>
    %30 = vector.broadcast %29 : vector<32x1x128xf32> to vector<32x8x128xf32>
    %31 = arith.mulf %18, %30 : vector<32x8x128xf32>
    %32 = vector.shape_cast %2 : vector<1x128xf32> to vector<1x1x128xf32>
    %33 = vector.broadcast %32 : vector<1x1x128xf32> to vector<32x8x128xf32>
    %34 = arith.addf %31, %33 : vector<32x8x128xf32>
    %35 = vector.shape_cast %34 : vector<32x8x128xf32> to vector<256x128xf32>
    %36 = math.absf %35 : vector<256x128xf32>
    %cst_16 = arith.constant 1.000000e+00 : f32
    %37 = vector.broadcast %cst_16 : f32 to vector<256x128xf32>
    %38 = arith.addf %37, %36 : vector<256x128xf32>
    %39 = tpu.reciprocal %38 {approx = true} : vector<256x128xf32> -> vector<256x128xf32>
    %40 = arith.mulf %35, %39 : vector<256x128xf32>
    %41 = arith.truncf %40 : vector<256x128xf32> to vector<256x128xbf16>
    %c0_17 = arith.constant 0 : index
    %c0_18 = arith.constant 0 : index
    %42 = vector.load %arg3[%c0_17, %c0_18] : memref<128x128xbf16, #tpu.memory_space<vmem>>, vector<128x128xbf16>
    %cst_19 = arith.constant dense<0.000000e+00> : vector<256x128xf32>
    %43 = tpu.matmul %41, %42, %cst_19 {dimension_numbers = #tpu.dot_dimension_numbers<[1], [0], [0], [1], [0, 0, 1, 1], [], []>} : vector<256x128xbf16>, vector<128x128xbf16>, vector<256x128xf32> -> vector<256x128xf32>
    %44 = vector.broadcast %3 : vector<1x128xf32> to vector<256x128xf32>
    %45 = arith.addf %43, %44 : vector<256x128xf32>
    %46 = vector.shape_cast %45 : vector<256x128xf32> to vector<32x8x128xf32>
    %cst_20 = arith.constant dense<0.000000e+00> : vector<32x128xf32>
    %47 = vector.multi_reduction <add>, %46, %cst_20 [1] : vector<32x8x128xf32> to vector<32x128xf32>
    %48 = vector.shape_cast %47 : vector<32x128xf32> to vector<32x1x128xf32>
    %cst_21 = arith.constant 8.000000e+00 : f32
    %49 = vector.broadcast %cst_21 : f32 to vector<32x1x128xf32>
    %50 = arith.divf %48, %49 : vector<32x1x128xf32>
    %51 = vector.broadcast %50 : vector<32x1x128xf32> to vector<32x8x128xf32>
    %52 = arith.subf %46, %51 : vector<32x8x128xf32>
    %53 = arith.mulf %52, %52 : vector<32x8x128xf32>
    %cst_22 = arith.constant dense<0.000000e+00> : vector<32x128xf32>
    %54 = vector.multi_reduction <add>, %53, %cst_22 [1] : vector<32x8x128xf32> to vector<32x128xf32>
    %55 = vector.shape_cast %54 : vector<32x128xf32> to vector<32x1x128xf32>
    %cst_23 = arith.constant 8.000000e+00 : f32
    %56 = vector.broadcast %cst_23 : f32 to vector<32x1x128xf32>
    %57 = arith.divf %55, %56 : vector<32x1x128xf32>
    %cst_24 = arith.constant 9.99999974E-6 : f32
    %58 = vector.broadcast %cst_24 : f32 to vector<32x1x128xf32>
    %59 = arith.addf %57, %58 : vector<32x1x128xf32>
    %60 = math.rsqrt %59 : vector<32x1x128xf32>
    %61 = vector.shape_cast %4 : vector<1x128xf32> to vector<1x1x128xf32>
    %62 = vector.broadcast %61 : vector<1x1x128xf32> to vector<32x1x128xf32>
    %63 = arith.mulf %62, %60 : vector<32x1x128xf32>
    %64 = vector.broadcast %63 : vector<32x1x128xf32> to vector<32x8x128xf32>
    %65 = arith.mulf %52, %64 : vector<32x8x128xf32>
    %66 = vector.shape_cast %5 : vector<1x128xf32> to vector<1x1x128xf32>
    %67 = vector.broadcast %66 : vector<1x1x128xf32> to vector<32x8x128xf32>
    %68 = arith.addf %65, %67 : vector<32x8x128xf32>
    %69 = vector.shape_cast %68 : vector<32x8x128xf32> to vector<256x128xf32>
    %70 = math.absf %69 : vector<256x128xf32>
    %cst_25 = arith.constant 1.000000e+00 : f32
    %71 = vector.broadcast %cst_25 : f32 to vector<256x128xf32>
    %72 = arith.addf %71, %70 : vector<256x128xf32>
    %73 = tpu.reciprocal %72 {approx = true} : vector<256x128xf32> -> vector<256x128xf32>
    %74 = arith.mulf %69, %73 : vector<256x128xf32>
    %75 = arith.truncf %74 : vector<256x128xf32> to vector<256x128xbf16>
    %c0_26 = arith.constant 0 : index
    %c0_27 = arith.constant 0 : index
    %76 = vector.load %arg4[%c0_26, %c0_27] : memref<128x128xbf16, #tpu.memory_space<vmem>>, vector<128x128xbf16>
    %cst_28 = arith.constant dense<0.000000e+00> : vector<256x128xf32>
    %77 = tpu.matmul %75, %76, %cst_28 {dimension_numbers = #tpu.dot_dimension_numbers<[1], [0], [0], [1], [0, 0, 1, 1], [], []>} : vector<256x128xbf16>, vector<128x128xbf16>, vector<256x128xf32> -> vector<256x128xf32>
    %78 = vector.broadcast %6 : vector<1x128xf32> to vector<256x128xf32>
    %79 = arith.addf %77, %78 : vector<256x128xf32>
    %c0_29 = arith.constant 0 : index
    %c0_30 = arith.constant 0 : index
    %80 = vector.load %arg6[%c0_29, %c0_30] : memref<256x128xf32, #tpu.memory_space<vmem>>, vector<256x128xf32>
    tpu.vector_store %arg6[%c0_29, %c0_30], %79 {strides = array<i32>} : memref<256x128xf32, #tpu.memory_space<vmem>>, vector<256x128xf32>,
    return
  }
  func.func @transform_0(%arg0: i32) -> (i32, i32) {
    %c0_i32 = arith.constant 0 : i32
    %c0_i32_0 = arith.constant 0 : i32
    return %arg0, %c0_i32 : i32, i32
  }
  func.func @transform_1(%arg0: i32) -> (i32, i32) {
    %c0_i32 = arith.constant 0 : i32
    %c0_i32_0 = arith.constant 0 : i32
    %c0_i32_1 = arith.constant 0 : i32
    return %c0_i32, %c0_i32_0 : i32, i32
  }
  func.func @transform_2(%arg0: i32) -> (i32, i32) {
    %c0_i32 = arith.constant 0 : i32
    %c0_i32_0 = arith.constant 0 : i32
    %c0_i32_1 = arith.constant 0 : i32
    return %c0_i32, %c0_i32_0 : i32, i32
  }
  func.func @transform_3(%arg0: i32) -> (i32, i32) {
    %c0_i32 = arith.constant 0 : i32
    %c0_i32_0 = arith.constant 0 : i32
    %c0_i32_1 = arith.constant 0 : i32
    return %c0_i32, %c0_i32_0 : i32, i32
  }
  func.func @transform_4(%arg0: i32) -> (i32, i32) {
    %c0_i32 = arith.constant 0 : i32
    %c0_i32_0 = arith.constant 0 : i32
    %c0_i32_1 = arith.constant 0 : i32
    return %c0_i32, %c0_i32_0 : i32, i32
  }
  func.func @transform_5(%arg0: i32) -> (i32, i32) {
    %c0_i32 = arith.constant 0 : i32
    %c0_i32_0 = arith.constant 0 : i32
    return %arg0, %c0_i32 : i32, i32
  }
}

</mosaic_0001>

<llo_original>
// kernel: tpu_custom_call.1
$region0: #{tpu_custom_call.1}
  #allocation0 [shape = 'u32[]', space=smem, size = 0x4, offset = 0x4, fixed_abs, tag = 'smem constant byte address 0x4 - core index']
  #allocation1 [shape = 'u32[144,128]{1,0:T(1,128)}', space=vmem, size = 0x12000, scoped, tag = 'internal scratch']
  %s0 = inlined_call_operand.hbm [shape: bf16[512,1024], index: 0, kind: input, shape index: {}]
  %s1 = inlined_call_operand.hbm [shape: bf16[1024,128], index: 1, kind: input, shape index: {}]
  %s2 = inlined_call_operand.hbm [shape: bf16[128,128], index: 2, kind: input, shape index: {}]
  %s3 = inlined_call_operand.hbm [shape: bf16[128,128], index: 3, kind: input, shape index: {}]
  %s4 = inlined_call_operand.vmem [shape: f32[8,128], index: 4, kind: input, shape index: {}]
  %s5 = inlined_call_operand.hbm [shape: f32[512,128], index: 5, kind: output, shape index: {}]
  %s6 = sld [smem:[#allocation0]]
  $region69: #{tpu_custom_call.1} parent=0
    _
  %s8 = ssub.s32 1, %s6
  %s9 = scalar_select 0, %s8, %s6
  $region1: #{tpu_custom_call.1} parent=0
    #allocation2 [shape = 'u8[1048576]{0}', space=vmem, size = 0x100000, scoped, tag = 'input window, operand 0']
    #allocation3 [shape = 's32[2]{0}', space=sflag, size = 0x8, scoped, tag = 'scoped memory for tpu_custom_call.1']
    #allocation4 [shape = 's32[2]{0}', space=sflag, size = 0x8, scoped, tag = 'scoped memory for tpu_custom_call.1']
    #allocation5 [shape = 'u8[262144]{0}', space=vmem, size = 0x40000, scoped, tag = 'input window, operand 1, single buffered']
    #allocation6 [shape = 's32[1]{0}', space=sflag, size = 0x4, scoped, tag = 'scoped memory for tpu_custom_call.1']
    #allocation7 [shape = 'u8[32768]{0}', space=vmem, size = 0x8000, scoped, tag = 'input window, operand 2, single buffered']
    #allocation8 [shape = 'u8[32768]{0}', space=vmem, size = 0x8000, scoped, tag = 'input window, operand 3, single buffered']
    #allocation9 [shape = 's32[1]{0}', space=sflag, size = 0x4, scoped, tag = 'scoped memory for tpu_custom_call.1']
    #allocation10 [shape = 'u8[262144]{0}', space=vmem, size = 0x40000, scoped, tag = 'output window, operand 0']
    %10 = vsyncpa [#allocation3], 0
    %s11 = scalar_lea.sflag [#allocation3], 1
    %12 = vsyncpa %s11, 0
    %13 = vsyncpa [#allocation6], 0
    %14 = vsyncpa [#allocation9], 0
    %15 = vsyncpa [#allocation4], 0
    %s16 = scalar_lea.sflag [#allocation4], 1
    %17 = vsyncpa %s16, 0
    loop: start=0, step=1, limit=4
    $region2: #{tpu_custom_call.1} parent=1 // loop_pre_header
      _
    $region3: #{tpu_custom_call.1} parent=1 // loop_header
      %s19 = sphi 0, %s23
      %p20 = scmp.ge.s32.totalorder %s19, 4
      %s29 = sphi 0, %s31
      %s32 = sphi 0, %s29
      %s33 = sphi 0, %s32
      %s49 = sphi 0, %s33
      %s53 = sphi 0, %s53
      %s55 = sphi 0, %s53
      %s56 = sphi 0, %s55
      %s70 = sphi 0, %s56
      %s74 = sphi 0, %s74
      %s76 = sphi 0, %s74
      %s77 = sphi 0, %s76
      %s91 = sphi 0, %s77
      %s95 = sphi 0, %s95
      %s97 = sphi 0, %s95
      %s98 = sphi 0, %s97
      %s112 = sphi 0, %s98
      %s116 = sphi 0, %s116
      %s118 = sphi 0, %s116
      %s119 = sphi 0, %s118
      %s133 = sphi 0, %s119
      %s139 = sphi 0, %s141
      %s142 = sphi 0, %s139
      %s143 = sphi 0, %s142
      %s159 = sphi 0, %s143
    $region4: #{tpu_custom_call.1} parent=1 // loop_header_branch
      %22 = sbr.rel (%p20) target = $region8
    $region5: #{tpu_custom_call.1} parent=1 // loop_body
      %s24 = ssub.s32 %s19, 1
      %s25 = ssub.s32 %s19, 2
      %s26 = sadd.s32 %s19, 1
      %s27 = ssub.s32 %s19, %s26
      %p28 = scmp.eq.s32.totalorder %s27, 0
      %s30 = sadd.s32 %s29, 1
      %s31 = scalar_select %p28, %s29, %s30
      %p34 = pneg %p28
      %p35 = scmp.eq.s32.totalorder %s19, 1
      %p36 = por %p34, %p35
      %p37 = scmp.ne.s32.totalorder %s29, %s32
      %p38 = scmp.eq.s32.totalorder %s19, 0
      %p39 = por %p37, %p38
      %p40 = scmp.ne.s32.totalorder %s29, %s32
      %p41 = scmp.eq.s32.totalorder %s24, 1
      %p42 = por %p40, %p41
      %p43 = scmp.ne.s32.totalorder %s32, %s33
      %p44 = scmp.eq.s32.totalorder %s24, 0
      %p45 = por %p43, %p44
      %p46 = scmp.ne.s32.totalorder %s32, %s33
      %p47 = scmp.eq.s32.totalorder %s25, 1
      %p48 = por %p46, %p47
      %p50 = scmp.ne.s32.totalorder %s33, %s49
      %p51 = scmp.eq.s32.totalorder %s25, 0
      %p52 = por %p50, %p51
      %s54 = sadd.s32 %s53, 1
      %p57 = scmp.eq.s32.totalorder %s19, 1
      %p58 = scmp.ne.s32.totalorder %s53, %s55
      %p59 = scmp.eq.s32.totalorder %s19, 0
      %p60 = por %p58, %p59
      %p61 = scmp.ne.s32.totalorder %s53, %s55
      %p62 = scmp.eq.s32.totalorder %s24, 1
      %p63 = por %p61, %p62
      %p64 = scmp.ne.s32.totalorder %s55, %s56
      %p65 = scmp.eq.s32.totalorder %s24, 0
      %p66 = por %p64, %p65
      %p67 = scmp.ne.s32.totalorder %s55, %s56
      %p68 = scmp.eq.s32.totalorder %s25, 1
      %p69 = por %p67, %p68
      %p71 = scmp.ne.s32.totalorder %s56, %s70
      %p72 = scmp.eq.s32.totalorder %s25, 0
      %p73 = por %p71, %p72
      %s75 = sadd.s32 %s74, 1
      %p78 = scmp.eq.s32.totalorder %s19, 1
      %p79 = scmp.ne.s32.totalorder %s74, %s76
      %p80 = scmp.eq.s32.totalorder %s19, 0
      %p81 = por %p79, %p80
      %p82 = scmp.ne.s32.totalorder %s74, %s76
      %p83 = scmp.eq.s32.totalorder %s24, 1
      %p84 = por %p82, %p83
      %p85 = scmp.ne.s32.totalorder %s76, %s77
      %p86 = scmp.eq.s32.totalorder %s24, 0
      %p87 = por %p85, %p86
      %p88 = scmp.ne.s32.totalorder %s76, %s77
      %p89 = scmp.eq.s32.totalorder %s25, 1
      %p90 = por %p88, %p89
      %p92 = scmp.ne.s32.totalorder %s77, %s91
      %p93 = scmp.eq.s32.totalorder %s25, 0
      %p94 = por %p92, %p93
      %s96 = sadd.s32 %s95, 1
      %p99 = scmp.eq.s32.totalorder %s19, 1
      %p100 = scmp.ne.s32.totalorder %s95, %s97
      %p101 = scmp.eq.s32.totalorder %s19, 0
      %p102 = por %p100, %p101
      %p103 = scmp.ne.s32.totalorder %s95, %s97
      %p104 = scmp.eq.s32.totalorder %s24, 1
      %p105 = por %p103, %p104
      %p106 = scmp.ne.s32.totalorder %s97, %s98
      %p107 = scmp.eq.s32.totalorder %s24, 0
      %p108 = por %p106, %p107
      %p109 = scmp.ne.s32.totalorder %s97, %s98
      %p110 = scmp.eq.s32.totalorder %s25, 1
      %p111 = por %p109, %p110
      %p113 = scmp.ne.s32.totalorder %s98, %s112
      %p114 = scmp.eq.s32.totalorder %s25, 0
      %p115 = por %p113, %p114
      %s117 = sadd.s32 %s116, 1
      %p120 = scmp.eq.s32.totalorder %s19, 1
      %p121 = scmp.ne.s32.totalorder %s116, %s118
      %p122 = scmp.eq.s32.totalorder %s19, 0
      %p123 = por %p121, %p122
      %p124 = scmp.ne.s32.totalorder %s116, %s118
      %p125 = scmp.eq.s32.totalorder %s24, 1
      %p126 = por %p124, %p125
      %p127 = scmp.ne.s32.totalorder %s118, %s119
      %p128 = scmp.eq.s32.totalorder %s24, 0
      %p129 = por %p127, %p128
      %p130 = scmp.ne.s32.totalorder %s118, %s119
      %p131 = scmp.eq.s32.totalorder %s25, 1
      %p132 = por %p130, %p131
      %p134 = scmp.ne.s32.totalorder %s119, %s133
      %p135 = scmp.eq.s32.totalorder %s25, 0
      %p136 = por %p134, %p135
      %s137 = ssub.s32 %s19, %s26
      %p138 = scmp.eq.s32.totalorder %s137, 0
      %s140 = sadd.s32 %s139, 1
      %s141 = scalar_select %p138, %s139, %s140
      %p144 = pneg %p138
      %p145 = scmp.eq.s32.totalorder %s19, 1
      %p146 = por %p144, %p145
      %p147 = scmp.ne.s32.totalorder %s139, %s142
      %p148 = scmp.eq.s32.totalorder %s19, 0
      %p149 = por %p147, %p148
      %p150 = scmp.ne.s32.totalorder %s139, %s142
      %p151 = scmp.eq.s32.totalorder %s24, 1
      %p152 = por %p150, %p151
      %p153 = scmp.ne.s32.totalorder %s142, %s143
      %p154 = scmp.eq.s32.totalorder %s24, 0
      %p155 = por %p153, %p154
      %p156 = scmp.ne.s32.totalorder %s142, %s143
      %p157 = scmp.eq.s32.totalorder %s25, 1
      %p158 = por %p156, %p157
      %p160 = scmp.ne.s32.totalorder %s143, %s159
      %p161 = scmp.eq.s32.totalorder %s25, 0
      %p162 = por %p160, %p161
      %p163 = scmp.le.s32.totalorder 1, %s19
      %p164 = scmp.lt.s32.totalorder %s19, 3
      %p165 = pnand %p163, %p164
      %p166 = pneg %p165
      // Predicated region
      $region9: #{tpu_custom_call.1} parent=5 // pred_check
        _
      $region10: #{tpu_custom_call.1} parent=5 // pred_check_branch
        %168 = sbr.rel (%p165) target = $region12
      $region11: #{tpu_custom_call.1} parent=5 // pred_region
        %s169 = ssub.s32 %s19, 1
        // Predicated region
        $region13: #{tpu_custom_call.1} parent=11 // pred_check
          %p170 = pneg %p66
        $region14: #{tpu_custom_call.1} parent=11 // pred_check_branch
          %172 = sbr.rel (%p170) target = $region16
        $region15: #{tpu_custom_call.1} parent=11 // pred_region
          %s174 = ssub.s32 8192, 8192
          %175 = vsyncadd [#allocation6], %s174
          %s176 = sshll.u32 [#allocation5], 4
          %s177 = int_to_ptr.vmem [resolvable:$true] %s176
          %182 = dma.hbm_to_vmem [thread:$0]  %s1, 8192, %s177, [#allocation6], 64, 64, 4
        $region16: #{tpu_custom_call.1} parent=11 // pred_fallthru
          _
        // Predicated region
        $region17: #{tpu_custom_call.1} parent=11 // pred_check
          %p183 = pneg %p87
        $region18: #{tpu_custom_call.1} parent=11 // pred_check_branch
          %185 = sbr.rel (%p183) target = $region20
        $region19: #{tpu_custom_call.1} parent=11 // pred_region
          %s187 = ssub.s32 1024, 1024
          %188 = vsyncadd [#allocation6], %s187
          %s189 = sshll.u32 [#allocation7], 4
          %s190 = int_to_ptr.vmem [resolvable:$true] %s189
          %195 = dma.hbm_to_vmem [thread:$0]  %s2, 1024, %s190, [#allocation6], 64, 64, 4
        $region20: #{tpu_custom_call.1} parent=11 // pred_fallthru
          _
        // Predicated region
        $region21: #{tpu_custom_call.1} parent=11 // pred_check
          %p196 = pneg %p108
        $region22: #{tpu_custom_call.1} parent=11 // pred_check_branch
          %198 = sbr.rel (%p196) target = $region24
        $region23: #{tpu_custom_call.1} parent=11 // pred_region
          %s200 = ssub.s32 1024, 1024
          %201 = vsyncadd [#allocation9], %s200
          %s202 = sshll.u32 [#allocation8], 4
          %s203 = int_to_ptr.vmem [resolvable:$true] %s202
          %208 = dma.hbm_to_vmem [thread:$0]  %s3, 1024, %s203, [#allocation9], 64, 64, 4
        $region24: #{tpu_custom_call.1} parent=11 // pred_fallthru
          _
        // Predicated region
        $region25: #{tpu_custom_call.1} parent=11 // pred_check
          %p209 = pneg %p129
        $region26: #{tpu_custom_call.1} parent=11 // pred_check_branch
          %211 = sbr.rel (%p209) target = $region28
        $region27: #{tpu_custom_call.1} parent=11 // pred_region
          _
        $region28: #{tpu_custom_call.1} parent=11 // pred_fallthru
          _
      $region12: #{tpu_custom_call.1} parent=5 // pred_fallthru
        _
      %p212 = scmp.lt.s32.totalorder %s19, 2
      // Predicated region
      $region29: #{tpu_custom_call.1} parent=5 // pred_check
        %p213 = pneg %p212
      $region30: #{tpu_custom_call.1} parent=5 // pred_check_branch
        %215 = sbr.rel (%p213) target = $region32
      $region31: #{tpu_custom_call.1} parent=5 // pred_region
        // Predicated region
        $region33: #{tpu_custom_call.1} parent=31 // pred_check
          %p216 = pneg %p39
        $region34: #{tpu_custom_call.1} parent=31 // pred_check_branch
          %218 = sbr.rel (%p216) target = $region36
        $region35: #{tpu_custom_call.1} parent=31 // pred_region
          %s219 = sand.u32 %s29, 1
          %s220 = scalar_lea.sflag [#allocation3], %s219
          %s221 = sand.u32 %s29, 1
          %s222 = smul.addr %s221, 1024
          %s223 = scalar_lea.vmem [#allocation2], %s222
          %s224 = smul.u32 32, %s19
          %s226 = ssub.s32 16384, 16384
          %227 = vsyncadd %s220, %s226
          %s228 = smul.addr %s224, 8
          %s229 = smul.addr %s228, 64
          %s230 = scalar_lea.hbm %s0, %s229
          %s231 = sshll.u32 %s223, 4
          %s232 = int_to_ptr.vmem [resolvable:$true] %s231
          %237 = dma.hbm_to_vmem [thread:$0]  %s230, 16384, %s232, %s220, 512, 512, 32
        $region36: #{tpu_custom_call.1} parent=31 // pred_fallthru
          _
      $region32: #{tpu_custom_call.1} parent=5 // pred_fallthru
        _
      %p238 = scmp.le.s32.totalorder 1, %s19
      %p239 = scmp.lt.s32.totalorder %s19, 3
      %p240 = pnand %p238, %p239
      %p241 = pneg %p240
      // Predicated region
      $region37: #{tpu_custom_call.1} parent=5 // pred_check
        _
      $region38: #{tpu_custom_call.1} parent=5 // pred_check_branch
        %243 = sbr.rel (%p240) target = $region40
      $region39: #{tpu_custom_call.1} parent=5 // pred_region
        %s244 = ssub.s32 %s19, 1
        %s245 = sand.u32 %s32, 1
        %s246 = scalar_lea.sflag [#allocation3], %s245
        %s247 = sand.u32 %s32, 1
        %s248 = smul.addr %s247, 1024
        %s249 = scalar_lea.vmem [#allocation2], %s248
        // Predicated region
        $region41: #{tpu_custom_call.1} parent=39 // pred_check
          %p250 = pneg %p45
        $region42: #{tpu_custom_call.1} parent=39 // pred_check_branch
          %252 = sbr.rel (%p250) target = $region44
        $region43: #{tpu_custom_call.1} parent=39 // pred_region
          %253 = dma.done %s246, 16384
        $region44: #{tpu_custom_call.1} parent=39 // pred_fallthru
          _
        // Predicated region
        $region45: #{tpu_custom_call.1} parent=39 // pred_check
          %p254 = pneg %p66
        $region46: #{tpu_custom_call.1} parent=39 // pred_check_branch
          %256 = sbr.rel (%p254) target = $region48
        $region47: #{tpu_custom_call.1} parent=39 // pred_region
          %257 = dma.done [#allocation6], 8192
        $region48: #{tpu_custom_call.1} parent=39 // pred_fallthru
          _
        // Predicated region
        $region49: #{tpu_custom_call.1} parent=39 // pred_check
          %p258 = pneg %p87
        $region50: #{tpu_custom_call.1} parent=39 // pred_check_branch
          %260 = sbr.rel (%p258) target = $region52
        $region51: #{tpu_custom_call.1} parent=39 // pred_region
          %261 = dma.done [#allocation6], 1024
        $region52: #{tpu_custom_call.1} parent=39 // pred_fallthru
          _
        // Predicated region
        $region53: #{tpu_custom_call.1} parent=39 // pred_check
          %p262 = pneg %p108
        $region54: #{tpu_custom_call.1} parent=39 // pred_check_branch
          %264 = sbr.rel (%p262) target = $region56
        $region55: #{tpu_custom_call.1} parent=39 // pred_region
          %265 = dma.done [#allocation9], 1024
        $region56: #{tpu_custom_call.1} parent=39 // pred_fallthru
          _
        %s266 = sand.u32 %s32, 1
        %s267 = scalar_lea.sflag [#allocation3], %s266
        %s268 = sand.u32 %s32, 1
        %s269 = smul.addr %s268, 1024
        %s270 = scalar_lea.vmem [#allocation2], %s269
        %p271 = pneg %p45
        %p272 = pneg %p42
        %p273 = pneg %p66
        %p274 = pneg %p63
        %p275 = pneg %p87
        %p276 = pneg %p84
        %p277 = pneg %p108
        %p278 = pneg %p105
        %p279 = pneg %p129
        %p280 = pneg %p126
        %p281 = pneg %p155
        %p282 = pneg %p152
        %s283 = sand.u32 %s142, 1
        %s284 = scalar_lea.sflag [#allocation4], %s283
        %s285 = sand.u32 %s142, 1
        %s286 = smul.addr %s285, 256
        %s287 = scalar_lea.vmem [#allocation10], %s286
        %s288 = smul.u32 32, %s24
        %s289 = smul.u32 32, %s24
        %v291 = vld [vmem:[%s4] sm:$0x1]
        %v292 = vld [vmem:[%s4 + $0x1] sm:$0x1]
        %v293 = vld [vmem:[%s4 + $0x2] sm:$0x1]
        %v294 = vld [vmem:[%s4 + $0x3] sm:$0x1]
        %v295 = vld [vmem:[%s4 + $0x4] sm:$0x1]
        %v296 = vld [vmem:[%s4 + $0x5] sm:$0x1]
        %v297 = vld [vmem:[%s4 + $0x6] sm:$0x1]
        %v298 = vld [vmem:[%s249] sm:$0xff]
        %v299 = vld [vmem:[%s249 + $0x8] sm:$0xff]
        %v300 = vld [vmem:[%s249 + $0x10] sm:$0xff]
        %v301 = vld [vmem:[%s249 + $0x18] sm:$0xff]
        %v302 = vld [vmem:[%s249 + $0x20] sm:$0xff]
        %v303 = vld [vmem:[%s249 + $0x28] sm:$0xff]
        %v304 = vld [vmem:[%s249 + $0x30] sm:$0xff]
        %v305 = vld [vmem:[%s249 + $0x38] sm:$0xff]
        %v306 = vld [vmem:[%s249 + $0x40] sm:$0xff]
        %v307 = vld [vmem:[%s249 + $0x48] sm:$0xff]
        %v308 = vld [vmem:[%s249 + $0x50] sm:$0xff]
        %v309 = vld [vmem:[%s249 + $0x58] sm:$0xff]
        %v310 = vld [vmem:[%s249 + $0x60] sm:$0xff]
        %v311 = vld [vmem:[%s249 + $0x68] sm:$0xff]
        %v312 = vld [vmem:[%s249 + $0x70] sm:$0xff]
        %v313 = vld [vmem:[%s249 + $0x78] sm:$0xff]
        %v314 = vld [vmem:[%s249 + $0x80] sm:$0xff]
        %v315 = vld [vmem:[%s249 + $0x88] sm:$0xff]
        %v316 = vld [vmem:[%s249 + $0x90] sm:$0xff]
        %v317 = vld [vmem:[%s249 + $0x98] sm:$0xff]
        %v318 = vld [vmem:[%s249 + $0xa0] sm:$0xff]
        %v319 = vld [vmem:[%s249 + $0xa8] sm:$0xff]
        %v320 = vld [vmem:[%s249 + $0xb0] sm:$0xff]
        %v321 = vld [vmem:[%s249 + $0xb8] sm:$0xff]
        %v322 = vld [vmem:[%s249 + $0xc0] sm:$0xff]
        %v323 = vld [vmem:[%s249 + $0xc8] sm:$0xff]
        %v324 = vld [vmem:[%s249 + $0xd0] sm:$0xff]
        %v325 = vld [vmem:[%s249 + $0xd8] sm:$0xff]
        %v326 = vld [vmem:[%s249 + $0xe0] sm:$0xff]
        %v327 = vld [vmem:[%s249 + $0xe8] sm:$0xff]
        %v328 = vld [vmem:[%s249 + $0xf0] sm:$0xff]
        %v329 = vld [vmem:[%s249 + $0xf8] sm:$0xff]
        %v330 = vld [vmem:[%s249 + $0x100] sm:$0xff]
        %v331 = vld [vmem:[%s249 + $0x108] sm:$0xff]
        %v332 = vld [vmem:[%s249 + $0x110] sm:$0xff]
        %v333 = vld [vmem:[%s249 + $0x118] sm:$0xff]
        %v334 = vld [vmem:[%s249 + $0x120] sm:$0xff]
        %v335 = vld [vmem:[%s249 + $0x128] sm:$0xff]
        %v336 = vld [vmem:[%s249 + $0x130] sm:$0xff]
        %v337 = vld [vmem:[%s249 + $0x138] sm:$0xff]
        %v338 = vld [vmem:[%s249 + $0x140] sm:$0xff]
        %v339 = vld [vmem:[%s249 + $0x148] sm:$0xff]
        %v340 = vld [vmem:[%s249 + $0x150] sm:$0xff]
        %v341 = vld [vmem:[%s249 + $0x158] sm:$0xff]
        %v342 = vld [vmem:[%s249 + $0x160] sm:$0xff]
        %v343 = vld [vmem:[%s249 + $0x168] sm:$0xff]
        %v344 = vld [vmem:[%s249 + $0x170] sm:$0xff]
        %v345 = vld [vmem:[%s249 + $0x178] sm:$0xff]
        %v346 = vld [vmem:[%s249 + $0x180] sm:$0xff]
        %v347 = vld [vmem:[%s249 + $0x188] sm:$0xff]
        %v348 = vld [vmem:[%s249 + $0x190] sm:$0xff]
        %v349 = vld [vmem:[%s249 + $0x198] sm:$0xff]
        %v350 = vld [vmem:[%s249 + $0x1a0] sm:$0xff]
        %v351 = vld [vmem:[%s249 + $0x1a8] sm:$0xff]
        %v352 = vld [vmem:[%s249 + $0x1b0] sm:$0xff]
        %v353 = vld [vmem:[%s249 + $0x1b8] sm:$0xff]
        %v354 = vld [vmem:[%s249 + $0x1c0] sm:$0xff]
        %v355 = vld [vmem:[%s249 + $0x1c8] sm:$0xff]
        %v356 = vld [vmem:[%s249 + $0x1d0] sm:$0xff]
        %v357 = vld [vmem:[%s249 + $0x1d8] sm:$0xff]
        %v358 = vld [vmem:[%s249 + $0x1e0] sm:$0xff]
        %v359 = vld [vmem:[%s249 + $0x1e8] sm:$0xff]
        %v360 = vld [vmem:[%s249 + $0x1f0] sm:$0xff]
        %v361 = vld [vmem:[%s249 + $0x1f8] sm:$0xff]
        %v362 = vld [vmem:[%s249 + $0x200] sm:$0xff]
        %v363 = vld [vmem:[%s249 + $0x208] sm:$0xff]
        %v364 = vld [vmem:[%s249 + $0x210] sm:$0xff]
        %v365 = vld [vmem:[%s249 + $0x218] sm:$0xff]
        %v366 = vld [vmem:[%s249 + $0x220] sm:$0xff]
        %v367 = vld [vmem:[%s249 + $0x228] sm:$0xff]
        %v368 = vld [vmem:[%s249 + $0x230] sm:$0xff]
        %v369 = vld [vmem:[%s249 + $0x238] sm:$0xff]
        %v370 = vld [vmem:[%s249 + $0x240] sm:$0xff]
        %v371 = vld [vmem:[%s249 + $0x248] sm:$0xff]
        %v372 = vld [vmem:[%s249 + $0x250] sm:$0xff]
        %v373 = vld [vmem:[%s249 + $0x258] sm:$0xff]
        %v374 = vld [vmem:[%s249 + $0x260] sm:$0xff]
        %v375 = vld [vmem:[%s249 + $0x268] sm:$0xff]
        %v376 = vld [vmem:[%s249 + $0x270] sm:$0xff]
        %v377 = vld [vmem:[%s249 + $0x278] sm:$0xff]
        %v378 = vld [vmem:[%s249 + $0x280] sm:$0xff]
        %v379 = vld [vmem:[%s249 + $0x288] sm:$0xff]
        %v380 = vld [vmem:[%s249 + $0x290] sm:$0xff]
        %v381 = vld [vmem:[%s249 + $0x298] sm:$0xff]
        %v382 = vld [vmem:[%s249 + $0x2a0] sm:$0xff]
        %v383 = vld [vmem:[%s249 + $0x2a8] sm:$0xff]
        %v384 = vld [vmem:[%s249 + $0x2b0] sm:$0xff]
        %v385 = vld [vmem:[%s249 + $0x2b8] sm:$0xff]
        %v386 = vld [vmem:[%s249 + $0x2c0] sm:$0xff]
        %v387 = vld [vmem:[%s249 + $0x2c8] sm:$0xff]
        %v388 = vld [vmem:[%s249 + $0x2d0] sm:$0xff]
        %v389 = vld [vmem:[%s249 + $0x2d8] sm:$0xff]
        %v390 = vld [vmem:[%s249 + $0x2e0] sm:$0xff]
        %v391 = vld [vmem:[%s249 + $0x2e8] sm:$0xff]
        %v392 = vld [vmem:[%s249 + $0x2f0] sm:$0xff]
        %v393 = vld [vmem:[%s249 + $0x2f8] sm:$0xff]
        %v394 = vld [vmem:[%s249 + $0x300] sm:$0xff]
        %v395 = vld [vmem:[%s249 + $0x308] sm:$0xff]
        %v396 = vld [vmem:[%s249 + $0x310] sm:$0xff]
        %v397 = vld [vmem:[%s249 + $0x318] sm:$0xff]
        %v398 = vld [vmem:[%s249 + $0x320] sm:$0xff]
        %v399 = vld [vmem:[%s249 + $0x328] sm:$0xff]
        %v400 = vld [vmem:[%s249 + $0x330] sm:$0xff]
        %v401 = vld [vmem:[%s249 + $0x338] sm:$0xff]
        %v402 = vld [vmem:[%s249 + $0x340] sm:$0xff]
        %v403 = vld [vmem:[%s249 + $0x348] sm:$0xff]
        %v404 = vld [vmem:[%s249 + $0x350] sm:$0xff]
        %v405 = vld [vmem:[%s249 + $0x358] sm:$0xff]
        %v406 = vld [vmem:[%s249 + $0x360] sm:$0xff]
        %v407 = vld [vmem:[%s249 + $0x368] sm:$0xff]
        %v408 = vld [vmem:[%s249 + $0x370] sm:$0xff]
        %v409 = vld [vmem:[%s249 + $0x378] sm:$0xff]
        %v410 = vld [vmem:[%s249 + $0x380] sm:$0xff]
        %v411 = vld [vmem:[%s249 + $0x388] sm:$0xff]
        %v412 = vld [vmem:[%s249 + $0x390] sm:$0xff]
        %v413 = vld [vmem:[%s249 + $0x398] sm:$0xff]
        %v414 = vld [vmem:[%s249 + $0x3a0] sm:$0xff]
        %v415 = vld [vmem:[%s249 + $0x3a8] sm:$0xff]
        %v416 = vld [vmem:[%s249 + $0x3b0] sm:$0xff]
        %v417 = vld [vmem:[%s249 + $0x3b8] sm:$0xff]
        %v418 = vld [vmem:[%s249 + $0x3c0] sm:$0xff]
        %v419 = vld [vmem:[%s249 + $0x3c8] sm:$0xff]
        %v420 = vld [vmem:[%s249 + $0x3d0] sm:$0xff]
        %v421 = vld [vmem:[%s249 + $0x3d8] sm:$0xff]
        %v422 = vld [vmem:[%s249 + $0x3e0] sm:$0xff]
        %v423 = vld [vmem:[%s249 + $0x3e8] sm:$0xff]
        %v424 = vld [vmem:[%s249 + $0x3f0] sm:$0xff]
        %v425 = vld [vmem:[%s249 + $0x3f8] sm:$0xff]
        %v426 = vld [vmem:[#allocation5] sm:$0xf]
        %v427 = vld [vmem:[#allocation5 + $0x4] sm:$0xf]
        %v428 = vld [vmem:[#allocation5 + $0x8] sm:$0xf]
        %v429 = vld [vmem:[#allocation5 + $0xc] sm:$0xf]
        %v430 = vld [vmem:[#allocation5 + $0x10] sm:$0xf]
        %v431 = vld [vmem:[#allocation5 + $0x14] sm:$0xf]
        %v432 = vld [vmem:[#allocation5 + $0x18] sm:$0xf]
        %v433 = vld [vmem:[#allocation5 + $0x1c] sm:$0xf]
        %v434 = vld [vmem:[#allocation5 + $0x20] sm:$0xf]
        %v435 = vld [vmem:[#allocation5 + $0x24] sm:$0xf]
        %v436 = vld [vmem:[#allocation5 + $0x28] sm:$0xf]
        %v437 = vld [vmem:[#allocation5 + $0x2c] sm:$0xf]
        %v438 = vld [vmem:[#allocation5 + $0x30] sm:$0xf]
        %v439 = vld [vmem:[#allocation5 + $0x34] sm:$0xf]
        %v440 = vld [vmem:[#allocation5 + $0x38] sm:$0xf]
        %v441 = vld [vmem:[#allocation5 + $0x3c] sm:$0xf]
        %v442 = vld [vmem:[#allocation5 + $0x40] sm:$0xf]
        %v443 = vld [vmem:[#allocation5 + $0x44] sm:$0xf]
        %v444 = vld [vmem:[#allocation5 + $0x48] sm:$0xf]
        %v445 = vld [vmem:[#allocation5 + $0x4c] sm:$0xf]
        %v446 = vld [vmem:[#allocation5 + $0x50] sm:$0xf]
        %v447 = vld [vmem:[#allocation5 + $0x54] sm:$0xf]
        %v448 = vld [vmem:[#allocation5 + $0x58] sm:$0xf]
        %v449 = vld [vmem:[#allocation5 + $0x5c] sm:$0xf]
        %v450 = vld [vmem:[#allocation5 + $0x60] sm:$0xf]
        %v451 = vld [vmem:[#allocation5 + $0x64] sm:$0xf]
        %v452 = vld [vmem:[#allocation5 + $0x68] sm:$0xf]
        %v453 = vld [vmem:[#allocation5 + $0x6c] sm:$0xf]
        %v454 = vld [vmem:[#allocation5 + $0x70] sm:$0xf]
        %v455 = vld [vmem:[#allocation5 + $0x74] sm:$0xf]
        %v456 = vld [vmem:[#allocation5 + $0x78] sm:$0xf]
        %v457 = vld [vmem:[#allocation5 + $0x7c] sm:$0xf]
        %v458 = vld [vmem:[#allocation5 + $0x80] sm:$0xf]
        %v459 = vld [vmem:[#allocation5 + $0x84] sm:$0xf]
        %v460 = vld [vmem:[#allocation5 + $0x88] sm:$0xf]
        %v461 = vld [vmem:[#allocation5 + $0x8c] sm:$0xf]
        %v462 = vld [vmem:[#allocation5 + $0x90] sm:$0xf]
        %v463 = vld [vmem:[#allocation5 + $0x94] sm:$0xf]
        %v464 = vld [vmem:[#allocation5 + $0x98] sm:$0xf]
        %v465 = vld [vmem:[#allocation5 + $0x9c] sm:$0xf]
        %v466 = vld [vmem:[#allocation5 + $0xa0] sm:$0xf]
        %v467 = vld [vmem:[#allocation5 + $0xa4] sm:$0xf]
        %v468 = vld [vmem:[#allocation5 + $0xa8] sm:$0xf]
        %v469 = vld [vmem:[#allocation5 + $0xac] sm:$0xf]
        %v470 = vld [vmem:[#allocation5 + $0xb0] sm:$0xf]
        %v471 = vld [vmem:[#allocation5 + $0xb4] sm:$0xf]
        %v472 = vld [vmem:[#allocation5 + $0xb8] sm:$0xf]
        %v473 = vld [vmem:[#allocation5 + $0xbc] sm:$0xf]
        %v474 = vld [vmem:[#allocation5 + $0xc0] sm:$0xf]
        %v475 = vld [vmem:[#allocation5 + $0xc4] sm:$0xf]
        %v476 = vld [vmem:[#allocation5 + $0xc8] sm:$0xf]
        %v477 = vld [vmem:[#allocation5 + $0xcc] sm:$0xf]
        %v478 = vld [vmem:[#allocation5 + $0xd0] sm:$0xf]
        %v479 = vld [vmem:[#allocation5 + $0xd4] sm:$0xf]
        %v480 = vld [vmem:[#allocation5 + $0xd8] sm:$0xf]
        %v481 = vld [vmem:[#allocation5 + $0xdc] sm:$0xf]
        %v482 = vld [vmem:[#allocation5 + $0xe0] sm:$0xf]
        %v483 = vld [vmem:[#allocation5 + $0xe4] sm:$0xf]
        %v484 = vld [vmem:[#allocation5 + $0xe8] sm:$0xf]
        %v485 = vld [vmem:[#allocation5 + $0xec] sm:$0xf]
        %v486 = vld [vmem:[#allocation5 + $0xf0] sm:$0xf]
        %v487 = vld [vmem:[#allocation5 + $0xf4] sm:$0xf]
        %v488 = vld [vmem:[#allocation5 + $0xf8] sm:$0xf]
        %v489 = vld [vmem:[#allocation5 + $0xfc] sm:$0xf]
        %v490 = vld [vmem:[#allocation5 + $0x100] sm:$0xf]
        %v491 = vld [vmem:[#allocation5 + $0x104] sm:$0xf]
        %v492 = vld [vmem:[#allocation5 + $0x108] sm:$0xf]
        %v493 = vld [vmem:[#allocation5 + $0x10c] sm:$0xf]
        %v494 = vld [vmem:[#allocation5 + $0x110] sm:$0xf]
        %v495 = vld [vmem:[#allocation5 + $0x114] sm:$0xf]
        %v496 = vld [vmem:[#allocation5 + $0x118] sm:$0xf]
        %v497 = vld [vmem:[#allocation5 + $0x11c] sm:$0xf]
        %v498 = vld [vmem:[#allocation5 + $0x120] sm:$0xf]
        %v499 = vld [vmem:[#allocation5 + $0x124] sm:$0xf]
        %v500 = vld [vmem:[#allocation5 + $0x128] sm:$0xf]
        %v501 = vld [vmem:[#allocation5 + $0x12c] sm:$0xf]
        %v502 = vld [vmem:[#allocation5 + $0x130] sm:$0xf]
        %v503 = vld [vmem:[#allocation5 + $0x134] sm:$0xf]
        %v504 = vld [vmem:[#allocation5 + $0x138] sm:$0xf]
        %v505 = vld [vmem:[#allocation5 + $0x13c] sm:$0xf]
        %v506 = vld [vmem:[#allocation5 + $0x140] sm:$0xf]
        %v507 = vld [vmem:[#allocation5 + $0x144] sm:$0xf]
        %v508 = vld [vmem:[#allocation5 + $0x148] sm:$0xf]
        %v509 = vld [vmem:[#allocation5 + $0x14c] sm:$0xf]
        %v510 = vld [vmem:[#allocation5 + $0x150] sm:$0xf]
        %v511 = vld [vmem:[#allocation5 + $0x154] sm:$0xf]
        %v512 = vld [vmem:[#allocation5 + $0x158] sm:$0xf]
        %v513 = vld [vmem:[#allocation5 + $0x15c] sm:$0xf]
        %v514 = vld [vmem:[#allocation5 + $0x160] sm:$0xf]
        %v515 = vld [vmem:[#allocation5 + $0x164] sm:$0xf]
        %v516 = vld [vmem:[#allocation5 + $0x168] sm:$0xf]
        %v517 = vld [vmem:[#allocation5 + $0x16c] sm:$0xf]
        %v518 = vld [vmem:[#allocation5 + $0x170] sm:$0xf]
        %v519 = vld [vmem:[#allocation5 + $0x174] sm:$0xf]
        %v520 = vld [vmem:[#allocation5 + $0x178] sm:$0xf]
        %v521 = vld [vmem:[#allocation5 + $0x17c] sm:$0xf]
        %v522 = vld [vmem:[#allocation5 + $0x180] sm:$0xf]
        %v523 = vld [vmem:[#allocation5 + $0x184] sm:$0xf]
        %v524 = vld [vmem:[#allocation5 + $0x188] sm:$0xf]
        %v525 = vld [vmem:[#allocation5 + $0x18c] sm:$0xf]
        %v526 = vld [vmem:[#allocation5 + $0x190] sm:$0xf]
        %v527 = vld [vmem:[#allocation5 + $0x194] sm:$0xf]
        %v528 = vld [vmem:[#allocation5 + $0x198] sm:$0xf]
        %v529 = vld [vmem:[#allocation5 + $0x19c] sm:$0xf]
        %v530 = vld [vmem:[#allocation5 + $0x1a0] sm:$0xf]
        %v531 = vld [vmem:[#allocation5 + $0x1a4] sm:$0xf]
        %v532 = vld [vmem:[#allocation5 + $0x1a8] sm:$0xf]
        %v533 = vld [vmem:[#allocation5 + $0x1ac] sm:$0xf]
        %v534 = vld [vmem:[#allocation5 + $0x1b0] sm:$0xf]
        %v535 = vld [vmem:[#allocation5 + $0x1b4] sm:$0xf]
        %v536 = vld [vmem:[#allocation5 + $0x1b8] sm:$0xf]
        %v537 = vld [vmem:[#allocation5 + $0x1bc] sm:$0xf]
        %v538 = vld [vmem:[#allocation5 + $0x1c0] sm:$0xf]
        %v539 = vld [vmem:[#allocation5 + $0x1c4] sm:$0xf]
        %v540 = vld [vmem:[#allocation5 + $0x1c8] sm:$0xf]
        %v541 = vld [vmem:[#allocation5 + $0x1cc] sm:$0xf]
        %v542 = vld [vmem:[#allocation5 + $0x1d0] sm:$0xf]
        %v543 = vld [vmem:[#allocation5 + $0x1d4] sm:$0xf]
        %v544 = vld [vmem:[#allocation5 + $0x1d8] sm:$0xf]
        %v545 = vld [vmem:[#allocation5 + $0x1dc] sm:$0xf]
        %v546 = vld [vmem:[#allocation5 + $0x1e0] sm:$0xf]
        %v547 = vld [vmem:[#allocation5 + $0x1e4] sm:$0xf]
        %v548 = vld [vmem:[#allocation5 + $0x1e8] sm:$0xf]
        %v549 = vld [vmem:[#allocation5 + $0x1ec] sm:$0xf]
        %v550 = vld [vmem:[#allocation5 + $0x1f0] sm:$0xf]
        %v551 = vld [vmem:[#allocation5 + $0x1f4] sm:$0xf]
        %v552 = vld [vmem:[#allocation5 + $0x1f8] sm:$0xf]
        %v553 = vld [vmem:[#allocation5 + $0x1fc] sm:$0xf]
        %v554 = vlaneseq
        %v555 = vshrl.u32 %v554, 7
        %v556 = vsub.s32 0, %v555
        %v557 = vrot.slane %v291, %v556
        %v686 = vunpack.c.l.b16 %v298
        %v687 = vunpack.c.h.b16 %v298
        %v688 = vunpack.c.l.b16 %v299
        %v689 = vunpack.c.h.b16 %v299
        %v690 = vunpack.c.l.b16 %v300
        %v691 = vunpack.c.h.b16 %v300
        %v692 = vunpack.c.l.b16 %v301
        %v693 = vunpack.c.h.b16 %v301
        %v694 = vunpack.c.l.b16 %v302
        %v695 = vunpack.c.h.b16 %v302
        %v696 = vunpack.c.l.b16 %v303
        %v697 = vunpack.c.h.b16 %v303
        %v698 = vunpack.c.l.b16 %v304
        %v699 = vunpack.c.h.b16 %v304
        %v700 = vunpack.c.l.b16 %v305
        %v701 = vunpack.c.h.b16 %v305
        %v702 = vunpack.c.l.b16 %v306
        %v703 = vunpack.c.h.b16 %v306
        %v704 = vunpack.c.l.b16 %v307
        %v705 = vunpack.c.h.b16 %v307
        %v706 = vunpack.c.l.b16 %v308
        %v707 = vunpack.c.h.b16 %v308
        %v708 = vunpack.c.l.b16 %v309
        %v709 = vunpack.c.h.b16 %v309
        %v710 = vunpack.c.l.b16 %v310
        %v711 = vunpack.c.h.b16 %v310
        %v712 = vunpack.c.l.b16 %v311
        %v713 = vunpack.c.h.b16 %v311
        %v714 = vunpack.c.l.b16 %v312
        %v715 = vunpack.c.h.b16 %v312
        %v716 = vunpack.c.l.b16 %v313
        %v717 = vunpack.c.h.b16 %v313
        %v718 = vunpack.c.l.b16 %v314
        %v719 = vunpack.c.h.b16 %v314
        %v720 = vunpack.c.l.b16 %v315
        %v721 = vunpack.c.h.b16 %v315
        %v722 = vunpack.c.l.b16 %v316
        %v723 = vunpack.c.h.b16 %v316
        %v724 = vunpack.c.l.b16 %v317
        %v725 = vunpack.c.h.b16 %v317
        %v726 = vunpack.c.l.b16 %v318
        %v727 = vunpack.c.h.b16 %v318
        %v728 = vunpack.c.l.b16 %v319
        %v729 = vunpack.c.h.b16 %v319
        %v730 = vunpack.c.l.b16 %v320
        %v731 = vunpack.c.h.b16 %v320
        %v732 = vunpack.c.l.b16 %v321
        %v733 = vunpack.c.h.b16 %v321
        %v734 = vunpack.c.l.b16 %v322
        %v735 = vunpack.c.h.b16 %v322
        %v736 = vunpack.c.l.b16 %v323
        %v737 = vunpack.c.h.b16 %v323
        %v738 = vunpack.c.l.b16 %v324
        %v739 = vunpack.c.h.b16 %v324
        %v740 = vunpack.c.l.b16 %v325
        %v741 = vunpack.c.h.b16 %v325
        %v742 = vunpack.c.l.b16 %v326
        %v743 = vunpack.c.h.b16 %v326
        %v744 = vunpack.c.l.b16 %v327
        %v745 = vunpack.c.h.b16 %v327
        %v746 = vunpack.c.l.b16 %v328
        %v747 = vunpack.c.h.b16 %v328
        %v748 = vunpack.c.l.b16 %v329
        %v749 = vunpack.c.h.b16 %v329
        %v750 = vunpack.c.l.b16 %v330
        %v751 = vunpack.c.h.b16 %v330
        %v752 = vunpack.c.l.b16 %v331
        %v753 = vunpack.c.h.b16 %v331
        %v754 = vunpack.c.l.b16 %v332
        %v755 = vunpack.c.h.b16 %v332
        %v756 = vunpack.c.l.b16 %v333
        %v757 = vunpack.c.h.b16 %v333
        %v758 = vunpack.c.l.b16 %v334
        %v759 = vunpack.c.h.b16 %v334
        %v760 = vunpack.c.l.b16 %v335
        %v761 = vunpack.c.h.b16 %v335
        %v762 = vunpack.c.l.b16 %v336
        %v763 = vunpack.c.h.b16 %v336
        %v764 = vunpack.c.l.b16 %v337
        %v765 = vunpack.c.h.b16 %v337
        %v766 = vunpack.c.l.b16 %v338
        %v767 = vunpack.c.h.b16 %v338
        %v768 = vunpack.c.l.b16 %v339
        %v769 = vunpack.c.h.b16 %v339
        %v770 = vunpack.c.l.b16 %v340
        %v771 = vunpack.c.h.b16 %v340
        %v772 = vunpack.c.l.b16 %v341
        %v773 = vunpack.c.h.b16 %v341
        %v774 = vunpack.c.l.b16 %v342
        %v775 = vunpack.c.h.b16 %v342
        %v776 = vunpack.c.l.b16 %v343
        %v777 = vunpack.c.h.b16 %v343
        %v778 = vunpack.c.l.b16 %v344
        %v779 = vunpack.c.h.b16 %v344
        %v780 = vunpack.c.l.b16 %v345
        %v781 = vunpack.c.h.b16 %v345
        %v782 = vunpack.c.l.b16 %v346
        %v783 = vunpack.c.h.b16 %v346
        %v784 = vunpack.c.l.b16 %v347
        %v785 = vunpack.c.h.b16 %v347
        %v786 = vunpack.c.l.b16 %v348
        %v787 = vunpack.c.h.b16 %v348
        %v788 = vunpack.c.l.b16 %v349
        %v789 = vunpack.c.h.b16 %v349
        %v790 = vunpack.c.l.b16 %v350
        %v791 = vunpack.c.h.b16 %v350
        %v792 = vunpack.c.l.b16 %v351
        %v793 = vunpack.c.h.b16 %v351
        %v794 = vunpack.c.l.b16 %v352
        %v795 = vunpack.c.h.b16 %v352
        %v796 = vunpack.c.l.b16 %v353
        %v797 = vunpack.c.h.b16 %v353
        %v798 = vunpack.c.l.b16 %v354
        %v799 = vunpack.c.h.b16 %v354
        %v800 = vunpack.c.l.b16 %v355
        %v801 = vunpack.c.h.b16 %v355
        %v802 = vunpack.c.l.b16 %v356
        %v803 = vunpack.c.h.b16 %v356
        %v804 = vunpack.c.l.b16 %v357
        %v805 = vunpack.c.h.b16 %v357
        %v806 = vunpack.c.l.b16 %v358
        %v807 = vunpack.c.h.b16 %v358
        %v808 = vunpack.c.l.b16 %v359
        %v809 = vunpack.c.h.b16 %v359
        %v810 = vunpack.c.l.b16 %v360
        %v811 = vunpack.c.h.b16 %v360
        %v812 = vunpack.c.l.b16 %v361
        %v813 = vunpack.c.h.b16 %v361
        %v814 = vunpack.c.l.b16 %v362
        %v815 = vunpack.c.h.b16 %v362
        %v816 = vunpack.c.l.b16 %v363
        %v817 = vunpack.c.h.b16 %v363
        %v818 = vunpack.c.l.b16 %v364
        %v819 = vunpack.c.h.b16 %v364
        %v820 = vunpack.c.l.b16 %v365
        %v821 = vunpack.c.h.b16 %v365
        %v822 = vunpack.c.l.b16 %v366
        %v823 = vunpack.c.h.b16 %v366
        %v824 = vunpack.c.l.b16 %v367
        %v825 = vunpack.c.h.b16 %v367
        %v826 = vunpack.c.l.b16 %v368
        %v827 = vunpack.c.h.b16 %v368
        %v828 = vunpack.c.l.b16 %v369
        %v829 = vunpack.c.h.b16 %v369
        %v830 = vunpack.c.l.b16 %v370
        %v831 = vunpack.c.h.b16 %v370
        %v832 = vunpack.c.l.b16 %v371
        %v833 = vunpack.c.h.b16 %v371
        %v834 = vunpack.c.l.b16 %v372
        %v835 = vunpack.c.h.b16 %v372
        %v836 = vunpack.c.l.b16 %v373
        %v837 = vunpack.c.h.b16 %v373
        %v838 = vunpack.c.l.b16 %v374
        %v839 = vunpack.c.h.b16 %v374
        %v840 = vunpack.c.l.b16 %v375
        %v841 = vunpack.c.h.b16 %v375
        %v842 = vunpack.c.l.b16 %v376
        %v843 = vunpack.c.h.b16 %v376
        %v844 = vunpack.c.l.b16 %v377
        %v845 = vunpack.c.h.b16 %v377
        %v846 = vunpack.c.l.b16 %v378
        %v847 = vunpack.c.h.b16 %v378
        %v848 = vunpack.c.l.b16 %v379
        %v849 = vunpack.c.h.b16 %v379
        %v850 = vunpack.c.l.b16 %v380
        %v851 = vunpack.c.h.b16 %v380
        %v852 = vunpack.c.l.b16 %v381
        %v853 = vunpack.c.h.b16 %v381
        %v854 = vunpack.c.l.b16 %v382
        %v855 = vunpack.c.h.b16 %v382
        %v856 = vunpack.c.l.b16 %v383
        %v857 = vunpack.c.h.b16 %v383
        %v858 = vunpack.c.l.b16 %v384
        %v859 = vunpack.c.h.b16 %v384
        %v860 = vunpack.c.l.b16 %v385
        %v861 = vunpack.c.h.b16 %v385
        %v862 = vunpack.c.l.b16 %v386
        %v863 = vunpack.c.h.b16 %v386
        %v864 = vunpack.c.l.b16 %v387
        %v865 = vunpack.c.h.b16 %v387
        %v866 = vunpack.c.l.b16 %v388
        %v867 = vunpack.c.h.b16 %v388
        %v868 = vunpack.c.l.b16 %v389
        %v869 = vunpack.c.h.b16 %v389
        %v870 = vunpack.c.l.b16 %v390
        %v871 = vunpack.c.h.b16 %v390
        %v872 = vunpack.c.l.b16 %v391
        %v873 = vunpack.c.h.b16 %v391
        %v874 = vunpack.c.l.b16 %v392
        %v875 = vunpack.c.h.b16 %v392
        %v876 = vunpack.c.l.b16 %v393
        %v877 = vunpack.c.h.b16 %v393
        %v878 = vunpack.c.l.b16 %v394
        %v879 = vunpack.c.h.b16 %v394
        %v880 = vunpack.c.l.b16 %v395
        %v881 = vunpack.c.h.b16 %v395
        %v882 = vunpack.c.l.b16 %v396
        %v883 = vunpack.c.h.b16 %v396
        %v884 = vunpack.c.l.b16 %v397
        %v885 = vunpack.c.h.b16 %v397
        %v886 = vunpack.c.l.b16 %v398
        %v887 = vunpack.c.h.b16 %v398
        %v888 = vunpack.c.l.b16 %v399
        %v889 = vunpack.c.h.b16 %v399
        %v890 = vunpack.c.l.b16 %v400
        %v891 = vunpack.c.h.b16 %v400
        %v892 = vunpack.c.l.b16 %v401
        %v893 = vunpack.c.h.b16 %v401
        %v894 = vunpack.c.l.b16 %v402
        %v895 = vunpack.c.h.b16 %v402
        %v896 = vunpack.c.l.b16 %v403
        %v897 = vunpack.c.h.b16 %v403
        %v898 = vunpack.c.l.b16 %v404
        %v899 = vunpack.c.h.b16 %v404
        %v900 = vunpack.c.l.b16 %v405
        %v901 = vunpack.c.h.b16 %v405
        %v902 = vunpack.c.l.b16 %v406
        %v903 = vunpack.c.h.b16 %v406
        %v904 = vunpack.c.l.b16 %v407
        %v905 = vunpack.c.h.b16 %v407
        %v906 = vunpack.c.l.b16 %v408
        %v907 = vunpack.c.h.b16 %v408
        %v908 = vunpack.c.l.b16 %v409
        %v909 = vunpack.c.h.b16 %v409
        %v910 = vunpack.c.l.b16 %v410
        %v911 = vunpack.c.h.b16 %v410
        %v912 = vunpack.c.l.b16 %v411
        %v913 = vunpack.c.h.b16 %v411
        %v914 = vunpack.c.l.b16 %v412
        %v915 = vunpack.c.h.b16 %v412
        %v916 = vunpack.c.l.b16 %v413
        %v917 = vunpack.c.h.b16 %v413
        %v918 = vunpack.c.l.b16 %v414
        %v919 = vunpack.c.h.b16 %v414
        %v920 = vunpack.c.l.b16 %v415
        %v921 = vunpack.c.h.b16 %v415
        %v922 = vunpack.c.l.b16 %v416
        %v923 = vunpack.c.h.b16 %v416
        %v924 = vunpack.c.l.b16 %v417
        %v925 = vunpack.c.h.b16 %v417
        %v926 = vunpack.c.l.b16 %v418
        %v927 = vunpack.c.h.b16 %v418
        %v928 = vunpack.c.l.b16 %v419
        %v929 = vunpack.c.h.b16 %v419
        %v930 = vunpack.c.l.b16 %v420
        %v931 = vunpack.c.h.b16 %v420
        %v932 = vunpack.c.l.b16 %v421
        %v933 = vunpack.c.h.b16 %v421
        %v934 = vunpack.c.l.b16 %v422
        %v935 = vunpack.c.h.b16 %v422
        %v936 = vunpack.c.l.b16 %v423
        %v937 = vunpack.c.h.b16 %v423
        %v938 = vunpack.c.l.b16 %v424
        %v939 = vunpack.c.h.b16 %v424
        %v940 = vunpack.c.l.b16 %v425
        %v941 = vunpack.c.h.b16 %v425
        %v942 = vpack.c.b16 %v694, %v686
        %v943 = vpack.c.b16 %v695, %v687
        %v944 = vpack.c.b16 %v696, %v688
        %v945 = vpack.c.b16 %v697, %v689
        %v946 = vpack.c.b16 %v698, %v690
        %v947 = vpack.c.b16 %v699, %v691
        %v948 = vpack.c.b16 %v700, %v692
        %v949 = vpack.c.b16 %v701, %v693
        %v950 = vpack.c.b16 %v710, %v702
        %v951 = vpack.c.b16 %v711, %v703
        %v952 = vpack.c.b16 %v712, %v704
        %v953 = vpack.c.b16 %v713, %v705
        %v954 = vpack.c.b16 %v714, %v706
        %v955 = vpack.c.b16 %v715, %v707
        %v956 = vpack.c.b16 %v716, %v708
        %v957 = vpack.c.b16 %v717, %v709
        %v958 = vpack.c.b16 %v726, %v718
        %v959 = vpack.c.b16 %v727, %v719
        %v960 = vpack.c.b16 %v728, %v720
        %v961 = vpack.c.b16 %v729, %v721
        %v962 = vpack.c.b16 %v730, %v722
        %v963 = vpack.c.b16 %v731, %v723
        %v964 = vpack.c.b16 %v732, %v724
        %v965 = vpack.c.b16 %v733, %v725
        %v966 = vpack.c.b16 %v742, %v734
        %v967 = vpack.c.b16 %v743, %v735
        %v968 = vpack.c.b16 %v744, %v736
        %v969 = vpack.c.b16 %v745, %v737
        %v970 = vpack.c.b16 %v746, %v738
        %v971 = vpack.c.b16 %v747, %v739
        %v972 = vpack.c.b16 %v748, %v740
        %v973 = vpack.c.b16 %v749, %v741
        %v974 = vpack.c.b16 %v758, %v750
        %v975 = vpack.c.b16 %v759, %v751
        %v976 = vpack.c.b16 %v760, %v752
        %v977 = vpack.c.b16 %v761, %v753
        %v978 = vpack.c.b16 %v762, %v754
        %v979 = vpack.c.b16 %v763, %v755
        %v980 = vpack.c.b16 %v764, %v756
        %v981 = vpack.c.b16 %v765, %v757
        %v982 = vpack.c.b16 %v774, %v766
        %v983 = vpack.c.b16 %v775, %v767
        %v984 = vpack.c.b16 %v776, %v768
        %v985 = vpack.c.b16 %v777, %v769
        %v986 = vpack.c.b16 %v778, %v770
        %v987 = vpack.c.b16 %v779, %v771
        %v988 = vpack.c.b16 %v780, %v772
        %v989 = vpack.c.b16 %v781, %v773
        %v990 = vpack.c.b16 %v790, %v782
        %v991 = vpack.c.b16 %v791, %v783
        %v992 = vpack.c.b16 %v792, %v784
        %v993 = vpack.c.b16 %v793, %v785
        %v994 = vpack.c.b16 %v794, %v786
        %v995 = vpack.c.b16 %v795, %v787
        %v996 = vpack.c.b16 %v796, %v788
        %v997 = vpack.c.b16 %v797, %v789
        %v998 = vpack.c.b16 %v806, %v798
        %v999 = vpack.c.b16 %v807, %v799
        %v1000 = vpack.c.b16 %v808, %v800
        %v1001 = vpack.c.b16 %v809, %v801
        %v1002 = vpack.c.b16 %v810, %v802
        %v1003 = vpack.c.b16 %v811, %v803
        %v1004 = vpack.c.b16 %v812, %v804
        %v1005 = vpack.c.b16 %v813, %v805
        %v1006 = vpack.c.b16 %v822, %v814
        %v1007 = vpack.c.b16 %v823, %v815
        %v1008 = vpack.c.b16 %v824, %v816
        %v1009 = vpack.c.b16 %v825, %v817
        %v1010 = vpack.c.b16 %v826, %v818
        %v1011 = vpack.c.b16 %v827, %v819
        %v1012 = vpack.c.b16 %v828, %v820
        %v1013 = vpack.c.b16 %v829, %v821
        %v1014 = vpack.c.b16 %v838, %v830
        %v1015 = vpack.c.b16 %v839, %v831
        %v1016 = vpack.c.b16 %v840, %v832
        %v1017 = vpack.c.b16 %v841, %v833
        %v1018 = vpack.c.b16 %v842, %v834
        %v1019 = vpack.c.b16 %v843, %v835
        %v1020 = vpack.c.b16 %v844, %v836
        %v1021 = vpack.c.b16 %v845, %v837
        %v1022 = vpack.c.b16 %v854, %v846
        %v1023 = vpack.c.b16 %v855, %v847
        %v1024 = vpack.c.b16 %v856, %v848
        %v1025 = vpack.c.b16 %v857, %v849
        %v1026 = vpack.c.b16 %v858, %v850
        %v1027 = vpack.c.b16 %v859, %v851
        %v1028 = vpack.c.b16 %v860, %v852
        %v1029 = vpack.c.b16 %v861, %v853
        %v1030 = vpack.c.b16 %v870, %v862
        %v1031 = vpack.c.b16 %v871, %v863
        %v1032 = vpack.c.b16 %v872, %v864
        %v1033 = vpack.c.b16 %v873, %v865
        %v1034 = vpack.c.b16 %v874, %v866
        %v1035 = vpack.c.b16 %v875, %v867
        %v1036 = vpack.c.b16 %v876, %v868
        %v1037 = vpack.c.b16 %v877, %v869
        %v1038 = vpack.c.b16 %v886, %v878
        %v1039 = vpack.c.b16 %v887, %v879
        %v1040 = vpack.c.b16 %v888, %v880
        %v1041 = vpack.c.b16 %v889, %v881
        %v1042 = vpack.c.b16 %v890, %v882
        %v1043 = vpack.c.b16 %v891, %v883
        %v1044 = vpack.c.b16 %v892, %v884
        %v1045 = vpack.c.b16 %v893, %v885
        %v1046 = vpack.c.b16 %v902, %v894
        %v1047 = vpack.c.b16 %v903, %v895
        %v1048 = vpack.c.b16 %v904, %v896
        %v1049 = vpack.c.b16 %v905, %v897
        %v1050 = vpack.c.b16 %v906, %v898
        %v1051 = vpack.c.b16 %v907, %v899
        %v1052 = vpack.c.b16 %v908, %v900
        %v1053 = vpack.c.b16 %v909, %v901
        %v1054 = vpack.c.b16 %v918, %v910
        %v1055 = vpack.c.b16 %v919, %v911
        %v1056 = vpack.c.b16 %v920, %v912
        %v1057 = vpack.c.b16 %v921, %v913
        %v1058 = vpack.c.b16 %v922, %v914
        %v1059 = vpack.c.b16 %v923, %v915
        %v1060 = vpack.c.b16 %v924, %v916
        %v1061 = vpack.c.b16 %v925, %v917
        %v1062 = vpack.c.b16 %v934, %v926
        %v1063 = vpack.c.b16 %v935, %v927
        %v1064 = vpack.c.b16 %v936, %v928
        %v1065 = vpack.c.b16 %v937, %v929
        %v1066 = vpack.c.b16 %v938, %v930
        %v1067 = vpack.c.b16 %v939, %v931
        %v1068 = vpack.c.b16 %v940, %v932
        %v1069 = vpack.c.b16 %v941, %v933
        %v1326 = vunpack.c.l.b16 %v426
        %v1327 = vunpack.c.l.b16 %v427
        %v1328 = vunpack.c.l.b16 %v428
        %v1329 = vunpack.c.l.b16 %v429
        %v1330 = vunpack.c.l.b16 %v430
        %v1331 = vunpack.c.l.b16 %v431
        %v1332 = vunpack.c.l.b16 %v432
        %v1333 = vunpack.c.l.b16 %v433
        %v1334 = vunpack.c.l.b16 %v434
        %v1335 = vunpack.c.l.b16 %v435
        %v1336 = vunpack.c.l.b16 %v436
        %v1337 = vunpack.c.l.b16 %v437
        %v1338 = vunpack.c.l.b16 %v438
        %v1339 = vunpack.c.l.b16 %v439
        %v1340 = vunpack.c.l.b16 %v440
        %v1341 = vunpack.c.l.b16 %v441
        %v1342 = vunpack.c.l.b16 %v442
        %v1343 = vunpack.c.l.b16 %v443
        %v1344 = vunpack.c.l.b16 %v444
        %v1345 = vunpack.c.l.b16 %v445
        %v1346 = vunpack.c.l.b16 %v446
        %v1347 = vunpack.c.l.b16 %v447
        %v1348 = vunpack.c.l.b16 %v448
        %v1349 = vunpack.c.l.b16 %v449
        %v1350 = vunpack.c.l.b16 %v450
        %v1351 = vunpack.c.l.b16 %v451
        %v1352 = vunpack.c.l.b16 %v452
        %v1353 = vunpack.c.l.b16 %v453
        %v1354 = vunpack.c.l.b16 %v454
        %v1355 = vunpack.c.l.b16 %v455
        %v1356 = vunpack.c.l.b16 %v456
        %v1357 = vunpack.c.l.b16 %v457
        %v1358 = vunpack.c.l.b16 %v458
        %v1359 = vunpack.c.l.b16 %v459
        %v1360 = vunpack.c.l.b16 %v460
        %v1361 = vunpack.c.l.b16 %v461
        %v1362 = vunpack.c.l.b16 %v462
        %v1363 = vunpack.c.l.b16 %v463
        %v1364 = vunpack.c.l.b16 %v464
        %v1365 = vunpack.c.l.b16 %v465
        %v1366 = vunpack.c.l.b16 %v466
        %v1367 = vunpack.c.l.b16 %v467
        %v1368 = vunpack.c.l.b16 %v468
        %v1369 = vunpack.c.l.b16 %v469
        %v1370 = vunpack.c.l.b16 %v470
        %v1371 = vunpack.c.l.b16 %v471
        %v1372 = vunpack.c.l.b16 %v472
        %v1373 = vunpack.c.l.b16 %v473
        %v1374 = vunpack.c.l.b16 %v474
        %v1375 = vunpack.c.l.b16 %v475
        %v1376 = vunpack.c.l.b16 %v476
        %v1377 = vunpack.c.l.b16 %v477
        %v1378 = vunpack.c.l.b16 %v478
        %v1379 = vunpack.c.l.b16 %v479
        %v1380 = vunpack.c.l.b16 %v480
        %v1381 = vunpack.c.l.b16 %v481
        %v1382 = vunpack.c.l.b16 %v482
        %v1383 = vunpack.c.l.b16 %v483
        %v1384 = vunpack.c.l.b16 %v484
        %v1385 = vunpack.c.l.b16 %v485
        %v1386 = vunpack.c.l.b16 %v486
        %v1387 = vunpack.c.l.b16 %v487
        %v1388 = vunpack.c.l.b16 %v488
        %v1389 = vunpack.c.l.b16 %v489
        %v1390 = vunpack.c.l.b16 %v490
        %v1391 = vunpack.c.l.b16 %v491
        %v1392 = vunpack.c.l.b16 %v492
        %v1393 = vunpack.c.l.b16 %v493
        %v1394 = vunpack.c.l.b16 %v494
        %v1395 = vunpack.c.l.b16 %v495
        %v1396 = vunpack.c.l.b16 %v496
        %v1397 = vunpack.c.l.b16 %v497
        %v1398 = vunpack.c.l.b16 %v498
        %v1399 = vunpack.c.l.b16 %v499
        %v1400 = vunpack.c.l.b16 %v500
        %v1401 = vunpack.c.l.b16 %v501
        %v1402 = vunpack.c.l.b16 %v502
        %v1403 = vunpack.c.l.b16 %v503
        %v1404 = vunpack.c.l.b16 %v504
        %v1405 = vunpack.c.l.b16 %v505
        %v1406 = vunpack.c.l.b16 %v506
        %v1407 = vunpack.c.l.b16 %v507
        %v1408 = vunpack.c.l.b16 %v508
        %v1409 = vunpack.c.l.b16 %v509
        %v1410 = vunpack.c.l.b16 %v510
        %v1411 = vunpack.c.l.b16 %v511
        %v1412 = vunpack.c.l.b16 %v512
        %v1413 = vunpack.c.l.b16 %v513
        %v1414 = vunpack.c.l.b16 %v514
        %v1415 = vunpack.c.l.b16 %v515
        %v1416 = vunpack.c.l.b16 %v516
        %v1417 = vunpack.c.l.b16 %v517
        %v1418 = vunpack.c.l.b16 %v518
        %v1419 = vunpack.c.l.b16 %v519
        %v1420 = vunpack.c.l.b16 %v520
        %v1421 = vunpack.c.l.b16 %v521
        %v1422 = vunpack.c.l.b16 %v522
        %v1423 = vunpack.c.l.b16 %v523
        %v1424 = vunpack.c.l.b16 %v524
        %v1425 = vunpack.c.l.b16 %v525
        %v1426 = vunpack.c.l.b16 %v526
        %v1427 = vunpack.c.l.b16 %v527
        %v1428 = vunpack.c.l.b16 %v528
        %v1429 = vunpack.c.l.b16 %v529
        %v1430 = vunpack.c.l.b16 %v530
        %v1431 = vunpack.c.l.b16 %v531
        %v1432 = vunpack.c.l.b16 %v532
        %v1433 = vunpack.c.l.b16 %v533
        %v1434 = vunpack.c.l.b16 %v534
        %v1435 = vunpack.c.l.b16 %v535
        %v1436 = vunpack.c.l.b16 %v536
        %v1437 = vunpack.c.l.b16 %v537
        %v1438 = vunpack.c.l.b16 %v538
        %v1439 = vunpack.c.l.b16 %v539
        %v1440 = vunpack.c.l.b16 %v540
        %v1441 = vunpack.c.l.b16 %v541
        %v1442 = vunpack.c.l.b16 %v542
        %v1443 = vunpack.c.l.b16 %v543
        %v1444 = vunpack.c.l.b16 %v544
        %v1445 = vunpack.c.l.b16 %v545
        %v1446 = vunpack.c.l.b16 %v546
        %v1447 = vunpack.c.l.b16 %v547
        %v1448 = vunpack.c.l.b16 %v548
        %v1449 = vunpack.c.l.b16 %v549
        %v1450 = vunpack.c.l.b16 %v550
        %v1451 = vunpack.c.l.b16 %v551
        %v1452 = vunpack.c.l.b16 %v552
        %v1453 = vunpack.c.l.b16 %v553
        %v1454 = vpack.c.b16 %v1327, %v1326
        %v1455 = vpack.c.b16 %v1329, %v1328
        %v1456 = vpack.c.b16 %v1331, %v1330
        %v1457 = vpack.c.b16 %v1333, %v1332
        %v1458 = vpack.c.b16 %v1335, %v1334
        %v1459 = vpack.c.b16 %v1337, %v1336
        %v1460 = vpack.c.b16 %v1339, %v1338
        %v1461 = vpack.c.b16 %v1341, %v1340
        %v1462 = vpack.c.b16 %v1343, %v1342
        %v1463 = vpack.c.b16 %v1345, %v1344
        %v1464 = vpack.c.b16 %v1347, %v1346
        %v1465 = vpack.c.b16 %v1349, %v1348
        %v1466 = vpack.c.b16 %v1351, %v1350
        %v1467 = vpack.c.b16 %v1353, %v1352
        %v1468 = vpack.c.b16 %v1355, %v1354
        %v1469 = vpack.c.b16 %v1357, %v1356
        %v1470 = vpack.c.b16 %v1359, %v1358
        %v1471 = vpack.c.b16 %v1361, %v1360
        %v1472 = vpack.c.b16 %v1363, %v1362
        %v1473 = vpack.c.b16 %v1365, %v1364
        %v1474 = vpack.c.b16 %v1367, %v1366
        %v1475 = vpack.c.b16 %v1369, %v1368
        %v1476 = vpack.c.b16 %v1371, %v1370
        %v1477 = vpack.c.b16 %v1373, %v1372
        %v1478 = vpack.c.b16 %v1375, %v1374
        %v1479 = vpack.c.b16 %v1377, %v1376
        %v1480 = vpack.c.b16 %v1379, %v1378
        %v1481 = vpack.c.b16 %v1381, %v1380
        %v1482 = vpack.c.b16 %v1383, %v1382
        %v1483 = vpack.c.b16 %v1385, %v1384
        %v1484 = vpack.c.b16 %v1387, %v1386
        %v1485 = vpack.c.b16 %v1389, %v1388
        %v1486 = vpack.c.b16 %v1391, %v1390
        %v1487 = vpack.c.b16 %v1393, %v1392
        %v1488 = vpack.c.b16 %v1395, %v1394
        %v1489 = vpack.c.b16 %v1397, %v1396
        %v1490 = vpack.c.b16 %v1399, %v1398
        %v1491 = vpack.c.b16 %v1401, %v1400
        %v1492 = vpack.c.b16 %v1403, %v1402
        %v1493 = vpack.c.b16 %v1405, %v1404
        %v1494 = vpack.c.b16 %v1407, %v1406
        %v1495 = vpack.c.b16 %v1409, %v1408
        %v1496 = vpack.c.b16 %v1411, %v1410
        %v1497 = vpack.c.b16 %v1413, %v1412
        %v1498 = vpack.c.b16 %v1415, %v1414
        %v1499 = vpack.c.b16 %v1417, %v1416
        %v1500 = vpack.c.b16 %v1419, %v1418
        %v1501 = vpack.c.b16 %v1421, %v1420
        %v1502 = vpack.c.b16 %v1423, %v1422
        %v1503 = vpack.c.b16 %v1425, %v1424
        %v1504 = vpack.c.b16 %v1427, %v1426
        %v1505 = vpack.c.b16 %v1429, %v1428
        %v1506 = vpack.c.b16 %v1431, %v1430
        %v1507 = vpack.c.b16 %v1433, %v1432
        %v1508 = vpack.c.b16 %v1435, %v1434
        %v1509 = vpack.c.b16 %v1437, %v1436
        %v1510 = vpack.c.b16 %v1439, %v1438
        %v1511 = vpack.c.b16 %v1441, %v1440
        %v1512 = vpack.c.b16 %v1443, %v1442
        %v1513 = vpack.c.b16 %v1445, %v1444
        %v1514 = vpack.c.b16 %v1447, %v1446
        %v1515 = vpack.c.b16 %v1449, %v1448
        %v1516 = vpack.c.b16 %v1451, %v1450
        %v1517 = vpack.c.b16 %v1453, %v1452
        %1582 = vmatprep.subr.bf16.mxu0 0
        %1583 = vmatpush1.bf16.msra.mxu0 %v1454
        %1584 = vmatprep.subr.bf16.mxu0 0
        %1585 = vmatpush1.bf16.msra.mxu0 %v1455
        %1586 = vmatprep.subr.bf16.mxu0 0
        %1587 = vmatpush1.bf16.msra.mxu0 %v1456
        %1588 = vmatprep.subr.bf16.mxu0 0
        %1589 = vmatpush1.bf16.msra.mxu0 %v1457
        %1590 = vmatprep.subr.bf16.mxu0 0
        %1591 = vmatpush1.bf16.msra.mxu0 %v1458
        %1592 = vmatprep.subr.bf16.mxu0 0
        %1593 = vmatpush1.bf16.msra.mxu0 %v1459
        %1594 = vmatprep.subr.bf16.mxu0 0
        %1595 = vmatpush1.bf16.msra.mxu0 %v1460
        %1596 = vmatprep.subr.bf16.mxu0 0
        %1597 = vmatpush1.bf16.msra.mxu0 %v1461
        %1598 = vmatprep.subr.bf16.mxu0 0
        %1599 = vmatpush1.bf16.msra.mxu0 %v1462
        %1600 = vmatprep.subr.bf16.mxu0 0
        %1601 = vmatpush1.bf16.msra.mxu0 %v1463
        %1602 = vmatprep.subr.bf16.mxu0 0
        %1603 = vmatpush1.bf16.msra.mxu0 %v1464
        %1604 = vmatprep.subr.bf16.mxu0 0
        %1605 = vmatpush1.bf16.msra.mxu0 %v1465
        %1606 = vmatprep.subr.bf16.mxu0 0
        %1607 = vmatpush1.bf16.msra.mxu0 %v1466
        %1608 = vmatprep.subr.bf16.mxu0 0
        %1609 = vmatpush1.bf16.msra.mxu0 %v1467
        %1610 = vmatprep.subr.bf16.mxu0 0
        %1611 = vmatpush1.bf16.msra.mxu0 %v1468
        %1612 = vmatprep.subr.bf16.mxu0 0
        %1613 = vmatpush1.bf16.msra.mxu0 %v1469
        %1614 = vmatprep.mubr.bf16.mxu0 %v943
        %1615 = vmatmul.mubr.bf16.gmra.mrb[0].mxu0 %v942
        %v1616 = vpop.f32.mrb[0].mxu0
        %v1617 = vadd.f32 %v557, %v1616
        %v1618 = vpop.f32.mrb[0].mxu0
        %v1619 = vpop.f32.mrb[0].mxu0
        %v1620 = vadd.f32 %v557, %v1619
        %v1621 = vpop.f32.mrb[0].mxu0
        %1622 = vmatprep.mubr.bf16.mxu0 %v951
        %1623 = vmatmul.mubr.bf16.gmra.mrb[0].mxu0 %v950
        %v1624 = vpop.f32.mrb[0].mxu0
        %v1625 = vadd.f32 %v557, %v1624
        %v1626 = vpop.f32.mrb[0].mxu0
        %v1627 = vpop.f32.mrb[0].mxu0
        %v1628 = vadd.f32 %v557, %v1627
        %v1629 = vpop.f32.mrb[0].mxu0
        %1630 = vmatprep.mubr.bf16.mxu0 %v959
        %1631 = vmatmul.mubr.bf16.gmra.mrb[0].mxu0 %v958
        %v1632 = vpop.f32.mrb[0].mxu0
        %v1633 = vadd.f32 %v557, %v1632
        %v1634 = vpop.f32.mrb[0].mxu0
        %v1635 = vpop.f32.mrb[0].mxu0
        %v1636 = vadd.f32 %v557, %v1635
        %v1637 = vpop.f32.mrb[0].mxu0
        %1638 = vmatprep.mubr.bf16.mxu0 %v967
        %1639 = vmatmul.mubr.bf16.gmra.mrb[0].mxu0 %v966
        %v1640 = vpop.f32.mrb[0].mxu0
        %v1641 = vadd.f32 %v557, %v1640
        %v1642 = vpop.f32.mrb[0].mxu0
        %v1643 = vpop.f32.mrb[0].mxu0
        %v1644 = vadd.f32 %v557, %v1643
        %v1645 = vpop.f32.mrb[0].mxu0
        %1646 = vmatprep.mubr.bf16.mxu0 %v975
        %1647 = vmatmul.mubr.bf16.gmra.mrb[0].mxu0 %v974
        %v1648 = vpop.f32.mrb[0].mxu0
        %v1649 = vadd.f32 %v557, %v1648
        %v1650 = vpop.f32.mrb[0].mxu0
        %v1651 = vpop.f32.mrb[0].mxu0
        %v1652 = vadd.f32 %v557, %v1651
        %v1653 = vpop.f32.mrb[0].mxu0
        %1654 = vmatprep.mubr.bf16.mxu0 %v983
        %1655 = vmatmul.mubr.bf16.gmra.mrb[0].mxu0 %v982
        %v1656 = vpop.f32.mrb[0].mxu0
        %v1657 = vadd.f32 %v557, %v1656
        %v1658 = vpop.f32.mrb[0].mxu0
        %v1659 = vpop.f32.mrb[0].mxu0
        %v1660 = vadd.f32 %v557, %v1659
        %v1661 = vpop.f32.mrb[0].mxu0
        %1662 = vmatprep.mubr.bf16.mxu0 %v991
        %1663 = vmatmul.mubr.bf16.gmra.mrb[0].mxu0 %v990
        %v1664 = vpop.f32.mrb[0].mxu0
        %v1665 = vadd.f32 %v557, %v1664
        %v1666 = vpop.f32.mrb[0].mxu0
        %v1667 = vpop.f32.mrb[0].mxu0
        %v1668 = vadd.f32 %v557, %v1667
        %v1669 = vpop.f32.mrb[0].mxu0
        %1670 = vmatprep.mubr.bf16.mxu0 %v999
        %1671 = vmatmul.mubr.bf16.gmra.mrb[0].mxu0 %v998
        %v1672 = vpop.f32.mrb[0].mxu0
        %v1673 = vadd.f32 %v557, %v1672
        %v1674 = vpop.f32.mrb[0].mxu0
        %v1675 = vpop.f32.mrb[0].mxu0
        %v1676 = vadd.f32 %v557, %v1675
        %v1677 = vpop.f32.mrb[0].mxu0
        %1678 = vmatprep.mubr.bf16.mxu0 %v1007
        %1679 = vmatmul.mubr.bf16.gmra.mrb[0].mxu0 %v1006
        %v1680 = vpop.f32.mrb[0].mxu0
        %v1681 = vadd.f32 %v557, %v1680
        %v1682 = vpop.f32.mrb[0].mxu0
        %v1683 = vpop.f32.mrb[0].mxu0
        %v1684 = vadd.f32 %v557, %v1683
        %v1685 = vpop.f32.mrb[0].mxu0
        %1686 = vmatprep.mubr.bf16.mxu0 %v1015
        %1687 = vmatmul.mubr.bf16.gmra.mrb[0].mxu0 %v1014
        %v1688 = vpop.f32.mrb[0].mxu0
        %v1689 = vadd.f32 %v557, %v1688
        %v1690 = vpop.f32.mrb[0].mxu0
        %v1691 = vpop.f32.mrb[0].mxu0
        %v1692 = vadd.f32 %v557, %v1691
        %v1693 = vpop.f32.mrb[0].mxu0
        %1694 = vmatprep.mubr.bf16.mxu0 %v1023
        %1695 = vmatmul.mubr.bf16.gmra.mrb[0].mxu0 %v1022
        %v1696 = vpop.f32.mrb[0].mxu0
        %v1697 = vadd.f32 %v557, %v1696
        %v1698 = vpop.f32.mrb[0].mxu0
        %v1699 = vpop.f32.mrb[0].mxu0
        %v1700 = vadd.f32 %v557, %v1699
        %v1701 = vpop.f32.mrb[0].mxu0
        %1702 = vmatprep.mubr.bf16.mxu0 %v1031
        %1703 = vmatmul.mubr.bf16.gmra.mrb[0].mxu0 %v1030
        %v1704 = vpop.f32.mrb[0].mxu0
        %v1705 = vadd.f32 %v557, %v1704
        %v1706 = vpop.f32.mrb[0].mxu0
        %v1707 = vpop.f32.mrb[0].mxu0
        %v1708 = vadd.f32 %v557, %v1707
        %v1709 = vpop.f32.mrb[0].mxu0
        %1710 = vmatprep.mubr.bf16.mxu0 %v1039
        %1711 = vmatmul.mubr.bf16.gmra.mrb[0].mxu0 %v1038
        %v1712 = vpop.f32.mrb[0].mxu0
        %v1713 = vadd.f32 %v557, %v1712
        %v1714 = vpop.f32.mrb[0].mxu0
        %v1715 = vpop.f32.mrb[0].mxu0
        %v1716 = vadd.f32 %v557, %v1715
        %v1717 = vpop.f32.mrb[0].mxu0
        %1718 = vmatprep.mubr.bf16.mxu0 %v1047
        %1719 = vmatmul.mubr.bf16.gmra.mrb[0].mxu0 %v1046
        %v1720 = vpop.f32.mrb[0].mxu0
        %v1721 = vadd.f32 %v557, %v1720
        %v1722 = vpop.f32.mrb[0].mxu0
        %v1723 = vpop.f32.mrb[0].mxu0
        %v1724 = vadd.f32 %v557, %v1723
        %v1725 = vpop.f32.mrb[0].mxu0
        %1726 = vmatprep.mubr.bf16.mxu0 %v1055
        %1727 = vmatmul.mubr.bf16.gmra.mrb[0].mxu0 %v1054
        %v1728 = vpop.f32.mrb[0].mxu0
        %v1729 = vadd.f32 %v557, %v1728
        %v1730 = vpop.f32.mrb[0].mxu0
        %v1731 = vpop.f32.mrb[0].mxu0
        %v1732 = vadd.f32 %v557, %v1731
        %v1733 = vpop.f32.mrb[0].mxu0
        %1734 = vmatprep.mubr.bf16.mxu0 %v1063
        %1735 = vmatmul.mubr.bf16.gmra.mrb[0].mxu0 %v1062
        %v1736 = vpop.f32.mrb[0].mxu0
        %v1737 = vadd.f32 %v557, %v1736
        %v1738 = vpop.f32.mrb[0].mxu0
        %v1739 = vpop.f32.mrb[0].mxu0
        %v1740 = vadd.f32 %v557, %v1739
        %v1741 = vpop.f32.mrb[0].mxu0
        %1742 = vdwg.mxu0
        %1743 = vmatprep.subr.bf16.mxu0 0
        %1744 = vmatpush1.bf16.msra.mxu0 %v1470
        %1745 = vmatprep.subr.bf16.mxu0 0
        %1746 = vmatpush1.bf16.msra.mxu0 %v1471
        %1747 = vmatprep.subr.bf16.mxu0 0
        %1748 = vmatpush1.bf16.msra.mxu0 %v1472
        %1749 = vmatprep.subr.bf16.mxu0 0
        %1750 = vmatpush1.bf16.msra.mxu0 %v1473
        %1751 = vmatprep.subr.bf16.mxu0 0
        %1752 = vmatpush1.bf16.msra.mxu0 %v1474
        %1753 = vmatprep.subr.bf16.mxu0 0
        %1754 = vmatpush1.bf16.msra.mxu0 %v1475
        %1755 = vmatprep.subr.bf16.mxu0 0
        %1756 = vmatpush1.bf16.msra.mxu0 %v1476
        %1757 = vmatprep.subr.bf16.mxu0 0
        %1758 = vmatpush1.bf16.msra.mxu0 %v1477
        %1759 = vmatprep.subr.bf16.mxu0 0
        %1760 = vmatpush1.bf16.msra.mxu0 %v1478
        %1761 = vmatprep.subr.bf16.mxu0 0
        %1762 = vmatpush1.bf16.msra.mxu0 %v1479
        %1763 = vmatprep.subr.bf16.mxu0 0
        %1764 = vmatpush1.bf16.msra.mxu0 %v1480
        %1765 = vmatprep.subr.bf16.mxu0 0
        %1766 = vmatpush1.bf16.msra.mxu0 %v1481
        %1767 = vmatprep.subr.bf16.mxu0 0
        %1768 = vmatpush1.bf16.msra.mxu0 %v1482
        %1769 = vmatprep.subr.bf16.mxu0 0
        %1770 = vmatpush1.bf16.msra.mxu0 %v1483
        %1771 = vmatprep.subr.bf16.mxu0 0
        %1772 = vmatpush1.bf16.msra.mxu0 %v1484
        %1773 = vmatprep.subr.bf16.mxu0 0
        %1774 = vmatpush1.bf16.msra.mxu0 %v1485
        %1775 = vmatprep.mubr.bf16.mxu0 %v945
        %1776 = vmatmul.mubr.bf16.gmra.mrb[0].mxu0 %v944
        %v1777 = vpop.f32.mrb[0].mxu0
        %v1778 = vadd.f32 %v1617, %v1777
        %v1779 = vpop.f32.mrb[0].mxu0
        %v1780 = vpop.f32.mrb[0].mxu0
        %v1781 = vadd.f32 %v1620, %v1780
        %v1782 = vpop.f32.mrb[0].mxu0
        %1783 = vmatprep.mubr.bf16.mxu0 %v953
        %1784 = vmatmul.mubr.bf16.gmra.mrb[0].mxu0 %v952
        %v1785 = vpop.f32.mrb[0].mxu0
        %v1786 = vadd.f32 %v1625, %v1785
        %v1787 = vpop.f32.mrb[0].mxu0
        %v1788 = vpop.f32.mrb[0].mxu0
        %v1789 = vadd.f32 %v1628, %v1788
        %v1790 = vpop.f32.mrb[0].mxu0
        %1791 = vmatprep.mubr.bf16.mxu0 %v961
        %1792 = vmatmul.mubr.bf16.gmra.mrb[0].mxu0 %v960
        %v1793 = vpop.f32.mrb[0].mxu0
        %v1794 = vadd.f32 %v1633, %v1793
        %v1795 = vpop.f32.mrb[0].mxu0
        %v1796 = vpop.f32.mrb[0].mxu0
        %v1797 = vadd.f32 %v1636, %v1796
        %v1798 = vpop.f32.mrb[0].mxu0
        %1799 = vmatprep.mubr.bf16.mxu0 %v969
        %1800 = vmatmul.mubr.bf16.gmra.mrb[0].mxu0 %v968
        %v1801 = vpop.f32.mrb[0].mxu0
        %v1802 = vadd.f32 %v1641, %v1801
        %v1803 = vpop.f32.mrb[0].mxu0
        %v1804 = vpop.f32.mrb[0].mxu0
        %v1805 = vadd.f32 %v1644, %v1804
        %v1806 = vpop.f32.mrb[0].mxu0
        %1807 = vmatprep.mubr.bf16.mxu0 %v977
        %1808 = vmatmul.mubr.bf16.gmra.mrb[0].mxu0 %v976
        %v1809 = vpop.f32.mrb[0].mxu0
        %v1810 = vadd.f32 %v1649, %v1809
        %v1811 = vpop.f32.mrb[0].mxu0
        %v1812 = vpop.f32.mrb[0].mxu0
        %v1813 = vadd.f32 %v1652, %v1812
        %v1814 = vpop.f32.mrb[0].mxu0
        %1815 = vmatprep.mubr.bf16.mxu0 %v985
        %1816 = vmatmul.mubr.bf16.gmra.mrb[0].mxu0 %v984
        %v1817 = vpop.f32.mrb[0].mxu0
        %v1818 = vadd.f32 %v1657, %v1817
        %v1819 = vpop.f32.mrb[0].mxu0
        %v1820 = vpop.f32.mrb[0].mxu0
        %v1821 = vadd.f32 %v1660, %v1820
        %v1822 = vpop.f32.mrb[0].mxu0
        %1823 = vmatprep.mubr.bf16.mxu0 %v993
        %1824 = vmatmul.mubr.bf16.gmra.mrb[0].mxu0 %v992
        %v1825 = vpop.f32.mrb[0].mxu0
        %v1826 = vadd.f32 %v1665, %v1825
        %v1827 = vpop.f32.mrb[0].mxu0
        %v1828 = vpop.f32.mrb[0].mxu0
        %v1829 = vadd.f32 %v1668, %v1828
        %v1830 = vpop.f32.mrb[0].mxu0
        %1831 = vmatprep.mubr.bf16.mxu0 %v1001
        %1832 = vmatmul.mubr.bf16.gmra.mrb[0].mxu0 %v1000
        %v1833 = vpop.f32.mrb[0].mxu0
        %v1834 = vadd.f32 %v1673, %v1833
        %v1835 = vpop.f32.mrb[0].mxu0
        %v1836 = vpop.f32.mrb[0].mxu0
        %v1837 = vadd.f32 %v1676, %v1836
        %v1838 = vpop.f32.mrb[0].mxu0
        %1839 = vmatprep.mubr.bf16.mxu0 %v1009
        %1840 = vmatmul.mubr.bf16.gmra.mrb[0].mxu0 %v1008
        %v1841 = vpop.f32.mrb[0].mxu0
        %v1842 = vadd.f32 %v1681, %v1841
        %v1843 = vpop.f32.mrb[0].mxu0
        %v1844 = vpop.f32.mrb[0].mxu0
        %v1845 = vadd.f32 %v1684, %v1844
        %v1846 = vpop.f32.mrb[0].mxu0
        %1847 = vmatprep.mubr.bf16.mxu0 %v1017
        %1848 = vmatmul.mubr.bf16.gmra.mrb[0].mxu0 %v1016
        %v1849 = vpop.f32.mrb[0].mxu0
        %v1850 = vadd.f32 %v1689, %v1849
        %v1851 = vpop.f32.mrb[0].mxu0
        %v1852 = vpop.f32.mrb[0].mxu0
        %v1853 = vadd.f32 %v1692, %v1852
        %v1854 = vpop.f32.mrb[0].mxu0
        %1855 = vmatprep.mubr.bf16.mxu0 %v1025
        %1856 = vmatmul.mubr.bf16.gmra.mrb[0].mxu0 %v1024
        %v1857 = vpop.f32.mrb[0].mxu0
        %v1858 = vadd.f32 %v1697, %v1857
        %v1859 = vpop.f32.mrb[0].mxu0
        %v1860 = vpop.f32.mrb[0].mxu0
        %v1861 = vadd.f32 %v1700, %v1860
        %v1862 = vpop.f32.mrb[0].mxu0
        %1863 = vmatprep.mubr.bf16.mxu0 %v1033
        %1864 = vmatmul.mubr.bf16.gmra.mrb[0].mxu0 %v1032
        %v1865 = vpop.f32.mrb[0].mxu0
        %v1866 = vadd.f32 %v1705, %v1865
        %v1867 = vpop.f32.mrb[0].mxu0
        %v1868 = vpop.f32.mrb[0].mxu0
        %v1869 = vadd.f32 %v1708, %v1868
        %v1870 = vpop.f32.mrb[0].mxu0
        %1871 = vmatprep.mubr.bf16.mxu0 %v1041
        %1872 = vmatmul.mubr.bf16.gmra.mrb[0].mxu0 %v1040
        %v1873 = vpop.f32.mrb[0].mxu0
        %v1874 = vadd.f32 %v1713, %v1873
        %v1875 = vpop.f32.mrb[0].mxu0
        %v1876 = vpop.f32.mrb[0].mxu0
        %v1877 = vadd.f32 %v1716, %v1876
        %v1878 = vpop.f32.mrb[0].mxu0
        %1879 = vmatprep.mubr.bf16.mxu0 %v1049
        %1880 = vmatmul.mubr.bf16.gmra.mrb[0].mxu0 %v1048
        %v1881 = vpop.f32.mrb[0].mxu0
        %v1882 = vadd.f32 %v1721, %v1881
        %v1883 = vpop.f32.mrb[0].mxu0
        %v1884 = vpop.f32.mrb[0].mxu0
        %v1885 = vadd.f32 %v1724, %v1884
        %v1886 = vpop.f32.mrb[0].mxu0
        %1887 = vmatprep.mubr.bf16.mxu0 %v1057
        %1888 = vmatmul.mubr.bf16.gmra.mrb[0].mxu0 %v1056
        %v1889 = vpop.f32.mrb[0].mxu0
        %v1890 = vadd.f32 %v1729, %v1889
        %v1891 = vpop.f32.mrb[0].mxu0
        %v1892 = vpop.f32.mrb[0].mxu0
        %v1893 = vadd.f32 %v1732, %v1892
        %v1894 = vpop.f32.mrb[0].mxu0
        %1895 = vmatprep.mubr.bf16.mxu0 %v1065
        %1896 = vmatmul.mubr.bf16.gmra.mrb[0].mxu0 %v1064
        %v1897 = vpop.f32.mrb[0].mxu0
        %v1898 = vadd.f32 %v1737, %v1897
        %v1899 = vpop.f32.mrb[0].mxu0
        %v1900 = vpop.f32.mrb[0].mxu0
        %v1901 = vadd.f32 %v1740, %v1900
        %v1902 = vpop.f32.mrb[0].mxu0
        %1903 = vdwg.mxu0
        %1904 = vmatprep.subr.bf16.mxu0 0
        %1905 = vmatpush1.bf16.msra.mxu0 %v1486
        %1906 = vmatprep.subr.bf16.mxu0 0
        %1907 = vmatpush1.bf16.msra.mxu0 %v1487
        %1908 = vmatprep.subr.bf16.mxu0 0
        %1909 = vmatpush1.bf16.msra.mxu0 %v1488
        %1910 = vmatprep.subr.bf16.mxu0 0
        %1911 = vmatpush1.bf16.msra.mxu0 %v1489
        %1912 = vmatprep.subr.bf16.mxu0 0
        %1913 = vmatpush1.bf16.msra.mxu0 %v1490
        %1914 = vmatprep.subr.bf16.mxu0 0
        %1915 = vmatpush1.bf16.msra.mxu0 %v1491
        %1916 = vmatprep.subr.bf16.mxu0 0
        %1917 = vmatpush1.bf16.msra.mxu0 %v1492
        %1918 = vmatprep.subr.bf16.mxu0 0
        %1919 = vmatpush1.bf16.msra.mxu0 %v1493
        %1920 = vmatprep.subr.bf16.mxu0 0
        %1921 = vmatpush1.bf16.msra.mxu0 %v1494
        %1922 = vmatprep.subr.bf16.mxu0 0
        %1923 = vmatpush1.bf16.msra.mxu0 %v1495
        %1924 = vmatprep.subr.bf16.mxu0 0
        %1925 = vmatpush1.bf16.msra.mxu0 %v1496
        %1926 = vmatprep.subr.bf16.mxu0 0
        %1927 = vmatpush1.bf16.msra.mxu0 %v1497
        %1928 = vmatprep.subr.bf16.mxu0 0
        %1929 = vmatpush1.bf16.msra.mxu0 %v1498
        %1930 = vmatprep.subr.bf16.mxu0 0
        %1931 = vmatpush1.bf16.msra.mxu0 %v1499
        %1932 = vmatprep.subr.bf16.mxu0 0
        %1933 = vmatpush1.bf16.msra.mxu0 %v1500
        %1934 = vmatprep.subr.bf16.mxu0 0
        %1935 = vmatpush1.bf16.msra.mxu0 %v1501
        %1936 = vmatprep.mubr.bf16.mxu0 %v947
        %1937 = vmatmul.mubr.bf16.gmra.mrb[0].mxu0 %v946
        %v1938 = vpop.f32.mrb[0].mxu0
        %v1939 = vadd.f32 %v1778, %v1938
        %v1940 = vpop.f32.mrb[0].mxu0
        %v1941 = vpop.f32.mrb[0].mxu0
        %v1942 = vadd.f32 %v1781, %v1941
        %v1943 = vpop.f32.mrb[0].mxu0
        %1944 = vmatprep.mubr.bf16.mxu0 %v955
        %1945 = vmatmul.mubr.bf16.gmra.mrb[0].mxu0 %v954
        %v1946 = vpop.f32.mrb[0].mxu0
        %v1947 = vadd.f32 %v1786, %v1946
        %v1948 = vpop.f32.mrb[0].mxu0
        %v1949 = vpop.f32.mrb[0].mxu0
        %v1950 = vadd.f32 %v1789, %v1949
        %v1951 = vpop.f32.mrb[0].mxu0
        %1952 = vmatprep.mubr.bf16.mxu0 %v963
        %1953 = vmatmul.mubr.bf16.gmra.mrb[0].mxu0 %v962
        %v1954 = vpop.f32.mrb[0].mxu0
        %v1955 = vadd.f32 %v1794, %v1954
        %v1956 = vpop.f32.mrb[0].mxu0
        %v1957 = vpop.f32.mrb[0].mxu0
        %v1958 = vadd.f32 %v1797, %v1957
        %v1959 = vpop.f32.mrb[0].mxu0
        %1960 = vmatprep.mubr.bf16.mxu0 %v971
        %1961 = vmatmul.mubr.bf16.gmra.mrb[0].mxu0 %v970
        %v1962 = vpop.f32.mrb[0].mxu0
        %v1963 = vadd.f32 %v1802, %v1962
        %v1964 = vpop.f32.mrb[0].mxu0
        %v1965 = vpop.f32.mrb[0].mxu0
        %v1966 = vadd.f32 %v1805, %v1965
        %v1967 = vpop.f32.mrb[0].mxu0
        %1968 = vmatprep.mubr.bf16.mxu0 %v979
        %1969 = vmatmul.mubr.bf16.gmra.mrb[0].mxu0 %v978
        %v1970 = vpop.f32.mrb[0].mxu0
        %v1971 = vadd.f32 %v1810, %v1970
        %v1972 = vpop.f32.mrb[0].mxu0
        %v1973 = vpop.f32.mrb[0].mxu0
        %v1974 = vadd.f32 %v1813, %v1973
        %v1975 = vpop.f32.mrb[0].mxu0
        %1976 = vmatprep.mubr.bf16.mxu0 %v987
        %1977 = vmatmul.mubr.bf16.gmra.mrb[0].mxu0 %v986
        %v1978 = vpop.f32.mrb[0].mxu0
        %v1979 = vadd.f32 %v1818, %v1978
        %v1980 = vpop.f32.mrb[0].mxu0
        %v1981 = vpop.f32.mrb[0].mxu0
        %v1982 = vadd.f32 %v1821, %v1981
        %v1983 = vpop.f32.mrb[0].mxu0
        %1984 = vmatprep.mubr.bf16.mxu0 %v995
        %1985 = vmatmul.mubr.bf16.gmra.mrb[0].mxu0 %v994
        %v1986 = vpop.f32.mrb[0].mxu0
        %v1987 = vadd.f32 %v1826, %v1986
        %v1988 = vpop.f32.mrb[0].mxu0
        %v1989 = vpop.f32.mrb[0].mxu0
        %v1990 = vadd.f32 %v1829, %v1989
        %v1991 = vpop.f32.mrb[0].mxu0
        %1992 = vmatprep.mubr.bf16.mxu0 %v1003
        %1993 = vmatmul.mubr.bf16.gmra.mrb[0].mxu0 %v1002
        %v1994 = vpop.f32.mrb[0].mxu0
        %v1995 = vadd.f32 %v1834, %v1994
        %v1996 = vpop.f32.mrb[0].mxu0
        %v1997 = vpop.f32.mrb[0].mxu0
        %v1998 = vadd.f32 %v1837, %v1997
        %v1999 = vpop.f32.mrb[0].mxu0
        %2000 = vmatprep.mubr.bf16.mxu0 %v1011
        %2001 = vmatmul.mubr.bf16.gmra.mrb[0].mxu0 %v1010
        %v2002 = vpop.f32.mrb[0].mxu0
        %v2003 = vadd.f32 %v1842, %v2002
        %v2004 = vpop.f32.mrb[0].mxu0
        %v2005 = vpop.f32.mrb[0].mxu0
        %v2006 = vadd.f32 %v1845, %v2005
        %v2007 = vpop.f32.mrb[0].mxu0
        %2008 = vmatprep.mubr.bf16.mxu0 %v1019
        %2009 = vmatmul.mubr.bf16.gmra.mrb[0].mxu0 %v1018
        %v2010 = vpop.f32.mrb[0].mxu0
        %v2011 = vadd.f32 %v1850, %v2010
        %v2012 = vpop.f32.mrb[0].mxu0
        %v2013 = vpop.f32.mrb[0].mxu0
        %v2014 = vadd.f32 %v1853, %v2013
        %v2015 = vpop.f32.mrb[0].mxu0
        %2016 = vmatprep.mubr.bf16.mxu0 %v1027
        %2017 = vmatmul.mubr.bf16.gmra.mrb[0].mxu0 %v1026
        %v2018 = vpop.f32.mrb[0].mxu0
        %v2019 = vadd.f32 %v1858, %v2018
        %v2020 = vpop.f32.mrb[0].mxu0
        %v2021 = vpop.f32.mrb[0].mxu0
        %v2022 = vadd.f32 %v1861, %v2021
        %v2023 = vpop.f32.mrb[0].mxu0
        %2024 = vmatprep.mubr.bf16.mxu0 %v1035
        %2025 = vmatmul.mubr.bf16.gmra.mrb[0].mxu0 %v1034
        %v2026 = vpop.f32.mrb[0].mxu0
        %v2027 = vadd.f32 %v1866, %v2026
        %v2028 = vpop.f32.mrb[0].mxu0
        %v2029 = vpop.f32.mrb[0].mxu0
        %v2030 = vadd.f32 %v1869, %v2029
        %v2031 = vpop.f32.mrb[0].mxu0
        %2032 = vmatprep.mubr.bf16.mxu0 %v1043
        %2033 = vmatmul.mubr.bf16.gmra.mrb[0].mxu0 %v1042
        %v2034 = vpop.f32.mrb[0].mxu0
        %v2035 = vadd.f32 %v1874, %v2034
        %v2036 = vpop.f32.mrb[0].mxu0
        %v2037 = vpop.f32.mrb[0].mxu0
        %v2038 = vadd.f32 %v1877, %v2037
        %v2039 = vpop.f32.mrb[0].mxu0
        %2040 = vmatprep.mubr.bf16.mxu0 %v1051
        %2041 = vmatmul.mubr.bf16.gmra.mrb[0].mxu0 %v1050
        %v2042 = vpop.f32.mrb[0].mxu0
        %v2043 = vadd.f32 %v1882, %v2042
        %v2044 = vpop.f32.mrb[0].mxu0
        %v2045 = vpop.f32.mrb[0].mxu0
        %v2046 = vadd.f32 %v1885, %v2045
        %v2047 = vpop.f32.mrb[0].mxu0
        %2048 = vmatprep.mubr.bf16.mxu0 %v1059
        %2049 = vmatmul.mubr.bf16.gmra.mrb[0].mxu0 %v1058
        %v2050 = vpop.f32.mrb[0].mxu0
        %v2051 = vadd.f32 %v1890, %v2050
        %v2052 = vpop.f32.mrb[0].mxu0
        %v2053 = vpop.f32.mrb[0].mxu0
        %v2054 = vadd.f32 %v1893, %v2053
        %v2055 = vpop.f32.mrb[0].mxu0
        %2056 = vmatprep.mubr.bf16.mxu0 %v1067
        %2057 = vmatmul.mubr.bf16.gmra.mrb[0].mxu0 %v1066
        %v2058 = vpop.f32.mrb[0].mxu0
        %v2059 = vadd.f32 %v1898, %v2058
        %v2060 = vpop.f32.mrb[0].mxu0
        %v2061 = vpop.f32.mrb[0].mxu0
        %v2062 = vadd.f32 %v1901, %v2061
        %v2063 = vpop.f32.mrb[0].mxu0
        %2064 = vdwg.mxu0
        %2065 = vmatprep.subr.bf16.mxu0 0
        %2066 = vmatpush1.bf16.msra.mxu0 %v1502
        %2067 = vmatprep.subr.bf16.mxu0 0
        %2068 = vmatpush1.bf16.msra.mxu0 %v1503
        %2069 = vmatprep.subr.bf16.mxu0 0
        %2070 = vmatpush1.bf16.msra.mxu0 %v1504
        %2071 = vmatprep.subr.bf16.mxu0 0
        %2072 = vmatpush1.bf16.msra.mxu0 %v1505
        %2073 = vmatprep.subr.bf16.mxu0 0
        %2074 = vmatpush1.bf16.msra.mxu0 %v1506
        %2075 = vmatprep.subr.bf16.mxu0 0
        %2076 = vmatpush1.bf16.msra.mxu0 %v1507
        %2077 = vmatprep.subr.bf16.mxu0 0
        %2078 = vmatpush1.bf16.msra.mxu0 %v1508
        %2079 = vmatprep.subr.bf16.mxu0 0
        %2080 = vmatpush1.bf16.msra.mxu0 %v1509
        %2081 = vmatprep.subr.bf16.mxu0 0
        %2082 = vmatpush1.bf16.msra.mxu0 %v1510
        %2083 = vmatprep.subr.bf16.mxu0 0
        %2084 = vmatpush1.bf16.msra.mxu0 %v1511
        %2085 = vmatprep.subr.bf16.mxu0 0
        %2086 = vmatpush1.bf16.msra.mxu0 %v1512
        %2087 = vmatprep.subr.bf16.mxu0 0
        %2088 = vmatpush1.bf16.msra.mxu0 %v1513
        %2089 = vmatprep.subr.bf16.mxu0 0
        %2090 = vmatpush1.bf16.msra.mxu0 %v1514
        %2091 = vmatprep.subr.bf16.mxu0 0
        %2092 = vmatpush1.bf16.msra.mxu0 %v1515
        %2093 = vmatprep.subr.bf16.mxu0 0
        %2094 = vmatpush1.bf16.msra.mxu0 %v1516
        %2095 = vmatprep.subr.bf16.mxu0 0
        %2096 = vmatpush1.bf16.msra.mxu0 %v1517
        %2097 = vmatprep.mubr.bf16.mxu0 %v949
        %2098 = vmatmul.mubr.bf16.gmra.mrb[0].mxu0 %v948
        %v2099 = vpop.f32.mrb[0].mxu0
        %v2100 = vadd.f32 %v1939, %v2099
        %v2101 = vpop.f32.mrb[0].mxu0
        %v2102 = vpop.f32.mrb[0].mxu0
        %v2103 = vadd.f32 %v1942, %v2102
        %v2104 = vpop.f32.mrb[0].mxu0
        %2105 = vmatprep.mubr.bf16.mxu0 %v957
        %2106 = vmatmul.mubr.bf16.gmra.mrb[0].mxu0 %v956
        %v2107 = vpop.f32.mrb[0].mxu0
        %v2108 = vadd.f32 %v1947, %v2107
        %v2109 = vpop.f32.mrb[0].mxu0
        %v2110 = vpop.f32.mrb[0].mxu0
        %v2111 = vadd.f32 %v1950, %v2110
        %v2112 = vpop.f32.mrb[0].mxu0
        %2113 = vmatprep.mubr.bf16.mxu0 %v965
        %2114 = vmatmul.mubr.bf16.gmra.mrb[0].mxu0 %v964
        %v2115 = vpop.f32.mrb[0].mxu0
        %v2116 = vadd.f32 %v1955, %v2115
        %v2117 = vpop.f32.mrb[0].mxu0
        %v2118 = vpop.f32.mrb[0].mxu0
        %v2119 = vadd.f32 %v1958, %v2118
        %v2120 = vpop.f32.mrb[0].mxu0
        %2121 = vmatprep.mubr.bf16.mxu0 %v973
        %2122 = vmatmul.mubr.bf16.gmra.mrb[0].mxu0 %v972
        %v2123 = vpop.f32.mrb[0].mxu0
        %v2124 = vadd.f32 %v1963, %v2123
        %v2125 = vpop.f32.mrb[0].mxu0
        %v2126 = vpop.f32.mrb[0].mxu0
        %v2127 = vadd.f32 %v1966, %v2126
        %v2128 = vpop.f32.mrb[0].mxu0
        %2129 = vmatprep.mubr.bf16.mxu0 %v981
        %2130 = vmatmul.mubr.bf16.gmra.mrb[0].mxu0 %v980
        %v2131 = vpop.f32.mrb[0].mxu0
        %v2132 = vadd.f32 %v1971, %v2131
        %v2133 = vpop.f32.mrb[0].mxu0
        %v2134 = vpop.f32.mrb[0].mxu0
        %v2135 = vadd.f32 %v1974, %v2134
        %v2136 = vpop.f32.mrb[0].mxu0
        %2137 = vmatprep.mubr.bf16.mxu0 %v989
        %2138 = vmatmul.mubr.bf16.gmra.mrb[0].mxu0 %v988
        %v2139 = vpop.f32.mrb[0].mxu0
        %v2140 = vadd.f32 %v1979, %v2139
        %v2141 = vpop.f32.mrb[0].mxu0
        %v2142 = vpop.f32.mrb[0].mxu0
        %v2143 = vadd.f32 %v1982, %v2142
        %v2144 = vpop.f32.mrb[0].mxu0
        %2145 = vmatprep.mubr.bf16.mxu0 %v997
        %2146 = vmatmul.mubr.bf16.gmra.mrb[0].mxu0 %v996
        %v2147 = vpop.f32.mrb[0].mxu0
        %v2148 = vadd.f32 %v1987, %v2147
        %v2149 = vpop.f32.mrb[0].mxu0
        %v2150 = vpop.f32.mrb[0].mxu0
        %v2151 = vadd.f32 %v1990, %v2150
        %v2152 = vpop.f32.mrb[0].mxu0
        %2153 = vmatprep.mubr.bf16.mxu0 %v1005
        %2154 = vmatmul.mubr.bf16.gmra.mrb[0].mxu0 %v1004
        %v2155 = vpop.f32.mrb[0].mxu0
        %v2156 = vadd.f32 %v1995, %v2155
        %v2157 = vpop.f32.mrb[0].mxu0
        %v2158 = vpop.f32.mrb[0].mxu0
        %v2159 = vadd.f32 %v1998, %v2158
        %v2160 = vpop.f32.mrb[0].mxu0
        %2161 = vmatprep.mubr.bf16.mxu0 %v1013
        %2162 = vmatmul.mubr.bf16.gmra.mrb[0].mxu0 %v1012
        %v2163 = vpop.f32.mrb[0].mxu0
        %v2164 = vadd.f32 %v2003, %v2163
        %v2165 = vpop.f32.mrb[0].mxu0
        %v2166 = vpop.f32.mrb[0].mxu0
        %v2167 = vadd.f32 %v2006, %v2166
        %v2168 = vpop.f32.mrb[0].mxu0
        %2169 = vmatprep.mubr.bf16.mxu0 %v1021
        %2170 = vmatmul.mubr.bf16.gmra.mrb[0].mxu0 %v1020
        %v2171 = vpop.f32.mrb[0].mxu0
        %v2172 = vadd.f32 %v2011, %v2171
        %v2173 = vpop.f32.mrb[0].mxu0
        %v2174 = vpop.f32.mrb[0].mxu0
        %v2175 = vadd.f32 %v2014, %v2174
        %v2176 = vpop.f32.mrb[0].mxu0
        %2177 = vmatprep.mubr.bf16.mxu0 %v1029
        %2178 = vmatmul.mubr.bf16.gmra.mrb[0].mxu0 %v1028
        %v2179 = vpop.f32.mrb[0].mxu0
        %v2180 = vadd.f32 %v2019, %v2179
        %v2181 = vpop.f32.mrb[0].mxu0
        %v2182 = vpop.f32.mrb[0].mxu0
        %v2183 = vadd.f32 %v2022, %v2182
        %v2184 = vpop.f32.mrb[0].mxu0
        %2185 = vmatprep.mubr.bf16.mxu0 %v1037
        %2186 = vmatmul.mubr.bf16.gmra.mrb[0].mxu0 %v1036
        %v2187 = vpop.f32.mrb[0].mxu0
        %v2188 = vadd.f32 %v2027, %v2187
        %v2189 = vpop.f32.mrb[0].mxu0
        %v2190 = vpop.f32.mrb[0].mxu0
        %v2191 = vadd.f32 %v2030, %v2190
        %v2192 = vpop.f32.mrb[0].mxu0
        %2193 = vmatprep.mubr.bf16.mxu0 %v1045
        %2194 = vmatmul.mubr.bf16.gmra.mrb[0].mxu0 %v1044
        %v2195 = vpop.f32.mrb[0].mxu0
        %v2196 = vadd.f32 %v2035, %v2195
        %v2197 = vpop.f32.mrb[0].mxu0
        %v2198 = vpop.f32.mrb[0].mxu0
        %v2199 = vadd.f32 %v2038, %v2198
        %v2200 = vpop.f32.mrb[0].mxu0
        %2201 = vmatprep.mubr.bf16.mxu0 %v1053
        %2202 = vmatmul.mubr.bf16.gmra.mrb[0].mxu0 %v1052
        %v2203 = vpop.f32.mrb[0].mxu0
        %v2204 = vadd.f32 %v2043, %v2203
        %v2205 = vpop.f32.mrb[0].mxu0
        %v2206 = vpop.f32.mrb[0].mxu0
        %v2207 = vadd.f32 %v2046, %v2206
        %v2208 = vpop.f32.mrb[0].mxu0
        %2209 = vmatprep.mubr.bf16.mxu0 %v1061
        %2210 = vmatmul.mubr.bf16.gmra.mrb[0].mxu0 %v1060
        %v2211 = vpop.f32.mrb[0].mxu0
        %v2212 = vadd.f32 %v2051, %v2211
        %v2213 = vpop.f32.mrb[0].mxu0
        %v2214 = vpop.f32.mrb[0].mxu0
        %v2215 = vadd.f32 %v2054, %v2214
        %v2216 = vpop.f32.mrb[0].mxu0
        %2217 = vmatprep.mubr.bf16.mxu0 %v1069
        %2218 = vmatmul.mubr.bf16.gmra.mrb[0].mxu0 %v1068
        %v2219 = vpop.f32.mrb[0].mxu0
        %v2220 = vadd.f32 %v2059, %v2219
        %v2221 = vpop.f32.mrb[0].mxu0
        %v2222 = vpop.f32.mrb[0].mxu0
        %v2223 = vadd.f32 %v2062, %v2222
        %v2224 = vpop.f32.mrb[0].mxu0
        %2225 = vdwg.mxu0
        %v2226 = vrot.slane %v2100, 4
        %v2227 = vadd.f32 %v2100, %v2226
        %v2228 = vrot.slane %v2227, 2
        %v2229 = vadd.f32 %v2227, %v2228
        %v2230 = vrot.slane %v2229, 1
        %v2231 = vadd.f32 %v2229, %v2230
        %v2232 = vrot.slane %v2103, 4
        %v2233 = vadd.f32 %v2103, %v2232
        %v2234 = vrot.slane %v2233, 2
        %v2235 = vadd.f32 %v2233, %v2234
        %v2236 = vrot.slane %v2235, 1
        %v2237 = vadd.f32 %v2235, %v2236
        %v2238 = vrot.slane %v2108, 4
        %v2239 = vadd.f32 %v2108, %v2238
        %v2240 = vrot.slane %v2239, 2
        %v2241 = vadd.f32 %v2239, %v2240
        %v2242 = vrot.slane %v2241, 1
        %v2243 = vadd.f32 %v2241, %v2242
        %v2244 = vrot.slane %v2111, 4
        %v2245 = vadd.f32 %v2111, %v2244
        %v2246 = vrot.slane %v2245, 2
        %v2247 = vadd.f32 %v2245, %v2246
        %v2248 = vrot.slane %v2247, 1
        %v2249 = vadd.f32 %v2247, %v2248
        %v2250 = vrot.slane %v2116, 4
        %v2251 = vadd.f32 %v2116, %v2250
        %v2252 = vrot.slane %v2251, 2
        %v2253 = vadd.f32 %v2251, %v2252
        %v2254 = vrot.slane %v2253, 1
        %v2255 = vadd.f32 %v2253, %v2254
        %v2256 = vrot.slane %v2119, 4
        %v2257 = vadd.f32 %v2119, %v2256
        %v2258 = vrot.slane %v2257, 2
        %v2259 = vadd.f32 %v2257, %v2258
        %v2260 = vrot.slane %v2259, 1
        %v2261 = vadd.f32 %v2259, %v2260
        %v2262 = vrot.slane %v2124, 4
        %v2263 = vadd.f32 %v2124, %v2262
        %v2264 = vrot.slane %v2263, 2
        %v2265 = vadd.f32 %v2263, %v2264
        %v2266 = vrot.slane %v2265, 1
        %v2267 = vadd.f32 %v2265, %v2266
        %v2268 = vrot.slane %v2127, 4
        %v2269 = vadd.f32 %v2127, %v2268
        %v2270 = vrot.slane %v2269, 2
        %v2271 = vadd.f32 %v2269, %v2270
        %v2272 = vrot.slane %v2271, 1
        %v2273 = vadd.f32 %v2271, %v2272
        %v2274 = vrot.slane %v2132, 4
        %v2275 = vadd.f32 %v2132, %v2274
        %v2276 = vrot.slane %v2275, 2
        %v2277 = vadd.f32 %v2275, %v2276
        %v2278 = vrot.slane %v2277, 1
        %v2279 = vadd.f32 %v2277, %v2278
        %v2280 = vrot.slane %v2135, 4
        %v2281 = vadd.f32 %v2135, %v2280
        %v2282 = vrot.slane %v2281, 2
        %v2283 = vadd.f32 %v2281, %v2282
        %v2284 = vrot.slane %v2283, 1
        %v2285 = vadd.f32 %v2283, %v2284
        %v2286 = vrot.slane %v2140, 4
        %v2287 = vadd.f32 %v2140, %v2286
        %v2288 = vrot.slane %v2287, 2
        %v2289 = vadd.f32 %v2287, %v2288
        %v2290 = vrot.slane %v2289, 1
        %v2291 = vadd.f32 %v2289, %v2290
        %v2292 = vrot.slane %v2143, 4
        %v2293 = vadd.f32 %v2143, %v2292
        %v2294 = vrot.slane %v2293, 2
        %v2295 = vadd.f32 %v2293, %v2294
        %v2296 = vrot.slane %v2295, 1
        %v2297 = vadd.f32 %v2295, %v2296
        %v2298 = vrot.slane %v2148, 4
        %v2299 = vadd.f32 %v2148, %v2298
        %v2300 = vrot.slane %v2299, 2
        %v2301 = vadd.f32 %v2299, %v2300
        %v2302 = vrot.slane %v2301, 1
        %v2303 = vadd.f32 %v2301, %v2302
        %v2304 = vrot.slane %v2151, 4
        %v2305 = vadd.f32 %v2151, %v2304
        %v2306 = vrot.slane %v2305, 2
        %v2307 = vadd.f32 %v2305, %v2306
        %v2308 = vrot.slane %v2307, 1
        %v2309 = vadd.f32 %v2307, %v2308
        %v2310 = vrot.slane %v2156, 4
        %v2311 = vadd.f32 %v2156, %v2310
        %v2312 = vrot.slane %v2311, 2
        %v2313 = vadd.f32 %v2311, %v2312
        %v2314 = vrot.slane %v2313, 1
        %v2315 = vadd.f32 %v2313, %v2314
        %v2316 = vrot.slane %v2159, 4
        %v2317 = vadd.f32 %v2159, %v2316
        %v2318 = vrot.slane %v2317, 2
        %v2319 = vadd.f32 %v2317, %v2318
        %v2320 = vrot.slane %v2319, 1
        %v2321 = vadd.f32 %v2319, %v2320
        %v2322 = vrot.slane %v2164, 4
        %v2323 = vadd.f32 %v2164, %v2322
        %v2324 = vrot.slane %v2323, 2
        %v2325 = vadd.f32 %v2323, %v2324
        %v2326 = vrot.slane %v2325, 1
        %v2327 = vadd.f32 %v2325, %v2326
        %v2328 = vrot.slane %v2167, 4
        %v2329 = vadd.f32 %v2167, %v2328
        %v2330 = vrot.slane %v2329, 2
        %v2331 = vadd.f32 %v2329, %v2330
        %v2332 = vrot.slane %v2331, 1
        %v2333 = vadd.f32 %v2331, %v2332
        %v2334 = vrot.slane %v2172, 4
        %v2335 = vadd.f32 %v2172, %v2334
        %v2336 = vrot.slane %v2335, 2
        %v2337 = vadd.f32 %v2335, %v2336
        %v2338 = vrot.slane %v2337, 1
        %v2339 = vadd.f32 %v2337, %v2338
        %v2340 = vrot.slane %v2175, 4
        %v2341 = vadd.f32 %v2175, %v2340
        %v2342 = vrot.slane %v2341, 2
        %v2343 = vadd.f32 %v2341, %v2342
        %v2344 = vrot.slane %v2343, 1
        %v2345 = vadd.f32 %v2343, %v2344
        %v2346 = vrot.slane %v2180, 4
        %v2347 = vadd.f32 %v2180, %v2346
        %v2348 = vrot.slane %v2347, 2
        %v2349 = vadd.f32 %v2347, %v2348
        %v2350 = vrot.slane %v2349, 1
        %v2351 = vadd.f32 %v2349, %v2350
        %v2352 = vrot.slane %v2183, 4
        %v2353 = vadd.f32 %v2183, %v2352
        %v2354 = vrot.slane %v2353, 2
        %v2355 = vadd.f32 %v2353, %v2354
        %v2356 = vrot.slane %v2355, 1
        %v2357 = vadd.f32 %v2355, %v2356
        %v2358 = vrot.slane %v2188, 4
        %v2359 = vadd.f32 %v2188, %v2358
        %v2360 = vrot.slane %v2359, 2
        %v2361 = vadd.f32 %v2359, %v2360
        %v2362 = vrot.slane %v2361, 1
        %v2363 = vadd.f32 %v2361, %v2362
        %v2364 = vrot.slane %v2191, 4
        %v2365 = vadd.f32 %v2191, %v2364
        %v2366 = vrot.slane %v2365, 2
        %v2367 = vadd.f32 %v2365, %v2366
        %v2368 = vrot.slane %v2367, 1
        %v2369 = vadd.f32 %v2367, %v2368
        %v2370 = vrot.slane %v2196, 4
        %v2371 = vadd.f32 %v2196, %v2370
        %v2372 = vrot.slane %v2371, 2
        %v2373 = vadd.f32 %v2371, %v2372
        %v2374 = vrot.slane %v2373, 1
        %v2375 = vadd.f32 %v2373, %v2374
        %v2376 = vrot.slane %v2199, 4
        %v2377 = vadd.f32 %v2199, %v2376
        %v2378 = vrot.slane %v2377, 2
        %v2379 = vadd.f32 %v2377, %v2378
        %v2380 = vrot.slane %v2379, 1
        %v2381 = vadd.f32 %v2379, %v2380
        %v2382 = vrot.slane %v2204, 4
        %v2383 = vadd.f32 %v2204, %v2382
        %v2384 = vrot.slane %v2383, 2
        %v2385 = vadd.f32 %v2383, %v2384
        %v2386 = vrot.slane %v2385, 1
        %v2387 = vadd.f32 %v2385, %v2386
        %v2388 = vrot.slane %v2207, 4
        %v2389 = vadd.f32 %v2207, %v2388
        %v2390 = vrot.slane %v2389, 2
        %v2391 = vadd.f32 %v2389, %v2390
        %v2392 = vrot.slane %v2391, 1
        %v2393 = vadd.f32 %v2391, %v2392
        %v2394 = vrot.slane %v2212, 4
        %v2395 = vadd.f32 %v2212, %v2394
        %v2396 = vrot.slane %v2395, 2
        %v2397 = vadd.f32 %v2395, %v2396
        %v2398 = vrot.slane %v2397, 1
        %v2399 = vadd.f32 %v2397, %v2398
        %v2400 = vrot.slane %v2215, 4
        %v2401 = vadd.f32 %v2215, %v2400
        %v2402 = vrot.slane %v2401, 2
        %v2403 = vadd.f32 %v2401, %v2402
        %v2404 = vrot.slane %v2403, 1
        %v2405 = vadd.f32 %v2403, %v2404
        %v2406 = vrot.slane %v2220, 4
        %v2407 = vadd.f32 %v2220, %v2406
        %v2408 = vrot.slane %v2407, 2
        %v2409 = vadd.f32 %v2407, %v2408
        %v2410 = vrot.slane %v2409, 1
        %v2411 = vadd.f32 %v2409, %v2410
        %v2412 = vrot.slane %v2223, 4
        %v2413 = vadd.f32 %v2223, %v2412
        %v2414 = vrot.slane %v2413, 2
        %v2415 = vadd.f32 %v2413, %v2414
        %v2416 = vrot.slane %v2415, 1
        %v2417 = vadd.f32 %v2415, %v2416
        %v2418 = vrcp.pop 8.0
        %v2419 = vmul.f32 %v2231, %v2418
        %v2420 = vmul.f32 %v2237, %v2418
        %v2421 = vmul.f32 %v2243, %v2418
        %v2422 = vmul.f32 %v2249, %v2418
        %v2423 = vmul.f32 %v2255, %v2418
        %v2424 = vmul.f32 %v2261, %v2418
        %v2425 = vmul.f32 %v2267, %v2418
        %v2426 = vmul.f32 %v2273, %v2418
        %v2427 = vmul.f32 %v2279, %v2418
        %v2428 = vmul.f32 %v2285, %v2418
        %v2429 = vmul.f32 %v2291, %v2418
        %v2430 = vmul.f32 %v2297, %v2418
        %v2431 = vmul.f32 %v2303, %v2418
        %v2432 = vmul.f32 %v2309, %v2418
        %v2433 = vmul.f32 %v2315, %v2418
        %v2434 = vmul.f32 %v2321, %v2418
        %v2435 = vmul.f32 %v2327, %v2418
        %v2436 = vmul.f32 %v2333, %v2418
        %v2437 = vmul.f32 %v2339, %v2418
        %v2438 = vmul.f32 %v2345, %v2418
        %v2439 = vmul.f32 %v2351, %v2418
        %v2440 = vmul.f32 %v2357, %v2418
        %v2441 = vmul.f32 %v2363, %v2418
        %v2442 = vmul.f32 %v2369, %v2418
        %v2443 = vmul.f32 %v2375, %v2418
        %v2444 = vmul.f32 %v2381, %v2418
        %v2445 = vmul.f32 %v2387, %v2418
        %v2446 = vmul.f32 %v2393, %v2418
        %v2447 = vmul.f32 %v2399, %v2418
        %v2448 = vmul.f32 %v2405, %v2418
        %v2449 = vmul.f32 %v2411, %v2418
        %v2450 = vmul.f32 %v2417, %v2418
        %v2451 = vsub.f32 %v2100, %v2419
        %v2452 = vsub.f32 %v2103, %v2420
        %v2453 = vsub.f32 %v2108, %v2421
        %v2454 = vsub.f32 %v2111, %v2422
        %v2455 = vsub.f32 %v2116, %v2423
        %v2456 = vsub.f32 %v2119, %v2424
        %v2457 = vsub.f32 %v2124, %v2425
        %v2458 = vsub.f32 %v2127, %v2426
        %v2459 = vsub.f32 %v2132, %v2427
        %v2460 = vsub.f32 %v2135, %v2428
        %v2461 = vsub.f32 %v2140, %v2429
        %v2462 = vsub.f32 %v2143, %v2430
        %v2463 = vsub.f32 %v2148, %v2431
        %v2464 = vsub.f32 %v2151, %v2432
        %v2465 = vsub.f32 %v2156, %v2433
        %v2466 = vsub.f32 %v2159, %v2434
        %v2467 = vsub.f32 %v2164, %v2435
        %v2468 = vsub.f32 %v2167, %v2436
        %v2469 = vsub.f32 %v2172, %v2437
        %v2470 = vsub.f32 %v2175, %v2438
        %v2471 = vsub.f32 %v2180, %v2439
        %v2472 = vsub.f32 %v2183, %v2440
        %v2473 = vsub.f32 %v2188, %v2441
        %v2474 = vsub.f32 %v2191, %v2442
        %v2475 = vsub.f32 %v2196, %v2443
        %v2476 = vsub.f32 %v2199, %v2444
        %v2477 = vsub.f32 %v2204, %v2445
        %v2478 = vsub.f32 %v2207, %v2446
        %v2479 = vsub.f32 %v2212, %v2447
        %v2480 = vsub.f32 %v2215, %v2448
        %v2481 = vsub.f32 %v2220, %v2449
        %v2482 = vsub.f32 %v2223, %v2450
        %v2483 = vmul.f32 %v2451, %v2451
        %v2484 = vmul.f32 %v2452, %v2452
        %v2485 = vmul.f32 %v2453, %v2453
        %v2486 = vmul.f32 %v2454, %v2454
        %v2487 = vmul.f32 %v2455, %v2455
        %v2488 = vmul.f32 %v2456, %v2456
        %v2489 = vmul.f32 %v2457, %v2457
        %v2490 = vmul.f32 %v2458, %v2458
        %v2491 = vmul.f32 %v2459, %v2459
        %v2492 = vmul.f32 %v2460, %v2460
        %v2493 = vmul.f32 %v2461, %v2461
        %v2494 = vmul.f32 %v2462, %v2462
        %v2495 = vmul.f32 %v2463, %v2463
        %v2496 = vmul.f32 %v2464, %v2464
        %v2497 = vmul.f32 %v2465, %v2465
        %v2498 = vmul.f32 %v2466, %v2466
        %v2499 = vmul.f32 %v2467, %v2467
        %v2500 = vmul.f32 %v2468, %v2468
        %v2501 = vmul.f32 %v2469, %v2469
        %v2502 = vmul.f32 %v2470, %v2470
        %v2503 = vmul.f32 %v2471, %v2471
        %v2504 = vmul.f32 %v2472, %v2472
        %v2505 = vmul.f32 %v2473, %v2473
        %v2506 = vmul.f32 %v2474, %v2474
        %v2507 = vmul.f32 %v2475, %v2475
        %v2508 = vmul.f32 %v2476, %v2476
        %v2509 = vmul.f32 %v2477, %v2477
        %v2510 = vmul.f32 %v2478, %v2478
        %v2511 = vmul.f32 %v2479, %v2479
        %v2512 = vmul.f32 %v2480, %v2480
        %v2513 = vmul.f32 %v2481, %v2481
        %v2514 = vmul.f32 %v2482, %v2482
        %v2515 = vrot.slane %v2483, 4
        %v2516 = vadd.f32 %v2483, %v2515
        %v2517 = vrot.slane %v2516, 2
        %v2518 = vadd.f32 %v2516, %v2517
        %v2519 = vrot.slane %v2518, 1
        %v2520 = vadd.f32 %v2518, %v2519
        %v2521 = vrot.slane %v2484, 4
        %v2522 = vadd.f32 %v2484, %v2521
        %v2523 = vrot.slane %v2522, 2
        %v2524 = vadd.f32 %v2522, %v2523
        %v2525 = vrot.slane %v2524, 1
        %v2526 = vadd.f32 %v2524, %v2525
        %v2527 = vrot.slane %v2485, 4
        %v2528 = vadd.f32 %v2485, %v2527
        %v2529 = vrot.slane %v2528, 2
        %v2530 = vadd.f32 %v2528, %v2529
        %v2531 = vrot.slane %v2530, 1
        %v2532 = vadd.f32 %v2530, %v2531
        %v2533 = vrot.slane %v2486, 4
        %v2534 = vadd.f32 %v2486, %v2533
        %v2535 = vrot.slane %v2534, 2
        %v2536 = vadd.f32 %v2534, %v2535
        %v2537 = vrot.slane %v2536, 1
        %v2538 = vadd.f32 %v2536, %v2537
        %v2539 = vrot.slane %v2487, 4
        %v2540 = vadd.f32 %v2487, %v2539
        %v2541 = vrot.slane %v2540, 2
        %v2542 = vadd.f32 %v2540, %v2541
        %v2543 = vrot.slane %v2542, 1
        %v2544 = vadd.f32 %v2542, %v2543
        %v2545 = vrot.slane %v2488, 4
        %v2546 = vadd.f32 %v2488, %v2545
        %v2547 = vrot.slane %v2546, 2
        %v2548 = vadd.f32 %v2546, %v2547
        %v2549 = vrot.slane %v2548, 1
        %v2550 = vadd.f32 %v2548, %v2549
        %v2551 = vrot.slane %v2489, 4
        %v2552 = vadd.f32 %v2489, %v2551
        %v2553 = vrot.slane %v2552, 2
        %v2554 = vadd.f32 %v2552, %v2553
        %v2555 = vrot.slane %v2554, 1
        %v2556 = vadd.f32 %v2554, %v2555
        %v2557 = vrot.slane %v2490, 4
        %v2558 = vadd.f32 %v2490, %v2557
        %v2559 = vrot.slane %v2558, 2
        %v2560 = vadd.f32 %v2558, %v2559
        %v2561 = vrot.slane %v2560, 1
        %v2562 = vadd.f32 %v2560, %v2561
        %v2563 = vrot.slane %v2491, 4
        %v2564 = vadd.f32 %v2491, %v2563
        %v2565 = vrot.slane %v2564, 2
        %v2566 = vadd.f32 %v2564, %v2565
        %v2567 = vrot.slane %v2566, 1
        %v2568 = vadd.f32 %v2566, %v2567
        %v2569 = vrot.slane %v2492, 4
        %v2570 = vadd.f32 %v2492, %v2569
        %v2571 = vrot.slane %v2570, 2
        %v2572 = vadd.f32 %v2570, %v2571
        %v2573 = vrot.slane %v2572, 1
        %v2574 = vadd.f32 %v2572, %v2573
        %v2575 = vrot.slane %v2493, 4
        %v2576 = vadd.f32 %v2493, %v2575
        %v2577 = vrot.slane %v2576, 2
        %v2578 = vadd.f32 %v2576, %v2577
        %v2579 = vrot.slane %v2578, 1
        %v2580 = vadd.f32 %v2578, %v2579
        %v2581 = vrot.slane %v2494, 4
        %v2582 = vadd.f32 %v2494, %v2581
        %v2583 = vrot.slane %v2582, 2
        %v2584 = vadd.f32 %v2582, %v2583
        %v2585 = vrot.slane %v2584, 1
        %v2586 = vadd.f32 %v2584, %v2585
        %v2587 = vrot.slane %v2495, 4
        %v2588 = vadd.f32 %v2495, %v2587
        %v2589 = vrot.slane %v2588, 2
        %v2590 = vadd.f32 %v2588, %v2589
        %v2591 = vrot.slane %v2590, 1
        %v2592 = vadd.f32 %v2590, %v2591
        %v2593 = vrot.slane %v2496, 4
        %v2594 = vadd.f32 %v2496, %v2593
        %v2595 = vrot.slane %v2594, 2
        %v2596 = vadd.f32 %v2594, %v2595
        %v2597 = vrot.slane %v2596, 1
        %v2598 = vadd.f32 %v2596, %v2597
        %v2599 = vrot.slane %v2497, 4
        %v2600 = vadd.f32 %v2497, %v2599
        %v2601 = vrot.slane %v2600, 2
        %v2602 = vadd.f32 %v2600, %v2601
        %v2603 = vrot.slane %v2602, 1
        %v2604 = vadd.f32 %v2602, %v2603
        %v2605 = vrot.slane %v2498, 4
        %v2606 = vadd.f32 %v2498, %v2605
        %v2607 = vrot.slane %v2606, 2
        %v2608 = vadd.f32 %v2606, %v2607
        %v2609 = vrot.slane %v2608, 1
        %v2610 = vadd.f32 %v2608, %v2609
        %v2611 = vrot.slane %v2499, 4
        %v2612 = vadd.f32 %v2499, %v2611
        %v2613 = vrot.slane %v2612, 2
        %v2614 = vadd.f32 %v2612, %v2613
        %v2615 = vrot.slane %v2614, 1
        %v2616 = vadd.f32 %v2614, %v2615
        %v2617 = vrot.slane %v2500, 4
        %v2618 = vadd.f32 %v2500, %v2617
        %v2619 = vrot.slane %v2618, 2
        %v2620 = vadd.f32 %v2618, %v2619
        %v2621 = vrot.slane %v2620, 1
        %v2622 = vadd.f32 %v2620, %v2621
        %v2623 = vrot.slane %v2501, 4
        %v2624 = vadd.f32 %v2501, %v2623
        %v2625 = vrot.slane %v2624, 2
        %v2626 = vadd.f32 %v2624, %v2625
        %v2627 = vrot.slane %v2626, 1
        %v2628 = vadd.f32 %v2626, %v2627
        %v2629 = vrot.slane %v2502, 4
        %v2630 = vadd.f32 %v2502, %v2629
        %v2631 = vrot.slane %v2630, 2
        %v2632 = vadd.f32 %v2630, %v2631
        %v2633 = vrot.slane %v2632, 1
        %v2634 = vadd.f32 %v2632, %v2633
        %v2635 = vrot.slane %v2503, 4
        %v2636 = vadd.f32 %v2503, %v2635
        %v2637 = vrot.slane %v2636, 2
        %v2638 = vadd.f32 %v2636, %v2637
        %v2639 = vrot.slane %v2638, 1
        %v2640 = vadd.f32 %v2638, %v2639
        %v2641 = vrot.slane %v2504, 4
        %v2642 = vadd.f32 %v2504, %v2641
        %v2643 = vrot.slane %v2642, 2
        %v2644 = vadd.f32 %v2642, %v2643
        %v2645 = vrot.slane %v2644, 1
        %v2646 = vadd.f32 %v2644, %v2645
        %v2647 = vrot.slane %v2505, 4
        %v2648 = vadd.f32 %v2505, %v2647
        %v2649 = vrot.slane %v2648, 2
        %v2650 = vadd.f32 %v2648, %v2649
        %v2651 = vrot.slane %v2650, 1
        %v2652 = vadd.f32 %v2650, %v2651
        %v2653 = vrot.slane %v2506, 4
        %v2654 = vadd.f32 %v2506, %v2653
        %v2655 = vrot.slane %v2654, 2
        %v2656 = vadd.f32 %v2654, %v2655
        %v2657 = vrot.slane %v2656, 1
        %v2658 = vadd.f32 %v2656, %v2657
        %v2659 = vrot.slane %v2507, 4
        %v2660 = vadd.f32 %v2507, %v2659
        %v2661 = vrot.slane %v2660, 2
        %v2662 = vadd.f32 %v2660, %v2661
        %v2663 = vrot.slane %v2662, 1
        %v2664 = vadd.f32 %v2662, %v2663
        %v2665 = vrot.slane %v2508, 4
        %v2666 = vadd.f32 %v2508, %v2665
        %v2667 = vrot.slane %v2666, 2
        %v2668 = vadd.f32 %v2666, %v2667
        %v2669 = vrot.slane %v2668, 1
        %v2670 = vadd.f32 %v2668, %v2669
        %v2671 = vrot.slane %v2509, 4
        %v2672 = vadd.f32 %v2509, %v2671
        %v2673 = vrot.slane %v2672, 2
        %v2674 = vadd.f32 %v2672, %v2673
        %v2675 = vrot.slane %v2674, 1
        %v2676 = vadd.f32 %v2674, %v2675
        %v2677 = vrot.slane %v2510, 4
        %v2678 = vadd.f32 %v2510, %v2677
        %v2679 = vrot.slane %v2678, 2
        %v2680 = vadd.f32 %v2678, %v2679
        %v2681 = vrot.slane %v2680, 1
        %v2682 = vadd.f32 %v2680, %v2681
        %v2683 = vrot.slane %v2511, 4
        %v2684 = vadd.f32 %v2511, %v2683
        %v2685 = vrot.slane %v2684, 2
        %v2686 = vadd.f32 %v2684, %v2685
        %v2687 = vrot.slane %v2686, 1
        %v2688 = vadd.f32 %v2686, %v2687
        %v2689 = vrot.slane %v2512, 4
        %v2690 = vadd.f32 %v2512, %v2689
        %v2691 = vrot.slane %v2690, 2
        %v2692 = vadd.f32 %v2690, %v2691
        %v2693 = vrot.slane %v2692, 1
        %v2694 = vadd.f32 %v2692, %v2693
        %v2695 = vrot.slane %v2513, 4
        %v2696 = vadd.f32 %v2513, %v2695
        %v2697 = vrot.slane %v2696, 2
        %v2698 = vadd.f32 %v2696, %v2697
        %v2699 = vrot.slane %v2698, 1
        %v2700 = vadd.f32 %v2698, %v2699
        %v2701 = vrot.slane %v2514, 4
        %v2702 = vadd.f32 %v2514, %v2701
        %v2703 = vrot.slane %v2702, 2
        %v2704 = vadd.f32 %v2702, %v2703
        %v2705 = vrot.slane %v2704, 1
        %v2706 = vadd.f32 %v2704, %v2705
        %v2707 = vmul.f32 %v2520, %v2418
        %v2708 = vmul.f32 %v2526, %v2418
        %v2709 = vmul.f32 %v2532, %v2418
        %v2710 = vmul.f32 %v2538, %v2418
        %v2711 = vmul.f32 %v2544, %v2418
        %v2712 = vmul.f32 %v2550, %v2418
        %v2713 = vmul.f32 %v2556, %v2418
        %v2714 = vmul.f32 %v2562, %v2418
        %v2715 = vmul.f32 %v2568, %v2418
        %v2716 = vmul.f32 %v2574, %v2418
        %v2717 = vmul.f32 %v2580, %v2418
        %v2718 = vmul.f32 %v2586, %v2418
        %v2719 = vmul.f32 %v2592, %v2418
        %v2720 = vmul.f32 %v2598, %v2418
        %v2721 = vmul.f32 %v2604, %v2418
        %v2722 = vmul.f32 %v2610, %v2418
        %v2723 = vmul.f32 %v2616, %v2418
        %v2724 = vmul.f32 %v2622, %v2418
        %v2725 = vmul.f32 %v2628, %v2418
        %v2726 = vmul.f32 %v2634, %v2418
        %v2727 = vmul.f32 %v2640, %v2418
        %v2728 = vmul.f32 %v2646, %v2418
        %v2729 = vmul.f32 %v2652, %v2418
        %v2730 = vmul.f32 %v2658, %v2418
        %v2731 = vmul.f32 %v2664, %v2418
        %v2732 = vmul.f32 %v2670, %v2418
        %v2733 = vmul.f32 %v2676, %v2418
        %v2734 = vmul.f32 %v2682, %v2418
        %v2735 = vmul.f32 %v2688, %v2418
        %v2736 = vmul.f32 %v2694, %v2418
        %v2737 = vmul.f32 %v2700, %v2418
        %v2738 = vmul.f32 %v2706, %v2418
        %v2739 = vadd.f32 %v2707, 1e-05
        %v2740 = vadd.f32 %v2708, 1e-05
        %v2741 = vadd.f32 %v2709, 1e-05
        %v2742 = vadd.f32 %v2710, 1e-05
        %v2743 = vadd.f32 %v2711, 1e-05
        %v2744 = vadd.f32 %v2712, 1e-05
        %v2745 = vadd.f32 %v2713, 1e-05
        %v2746 = vadd.f32 %v2714, 1e-05
        %v2747 = vadd.f32 %v2715, 1e-05
        %v2748 = vadd.f32 %v2716, 1e-05
        %v2749 = vadd.f32 %v2717, 1e-05
        %v2750 = vadd.f32 %v2718, 1e-05
        %v2751 = vadd.f32 %v2719, 1e-05
        %v2752 = vadd.f32 %v2720, 1e-05
        %v2753 = vadd.f32 %v2721, 1e-05
        %v2754 = vadd.f32 %v2722, 1e-05
        %v2755 = vadd.f32 %v2723, 1e-05
        %v2756 = vadd.f32 %v2724, 1e-05
        %v2757 = vadd.f32 %v2725, 1e-05
        %v2758 = vadd.f32 %v2726, 1e-05
        %v2759 = vadd.f32 %v2727, 1e-05
        %v2760 = vadd.f32 %v2728, 1e-05
        %v2761 = vadd.f32 %v2729, 1e-05
        %v2762 = vadd.f32 %v2730, 1e-05
        %v2763 = vadd.f32 %v2731, 1e-05
        %v2764 = vadd.f32 %v2732, 1e-05
        %v2765 = vadd.f32 %v2733, 1e-05
        %v2766 = vadd.f32 %v2734, 1e-05
        %v2767 = vadd.f32 %v2735, 1e-05
        %v2768 = vadd.f32 %v2736, 1e-05
        %v2769 = vadd.f32 %v2737, 1e-05
        %v2770 = vadd.f32 %v2738, 1e-05
        %v2771 = vrsqrt.pop %v2739
        %v2772 = vrsqrt.pop %v2740
        %v2773 = vrsqrt.pop %v2741
        %v2774 = vrsqrt.pop %v2742
        %v2775 = vrsqrt.pop %v2743
        %v2776 = vrsqrt.pop %v2744
        %v2777 = vrsqrt.pop %v2745
        %v2778 = vrsqrt.pop %v2746
        %v2779 = vrsqrt.pop %v2747
        %v2780 = vrsqrt.pop %v2748
        %v2781 = vrsqrt.pop %v2749
        %v2782 = vrsqrt.pop %v2750
        %v2783 = vrsqrt.pop %v2751
        %v2784 = vrsqrt.pop %v2752
        %v2785 = vrsqrt.pop %v2753
        %v2786 = vrsqrt.pop %v2754
        %v2787 = vrsqrt.pop %v2755
        %v2788 = vrsqrt.pop %v2756
        %v2789 = vrsqrt.pop %v2757
        %v2790 = vrsqrt.pop %v2758
        %v2791 = vrsqrt.pop %v2759
        %v2792 = vrsqrt.pop %v2760
        %v2793 = vrsqrt.pop %v2761
        %v2794 = vrsqrt.pop %v2762
        %v2795 = vrsqrt.pop %v2763
        %v2796 = vrsqrt.pop %v2764
        %v2797 = vrsqrt.pop %v2765
        %v2798 = vrsqrt.pop %v2766
        %v2799 = vrsqrt.pop %v2767
        %v2800 = vrsqrt.pop %v2768
        %v2801 = vrsqrt.pop %v2769
        %v2802 = vrsqrt.pop %v2770
        %v2803 = vmul.f32 %v292, %v2771
        %v2804 = vmul.f32 %v292, %v2772
        %v2805 = vmul.f32 %v292, %v2773
        %v2806 = vmul.f32 %v292, %v2774
        %v2807 = vmul.f32 %v292, %v2775
        %v2808 = vmul.f32 %v292, %v2776
        %v2809 = vmul.f32 %v292, %v2777
        %v2810 = vmul.f32 %v292, %v2778
        %v2811 = vmul.f32 %v292, %v2779
        %v2812 = vmul.f32 %v292, %v2780
        %v2813 = vmul.f32 %v292, %v2781
        %v2814 = vmul.f32 %v292, %v2782
        %v2815 = vmul.f32 %v292, %v2783
        %v2816 = vmul.f32 %v292, %v2784
        %v2817 = vmul.f32 %v292, %v2785
        %v2818 = vmul.f32 %v292, %v2786
        %v2819 = vmul.f32 %v292, %v2787
        %v2820 = vmul.f32 %v292, %v2788
        %v2821 = vmul.f32 %v292, %v2789
        %v2822 = vmul.f32 %v292, %v2790
        %v2823 = vmul.f32 %v292, %v2791
        %v2824 = vmul.f32 %v292, %v2792
        %v2825 = vmul.f32 %v292, %v2793
        %v2826 = vmul.f32 %v292, %v2794
        %v2827 = vmul.f32 %v292, %v2795
        %v2828 = vmul.f32 %v292, %v2796
        %v2829 = vmul.f32 %v292, %v2797
        %v2830 = vmul.f32 %v292, %v2798
        %v2831 = vmul.f32 %v292, %v2799
        %v2832 = vmul.f32 %v292, %v2800
        %v2833 = vmul.f32 %v292, %v2801
        %v2834 = vmul.f32 %v292, %v2802
        %v2835 = vlaneseq
        %v2836 = vshrl.u32 %v2835, 7
        %v2837 = vsub.s32 0, %v2836
        %v2838 = vrot.slane %v2803, %v2837
        %v2839 = vlaneseq
        %v2840 = vshrl.u32 %v2839, 7
        %v2841 = vsub.s32 0, %v2840
        %v2842 = vrot.slane %v2804, %v2841
        %v2843 = vlaneseq
        %v2844 = vshrl.u32 %v2843, 7
        %v2845 = vsub.s32 0, %v2844
        %v2846 = vrot.slane %v2805, %v2845
        %v2847 = vlaneseq
        %v2848 = vshrl.u32 %v2847, 7
        %v2849 = vsub.s32 0, %v2848
        %v2850 = vrot.slane %v2806, %v2849
        %v2851 = vlaneseq
        %v2852 = vshrl.u32 %v2851, 7
        %v2853 = vsub.s32 0, %v2852
        %v2854 = vrot.slane %v2807, %v2853
        %v2855 = vlaneseq
        %v2856 = vshrl.u32 %v2855, 7
        %v2857 = vsub.s32 0, %v2856
        %v2858 = vrot.slane %v2808, %v2857
        %v2859 = vlaneseq
        %v2860 = vshrl.u32 %v2859, 7
        %v2861 = vsub.s32 0, %v2860
        %v2862 = vrot.slane %v2809, %v2861
        %v2863 = vlaneseq
        %v2864 = vshrl.u32 %v2863, 7
        %v2865 = vsub.s32 0, %v2864
        %v2866 = vrot.slane %v2810, %v2865
        %v2867 = vlaneseq
        %v2868 = vshrl.u32 %v2867, 7
        %v2869 = vsub.s32 0, %v2868
        %v2870 = vrot.slane %v2811, %v2869
        %v2871 = vlaneseq
        %v2872 = vshrl.u32 %v2871, 7
        %v2873 = vsub.s32 0, %v2872
        %v2874 = vrot.slane %v2812, %v2873
        %v2875 = vlaneseq
        %v2876 = vshrl.u32 %v2875, 7
        %v2877 = vsub.s32 0, %v2876
        %v2878 = vrot.slane %v2813, %v2877
        %v2879 = vlaneseq
        %v2880 = vshrl.u32 %v2879, 7
        %v2881 = vsub.s32 0, %v2880
        %v2882 = vrot.slane %v2814, %v2881
        %v2883 = vlaneseq
        %v2884 = vshrl.u32 %v2883, 7
        %v2885 = vsub.s32 0, %v2884
        %v2886 = vrot.slane %v2815, %v2885
        %v2887 = vlaneseq
        %v2888 = vshrl.u32 %v2887, 7
        %v2889 = vsub.s32 0, %v2888
        %v2890 = vrot.slane %v2816, %v2889
        %v2891 = vlaneseq
        %v2892 = vshrl.u32 %v2891, 7
        %v2893 = vsub.s32 0, %v2892
        %v2894 = vrot.slane %v2817, %v2893
        %v2895 = vlaneseq
        %v2896 = vshrl.u32 %v2895, 7
        %v2897 = vsub.s32 0, %v2896
        %v2898 = vrot.slane %v2818, %v2897
        %v2899 = vlaneseq
        %v2900 = vshrl.u32 %v2899, 7
        %v2901 = vsub.s32 0, %v2900
        %v2902 = vrot.slane %v2819, %v2901
        %v2903 = vlaneseq
        %v2904 = vshrl.u32 %v2903, 7
        %v2905 = vsub.s32 0, %v2904
        %v2906 = vrot.slane %v2820, %v2905
        %v2907 = vlaneseq
        %v2908 = vshrl.u32 %v2907, 7
        %v2909 = vsub.s32 0, %v2908
        %v2910 = vrot.slane %v2821, %v2909
        %v2911 = vlaneseq
        %v2912 = vshrl.u32 %v2911, 7
        %v2913 = vsub.s32 0, %v2912
        %v2914 = vrot.slane %v2822, %v2913
        %v2915 = vlaneseq
        %v2916 = vshrl.u32 %v2915, 7
        %v2917 = vsub.s32 0, %v2916
        %v2918 = vrot.slane %v2823, %v2917
        %v2919 = vlaneseq
        %v2920 = vshrl.u32 %v2919, 7
        %v2921 = vsub.s32 0, %v2920
        %v2922 = vrot.slane %v2824, %v2921
        %v2923 = vlaneseq
        %v2924 = vshrl.u32 %v2923, 7
        %v2925 = vsub.s32 0, %v2924
        %v2926 = vrot.slane %v2825, %v2925
        %v2927 = vlaneseq
        %v2928 = vshrl.u32 %v2927, 7
        %v2929 = vsub.s32 0, %v2928
        %v2930 = vrot.slane %v2826, %v2929
        %v2931 = vlaneseq
        %v2932 = vshrl.u32 %v2931, 7
        %v2933 = vsub.s32 0, %v2932
        %v2934 = vrot.slane %v2827, %v2933
        %v2935 = vlaneseq
        %v2936 = vshrl.u32 %v2935, 7
        %v2937 = vsub.s32 0, %v2936
        %v2938 = vrot.slane %v2828, %v2937
        %v2939 = vlaneseq
        %v2940 = vshrl.u32 %v2939, 7
        %v2941 = vsub.s32 0, %v2940
        %v2942 = vrot.slane %v2829, %v2941
        %v2943 = vlaneseq
        %v2944 = vshrl.u32 %v2943, 7
        %v2945 = vsub.s32 0, %v2944
        %v2946 = vrot.slane %v2830, %v2945
        %v2947 = vlaneseq
        %v2948 = vshrl.u32 %v2947, 7
        %v2949 = vsub.s32 0, %v2948
        %v2950 = vrot.slane %v2831, %v2949
        %v2951 = vlaneseq
        %v2952 = vshrl.u32 %v2951, 7
        %v2953 = vsub.s32 0, %v2952
        %v2954 = vrot.slane %v2832, %v2953
        %v2955 = vlaneseq
        %v2956 = vshrl.u32 %v2955, 7
        %v2957 = vsub.s32 0, %v2956
        %v2958 = vrot.slane %v2833, %v2957
        %v2959 = vlaneseq
        %v2960 = vshrl.u32 %v2959, 7
        %v2961 = vsub.s32 0, %v2960
        %v2962 = vrot.slane %v2834, %v2961
        %v2963 = vmul.f32 %v2451, %v2838
        %v2964 = vmul.f32 %v2452, %v2842
        %v2965 = vmul.f32 %v2453, %v2846
        %v2966 = vmul.f32 %v2454, %v2850
        %v2967 = vmul.f32 %v2455, %v2854
        %v2968 = vmul.f32 %v2456, %v2858
        %v2969 = vmul.f32 %v2457, %v2862
        %v2970 = vmul.f32 %v2458, %v2866
        %v2971 = vmul.f32 %v2459, %v2870
        %v2972 = vmul.f32 %v2460, %v2874
        %v2973 = vmul.f32 %v2461, %v2878
        %v2974 = vmul.f32 %v2462, %v2882
        %v2975 = vmul.f32 %v2463, %v2886
        %v2976 = vmul.f32 %v2464, %v2890
        %v2977 = vmul.f32 %v2465, %v2894
        %v2978 = vmul.f32 %v2466, %v2898
        %v2979 = vmul.f32 %v2467, %v2902
        %v2980 = vmul.f32 %v2468, %v2906
        %v2981 = vmul.f32 %v2469, %v2910
        %v2982 = vmul.f32 %v2470, %v2914
        %v2983 = vmul.f32 %v2471, %v2918
        %v2984 = vmul.f32 %v2472, %v2922
        %v2985 = vmul.f32 %v2473, %v2926
        %v2986 = vmul.f32 %v2474, %v2930
        %v2987 = vmul.f32 %v2475, %v2934
        %v2988 = vmul.f32 %v2476, %v2938
        %v2989 = vmul.f32 %v2477, %v2942
        %v2990 = vmul.f32 %v2478, %v2946
        %v2991 = vmul.f32 %v2479, %v2950
        %v2992 = vmul.f32 %v2480, %v2954
        %v2993 = vmul.f32 %v2481, %v2958
        %v2994 = vmul.f32 %v2482, %v2962
        %v2995 = vlaneseq
        %v2996 = vshrl.u32 %v2995, 7
        %v2997 = vsub.s32 0, %v2996
        %v2998 = vrot.slane %v293, %v2997
        %v2999 = vadd.f32 %v2963, %v2998
        %v3000 = vadd.f32 %v2964, %v2998
        %v3001 = vadd.f32 %v2965, %v2998
        %v3002 = vadd.f32 %v2966, %v2998
        %v3003 = vadd.f32 %v2967, %v2998
        %v3004 = vadd.f32 %v2968, %v2998
        %v3005 = vadd.f32 %v2969, %v2998
        %v3006 = vadd.f32 %v2970, %v2998
        %v3007 = vadd.f32 %v2971, %v2998
        %v3008 = vadd.f32 %v2972, %v2998
        %v3009 = vadd.f32 %v2973, %v2998
        %v3010 = vadd.f32 %v2974, %v2998
        %v3011 = vadd.f32 %v2975, %v2998
        %v3012 = vadd.f32 %v2976, %v2998
        %v3013 = vadd.f32 %v2977, %v2998
        %v3014 = vadd.f32 %v2978, %v2998
        %v3015 = vadd.f32 %v2979, %v2998
        %v3016 = vadd.f32 %v2980, %v2998
        %v3017 = vadd.f32 %v2981, %v2998
        %v3018 = vadd.f32 %v2982, %v2998
        %v3019 = vadd.f32 %v2983, %v2998
        %v3020 = vadd.f32 %v2984, %v2998
        %v3021 = vadd.f32 %v2985, %v2998
        %v3022 = vadd.f32 %v2986, %v2998
        %v3023 = vadd.f32 %v2987, %v2998
        %v3024 = vadd.f32 %v2988, %v2998
        %v3025 = vadd.f32 %v2989, %v2998
        %v3026 = vadd.f32 %v2990, %v2998
        %v3027 = vadd.f32 %v2991, %v2998
        %v3028 = vadd.f32 %v2992, %v2998
        %v3029 = vadd.f32 %v2993, %v2998
        %v3030 = vadd.f32 %v2994, %v2998
        %v3031 = vand.u32 2147483647, %v2999
        %v3032 = vand.u32 2147483647, %v3000
        %v3033 = vand.u32 2147483647, %v3001
        %v3034 = vand.u32 2147483647, %v3002
        %v3035 = vand.u32 2147483647, %v3003
        %v3036 = vand.u32 2147483647, %v3004
        %v3037 = vand.u32 2147483647, %v3005
        %v3038 = vand.u32 2147483647, %v3006
        %v3039 = vand.u32 2147483647, %v3007
        %v3040 = vand.u32 2147483647, %v3008
        %v3041 = vand.u32 2147483647, %v3009
        %v3042 = vand.u32 2147483647, %v3010
        %v3043 = vand.u32 2147483647, %v3011
        %v3044 = vand.u32 2147483647, %v3012
        %v3045 = vand.u32 2147483647, %v3013
        %v3046 = vand.u32 2147483647, %v3014
        %v3047 = vand.u32 2147483647, %v3015
        %v3048 = vand.u32 2147483647, %v3016
        %v3049 = vand.u32 2147483647, %v3017
        %v3050 = vand.u32 2147483647, %v3018
        %v3051 = vand.u32 2147483647, %v3019
        %v3052 = vand.u32 2147483647, %v3020
        %v3053 = vand.u32 2147483647, %v3021
        %v3054 = vand.u32 2147483647, %v3022
        %v3055 = vand.u32 2147483647, %v3023
        %v3056 = vand.u32 2147483647, %v3024
        %v3057 = vand.u32 2147483647, %v3025
        %v3058 = vand.u32 2147483647, %v3026
        %v3059 = vand.u32 2147483647, %v3027
        %v3060 = vand.u32 2147483647, %v3028
        %v3061 = vand.u32 2147483647, %v3029
        %v3062 = vand.u32 2147483647, %v3030
        %v3063 = vadd.f32 %v3031, 1.0
        %v3064 = vadd.f32 %v3032, 1.0
        %v3065 = vadd.f32 %v3033, 1.0
        %v3066 = vadd.f32 %v3034, 1.0
        %v3067 = vadd.f32 %v3035, 1.0
        %v3068 = vadd.f32 %v3036, 1.0
        %v3069 = vadd.f32 %v3037, 1.0
        %v3070 = vadd.f32 %v3038, 1.0
        %v3071 = vadd.f32 %v3039, 1.0
        %v3072 = vadd.f32 %v3040, 1.0
        %v3073 = vadd.f32 %v3041, 1.0
        %v3074 = vadd.f32 %v3042, 1.0
        %v3075 = vadd.f32 %v3043, 1.0
        %v3076 = vadd.f32 %v3044, 1.0
        %v3077 = vadd.f32 %v3045, 1.0
        %v3078 = vadd.f32 %v3046, 1.0
        %v3079 = vadd.f32 %v3047, 1.0
        %v3080 = vadd.f32 %v3048, 1.0
        %v3081 = vadd.f32 %v3049, 1.0
        %v3082 = vadd.f32 %v3050, 1.0
        %v3083 = vadd.f32 %v3051, 1.0
        %v3084 = vadd.f32 %v3052, 1.0
        %v3085 = vadd.f32 %v3053, 1.0
        %v3086 = vadd.f32 %v3054, 1.0
        %v3087 = vadd.f32 %v3055, 1.0
        %v3088 = vadd.f32 %v3056, 1.0
        %v3089 = vadd.f32 %v3057, 1.0
        %v3090 = vadd.f32 %v3058, 1.0
        %v3091 = vadd.f32 %v3059, 1.0
        %v3092 = vadd.f32 %v3060, 1.0
        %v3093 = vadd.f32 %v3061, 1.0
        %v3094 = vadd.f32 %v3062, 1.0
        %v3095 = vrcp.pop %v3063
        %v3096 = vrcp.pop %v3064
        %v3097 = vrcp.pop %v3065
        %v3098 = vrcp.pop %v3066
        %v3099 = vrcp.pop %v3067
        %v3100 = vrcp.pop %v3068
        %v3101 = vrcp.pop %v3069
        %v3102 = vrcp.pop %v3070
        %v3103 = vrcp.pop %v3071
        %v3104 = vrcp.pop %v3072
        %v3105 = vrcp.pop %v3073
        %v3106 = vrcp.pop %v3074
        %v3107 = vrcp.pop %v3075
        %v3108 = vrcp.pop %v3076
        %v3109 = vrcp.pop %v3077
        %v3110 = vrcp.pop %v3078
        %v3111 = vrcp.pop %v3079
        %v3112 = vrcp.pop %v3080
        %v3113 = vrcp.pop %v3081
        %v3114 = vrcp.pop %v3082
        %v3115 = vrcp.pop %v3083
        %v3116 = vrcp.pop %v3084
        %v3117 = vrcp.pop %v3085
        %v3118 = vrcp.pop %v3086
        %v3119 = vrcp.pop %v3087
        %v3120 = vrcp.pop %v3088
        %v3121 = vrcp.pop %v3089
        %v3122 = vrcp.pop %v3090
        %v3123 = vrcp.pop %v3091
        %v3124 = vrcp.pop %v3092
        %v3125 = vrcp.pop %v3093
        %v3126 = vrcp.pop %v3094
        %v3127 = vmul.f32 %v2999, %v3095
        %v3128 = vmul.f32 %v3000, %v3096
        %v3129 = vmul.f32 %v3001, %v3097
        %v3130 = vmul.f32 %v3002, %v3098
        %v3131 = vmul.f32 %v3003, %v3099
        %v3132 = vmul.f32 %v3004, %v3100
        %v3133 = vmul.f32 %v3005, %v3101
        %v3134 = vmul.f32 %v3006, %v3102
        %v3135 = vmul.f32 %v3007, %v3103
        %v3136 = vmul.f32 %v3008, %v3104
        %v3137 = vmul.f32 %v3009, %v3105
        %v3138 = vmul.f32 %v3010, %v3106
        %v3139 = vmul.f32 %v3011, %v3107
        %v3140 = vmul.f32 %v3012, %v3108
        %v3141 = vmul.f32 %v3013, %v3109
        %v3142 = vmul.f32 %v3014, %v3110
        %v3143 = vmul.f32 %v3015, %v3111
        %v3144 = vmul.f32 %v3016, %v3112
        %v3145 = vmul.f32 %v3017, %v3113
        %v3146 = vmul.f32 %v3018, %v3114
        %v3147 = vmul.f32 %v3019, %v3115
        %v3148 = vmul.f32 %v3020, %v3116
        %v3149 = vmul.f32 %v3021, %v3117
        %v3150 = vmul.f32 %v3022, %v3118
        %v3151 = vmul.f32 %v3023, %v3119
        %v3152 = vmul.f32 %v3024, %v3120
        %v3153 = vmul.f32 %v3025, %v3121
        %v3154 = vmul.f32 %v3026, %v3122
        %v3155 = vmul.f32 %v3027, %v3123
        %v3156 = vmul.f32 %v3028, %v3124
        %v3157 = vmul.f32 %v3029, %v3125
        %v3158 = vmul.f32 %v3030, %v3126
        %v3159 = vpack.c.bf16 %v3128, %v3127
        %v3160 = vpack.c.bf16 %v3130, %v3129
        %v3161 = vpack.c.bf16 %v3132, %v3131
        %v3162 = vpack.c.bf16 %v3134, %v3133
        %v3163 = vpack.c.bf16 %v3136, %v3135
        %v3164 = vpack.c.bf16 %v3138, %v3137
        %v3165 = vpack.c.bf16 %v3140, %v3139
        %v3166 = vpack.c.bf16 %v3142, %v3141
        %v3167 = vpack.c.bf16 %v3144, %v3143
        %v3168 = vpack.c.bf16 %v3146, %v3145
        %v3169 = vpack.c.bf16 %v3148, %v3147
        %v3170 = vpack.c.bf16 %v3150, %v3149
        %v3171 = vpack.c.bf16 %v3152, %v3151
        %v3172 = vpack.c.bf16 %v3154, %v3153
        %v3173 = vpack.c.bf16 %v3156, %v3155
        %v3174 = vpack.c.bf16 %v3158, %v3157
        %v3175 = vld [vmem:[#allocation7] sm:$0xf]
        %v3176 = vld [vmem:[#allocation7 + $0x4] sm:$0xf]
        %v3177 = vld [vmem:[#allocation7 + $0x8] sm:$0xf]
        %v3178 = vld [vmem:[#allocation7 + $0xc] sm:$0xf]
        %v3179 = vld [vmem:[#allocation7 + $0x10] sm:$0xf]
        %v3180 = vld [vmem:[#allocation7 + $0x14] sm:$0xf]
        %v3181 = vld [vmem:[#allocation7 + $0x18] sm:$0xf]
        %v3182 = vld [vmem:[#allocation7 + $0x1c] sm:$0xf]
        %v3183 = vld [vmem:[#allocation7 + $0x20] sm:$0xf]
        %v3184 = vld [vmem:[#allocation7 + $0x24] sm:$0xf]
        %v3185 = vld [vmem:[#allocation7 + $0x28] sm:$0xf]
        %v3186 = vld [vmem:[#allocation7 + $0x2c] sm:$0xf]
        %v3187 = vld [vmem:[#allocation7 + $0x30] sm:$0xf]
        %v3188 = vld [vmem:[#allocation7 + $0x34] sm:$0xf]
        %v3189 = vld [vmem:[#allocation7 + $0x38] sm:$0xf]
        %v3190 = vld [vmem:[#allocation7 + $0x3c] sm:$0xf]
        %v3191 = vlaneseq
        %v3192 = vshrl.u32 %v3191, 7
        %v3193 = vsub.s32 0, %v3192
        %v3194 = vrot.slane %v294, %v3193
        %v3211 = vunpack.c.l.b16 %v3175
        %v3212 = vunpack.c.l.b16 %v3176
        %v3213 = vunpack.c.l.b16 %v3177
        %v3214 = vunpack.c.l.b16 %v3178
        %v3215 = vunpack.c.l.b16 %v3179
        %v3216 = vunpack.c.l.b16 %v3180
        %v3217 = vunpack.c.l.b16 %v3181
        %v3218 = vunpack.c.l.b16 %v3182
        %v3219 = vunpack.c.l.b16 %v3183
        %v3220 = vunpack.c.l.b16 %v3184
        %v3221 = vunpack.c.l.b16 %v3185
        %v3222 = vunpack.c.l.b16 %v3186
        %v3223 = vunpack.c.l.b16 %v3187
        %v3224 = vunpack.c.l.b16 %v3188
        %v3225 = vunpack.c.l.b16 %v3189
        %v3226 = vunpack.c.l.b16 %v3190
        %v3227 = vpack.c.b16 %v3212, %v3211
        %v3228 = vpack.c.b16 %v3214, %v3213
        %v3229 = vpack.c.b16 %v3216, %v3215
        %v3230 = vpack.c.b16 %v3218, %v3217
        %v3231 = vpack.c.b16 %v3220, %v3219
        %v3232 = vpack.c.b16 %v3222, %v3221
        %v3233 = vpack.c.b16 %v3224, %v3223
        %v3234 = vpack.c.b16 %v3226, %v3225
        %3243 = vmatprep.subr.bf16.mxu0 0
        %3244 = vmatpush1.bf16.msra.mxu0 %v3227
        %3245 = vmatprep.subr.bf16.mxu0 0
        %3246 = vmatpush1.bf16.msra.mxu0 %v3228
        %3247 = vmatprep.subr.bf16.mxu0 0
        %3248 = vmatpush1.bf16.msra.mxu0 %v3229
        %3249 = vmatprep.subr.bf16.mxu0 0
        %3250 = vmatpush1.bf16.msra.mxu0 %v3230
        %3251 = vmatprep.subr.bf16.mxu0 0
        %3252 = vmatpush1.bf16.msra.mxu0 %v3231
        %3253 = vmatprep.subr.bf16.mxu0 0
        %3254 = vmatpush1.bf16.msra.mxu0 %v3232
        %3255 = vmatprep.subr.bf16.mxu0 0
        %3256 = vmatpush1.bf16.msra.mxu0 %v3233
        %3257 = vmatprep.subr.bf16.mxu0 0
        %3258 = vmatpush1.bf16.msra.mxu0 %v3234
        %3259 = vmatprep.subr.bf16.mxu0 0
        %3260 = vmatpush1.bf16.msra.mxu0 0
        %3261 = vmatprep.subr.bf16.mxu0 0
        %3262 = vmatpush1.bf16.msra.mxu0 0
        %3263 = vmatprep.subr.bf16.mxu0 0
        %3264 = vmatpush1.bf16.msra.mxu0 0
        %3265 = vmatprep.subr.bf16.mxu0 0
        %3266 = vmatpush1.bf16.msra.mxu0 0
        %3267 = vmatprep.subr.bf16.mxu0 0
        %3268 = vmatpush1.bf16.msra.mxu0 0
        %3269 = vmatprep.subr.bf16.mxu0 0
        %3270 = vmatpush1.bf16.msra.mxu0 0
        %3271 = vmatprep.subr.bf16.mxu0 0
        %3272 = vmatpush1.bf16.msra.mxu0 0
        %3273 = vmatprep.subr.bf16.mxu0 0
        %3274 = vmatpush1.bf16.msra.mxu0 0
        %3275 = vmatprep.mubr.bf16.mxu0 0
        %3276 = vmatmul.mubr.bf16.gmra.mrb[0].mxu0 %v3159
        %v3277 = vpop.f32.mrb[0].mxu0
        %v3278 = vadd.f32 %v3194, %v3277
        %v3279 = vpop.f32.mrb[0].mxu0
        %v3280 = vpop.f32.mrb[0].mxu0
        %v3281 = vadd.f32 %v3194, %v3280
        %v3282 = vpop.f32.mrb[0].mxu0
        %3283 = vmatprep.mubr.bf16.mxu0 0
        %3284 = vmatmul.mubr.bf16.gmra.mrb[0].mxu0 %v3160
        %v3285 = vpop.f32.mrb[0].mxu0
        %v3286 = vadd.f32 %v3194, %v3285
        %v3287 = vpop.f32.mrb[0].mxu0
        %v3288 = vpop.f32.mrb[0].mxu0
        %v3289 = vadd.f32 %v3194, %v3288
        %v3290 = vpop.f32.mrb[0].mxu0
        %3291 = vmatprep.mubr.bf16.mxu0 0
        %3292 = vmatmul.mubr.bf16.gmra.mrb[0].mxu0 %v3161
        %v3293 = vpop.f32.mrb[0].mxu0
        %v3294 = vadd.f32 %v3194, %v3293
        %v3295 = vpop.f32.mrb[0].mxu0
        %v3296 = vpop.f32.mrb[0].mxu0
        %v3297 = vadd.f32 %v3194, %v3296
        %v3298 = vpop.f32.mrb[0].mxu0
        %3299 = vmatprep.mubr.bf16.mxu0 0
        %3300 = vmatmul.mubr.bf16.gmra.mrb[0].mxu0 %v3162
        %v3301 = vpop.f32.mrb[0].mxu0
        %v3302 = vadd.f32 %v3194, %v3301
        %v3303 = vpop.f32.mrb[0].mxu0
        %v3304 = vpop.f32.mrb[0].mxu0
        %v3305 = vadd.f32 %v3194, %v3304
        %v3306 = vpop.f32.mrb[0].mxu0
        %3307 = vmatprep.mubr.bf16.mxu0 0
        %3308 = vmatmul.mubr.bf16.gmra.mrb[0].mxu0 %v3163
        %v3309 = vpop.f32.mrb[0].mxu0
        %v3310 = vadd.f32 %v3194, %v3309
        %v3311 = vpop.f32.mrb[0].mxu0
        %v3312 = vpop.f32.mrb[0].mxu0
        %v3313 = vadd.f32 %v3194, %v3312
        %v3314 = vpop.f32.mrb[0].mxu0
        %3315 = vmatprep.mubr.bf16.mxu0 0
        %3316 = vmatmul.mubr.bf16.gmra.mrb[0].mxu0 %v3164
        %v3317 = vpop.f32.mrb[0].mxu0
        %v3318 = vadd.f32 %v3194, %v3317
        %v3319 = vpop.f32.mrb[0].mxu0
        %v3320 = vpop.f32.mrb[0].mxu0
        %v3321 = vadd.f32 %v3194, %v3320
        %v3322 = vpop.f32.mrb[0].mxu0
        %3323 = vmatprep.mubr.bf16.mxu0 0
        %3324 = vmatmul.mubr.bf16.gmra.mrb[0].mxu0 %v3165
        %v3325 = vpop.f32.mrb[0].mxu0
        %v3326 = vadd.f32 %v3194, %v3325
        %v3327 = vpop.f32.mrb[0].mxu0
        %v3328 = vpop.f32.mrb[0].mxu0
        %v3329 = vadd.f32 %v3194, %v3328
        %v3330 = vpop.f32.mrb[0].mxu0
        %3331 = vmatprep.mubr.bf16.mxu0 0
        %3332 = vmatmul.mubr.bf16.gmra.mrb[0].mxu0 %v3166
        %v3333 = vpop.f32.mrb[0].mxu0
        %v3334 = vadd.f32 %v3194, %v3333
        %v3335 = vpop.f32.mrb[0].mxu0
        %v3336 = vpop.f32.mrb[0].mxu0
        %v3337 = vadd.f32 %v3194, %v3336
        %v3338 = vpop.f32.mrb[0].mxu0
        %3339 = vmatprep.mubr.bf16.mxu0 0
        %3340 = vmatmul.mubr.bf16.gmra.mrb[0].mxu0 %v3167
        %v3341 = vpop.f32.mrb[0].mxu0
        %v3342 = vadd.f32 %v3194, %v3341
        %v3343 = vpop.f32.mrb[0].mxu0
        %v3344 = vpop.f32.mrb[0].mxu0
        %v3345 = vadd.f32 %v3194, %v3344
        %v3346 = vpop.f32.mrb[0].mxu0
        %3347 = vmatprep.mubr.bf16.mxu0 0
        %3348 = vmatmul.mubr.bf16.gmra.mrb[0].mxu0 %v3168
        %v3349 = vpop.f32.mrb[0].mxu0
        %v3350 = vadd.f32 %v3194, %v3349
        %v3351 = vpop.f32.mrb[0].mxu0
        %v3352 = vpop.f32.mrb[0].mxu0
        %v3353 = vadd.f32 %v3194, %v3352
        %v3354 = vpop.f32.mrb[0].mxu0
        %3355 = vmatprep.mubr.bf16.mxu0 0
        %3356 = vmatmul.mubr.bf16.gmra.mrb[0].mxu0 %v3169
        %v3357 = vpop.f32.mrb[0].mxu0
        %v3358 = vadd.f32 %v3194, %v3357
        %v3359 = vpop.f32.mrb[0].mxu0
        %v3360 = vpop.f32.mrb[0].mxu0
        %v3361 = vadd.f32 %v3194, %v3360
        %v3362 = vpop.f32.mrb[0].mxu0
        %3363 = vmatprep.mubr.bf16.mxu0 0
        %3364 = vmatmul.mubr.bf16.gmra.mrb[0].mxu0 %v3170
        %v3365 = vpop.f32.mrb[0].mxu0
        %v3366 = vadd.f32 %v3194, %v3365
        %v3367 = vpop.f32.mrb[0].mxu0
        %v3368 = vpop.f32.mrb[0].mxu0
        %v3369 = vadd.f32 %v3194, %v3368
        %v3370 = vpop.f32.mrb[0].mxu0
        %3371 = vmatprep.mubr.bf16.mxu0 0
        %3372 = vmatmul.mubr.bf16.gmra.mrb[0].mxu0 %v3171
        %v3373 = vpop.f32.mrb[0].mxu0
        %v3374 = vadd.f32 %v3194, %v3373
        %v3375 = vpop.f32.mrb[0].mxu0
        %v3376 = vpop.f32.mrb[0].mxu0
        %v3377 = vadd.f32 %v3194, %v3376
        %v3378 = vpop.f32.mrb[0].mxu0
        %3379 = vmatprep.mubr.bf16.mxu0 0
        %3380 = vmatmul.mubr.bf16.gmra.mrb[0].mxu0 %v3172
        %v3381 = vpop.f32.mrb[0].mxu0
        %v3382 = vadd.f32 %v3194, %v3381
        %v3383 = vpop.f32.mrb[0].mxu0
        %v3384 = vpop.f32.mrb[0].mxu0
        %v3385 = vadd.f32 %v3194, %v3384
        %v3386 = vpop.f32.mrb[0].mxu0
        %3387 = vmatprep.mubr.bf16.mxu0 0
        %3388 = vmatmul.mubr.bf16.gmra.mrb[0].mxu0 %v3173
        %v3389 = vpop.f32.mrb[0].mxu0
        %v3390 = vadd.f32 %v3194, %v3389
        %v3391 = vpop.f32.mrb[0].mxu0
        %v3392 = vpop.f32.mrb[0].mxu0
        %v3393 = vadd.f32 %v3194, %v3392
        %v3394 = vpop.f32.mrb[0].mxu0
        %3395 = vmatprep.mubr.bf16.mxu0 0
        %3396 = vmatmul.mubr.bf16.gmra.mrb[0].mxu0 %v3174
        %v3397 = vpop.f32.mrb[0].mxu0
        %v3398 = vadd.f32 %v3194, %v3397
        %v3399 = vpop.f32.mrb[0].mxu0
        %v3400 = vpop.f32.mrb[0].mxu0
        %v3401 = vadd.f32 %v3194, %v3400
        %v3402 = vpop.f32.mrb[0].mxu0
        %3403 = vdwg.mxu0
        %v3404 = vrot.slane %v3278, 4
        %v3405 = vadd.f32 %v3278, %v3404
        %v3406 = vrot.slane %v3405, 2
        %v3407 = vadd.f32 %v3405, %v3406
        %v3408 = vrot.slane %v3407, 1
        %v3409 = vadd.f32 %v3407, %v3408
        %v3410 = vrot.slane %v3281, 4
        %v3411 = vadd.f32 %v3281, %v3410
        %v3412 = vrot.slane %v3411, 2
        %v3413 = vadd.f32 %v3411, %v3412
        %v3414 = vrot.slane %v3413, 1
        %v3415 = vadd.f32 %v3413, %v3414
        %v3416 = vrot.slane %v3286, 4
        %v3417 = vadd.f32 %v3286, %v3416
        %v3418 = vrot.slane %v3417, 2
        %v3419 = vadd.f32 %v3417, %v3418
        %v3420 = vrot.slane %v3419, 1
        %v3421 = vadd.f32 %v3419, %v3420
        %v3422 = vrot.slane %v3289, 4
        %v3423 = vadd.f32 %v3289, %v3422
        %v3424 = vrot.slane %v3423, 2
        %v3425 = vadd.f32 %v3423, %v3424
        %v3426 = vrot.slane %v3425, 1
        %v3427 = vadd.f32 %v3425, %v3426
        %v3428 = vrot.slane %v3294, 4
        %v3429 = vadd.f32 %v3294, %v3428
        %v3430 = vrot.slane %v3429, 2
        %v3431 = vadd.f32 %v3429, %v3430
        %v3432 = vrot.slane %v3431, 1
        %v3433 = vadd.f32 %v3431, %v3432
        %v3434 = vrot.slane %v3297, 4
        %v3435 = vadd.f32 %v3297, %v3434
        %v3436 = vrot.slane %v3435, 2
        %v3437 = vadd.f32 %v3435, %v3436
        %v3438 = vrot.slane %v3437, 1
        %v3439 = vadd.f32 %v3437, %v3438
        %v3440 = vrot.slane %v3302, 4
        %v3441 = vadd.f32 %v3302, %v3440
        %v3442 = vrot.slane %v3441, 2
        %v3443 = vadd.f32 %v3441, %v3442
        %v3444 = vrot.slane %v3443, 1
        %v3445 = vadd.f32 %v3443, %v3444
        %v3446 = vrot.slane %v3305, 4
        %v3447 = vadd.f32 %v3305, %v3446
        %v3448 = vrot.slane %v3447, 2
        %v3449 = vadd.f32 %v3447, %v3448
        %v3450 = vrot.slane %v3449, 1
        %v3451 = vadd.f32 %v3449, %v3450
        %v3452 = vrot.slane %v3310, 4
        %v3453 = vadd.f32 %v3310, %v3452
        %v3454 = vrot.slane %v3453, 2
        %v3455 = vadd.f32 %v3453, %v3454
        %v3456 = vrot.slane %v3455, 1
        %v3457 = vadd.f32 %v3455, %v3456
        %v3458 = vrot.slane %v3313, 4
        %v3459 = vadd.f32 %v3313, %v3458
        %v3460 = vrot.slane %v3459, 2
        %v3461 = vadd.f32 %v3459, %v3460
        %v3462 = vrot.slane %v3461, 1
        %v3463 = vadd.f32 %v3461, %v3462
        %v3464 = vrot.slane %v3318, 4
        %v3465 = vadd.f32 %v3318, %v3464
        %v3466 = vrot.slane %v3465, 2
        %v3467 = vadd.f32 %v3465, %v3466
        %v3468 = vrot.slane %v3467, 1
        %v3469 = vadd.f32 %v3467, %v3468
        %v3470 = vrot.slane %v3321, 4
        %v3471 = vadd.f32 %v3321, %v3470
        %v3472 = vrot.slane %v3471, 2
        %v3473 = vadd.f32 %v3471, %v3472
        %v3474 = vrot.slane %v3473, 1
        %v3475 = vadd.f32 %v3473, %v3474
        %v3476 = vrot.slane %v3326, 4
        %v3477 = vadd.f32 %v3326, %v3476
        %v3478 = vrot.slane %v3477, 2
        %v3479 = vadd.f32 %v3477, %v3478
        %v3480 = vrot.slane %v3479, 1
        %v3481 = vadd.f32 %v3479, %v3480
        %v3482 = vrot.slane %v3329, 4
        %v3483 = vadd.f32 %v3329, %v3482
        %v3484 = vrot.slane %v3483, 2
        %v3485 = vadd.f32 %v3483, %v3484
        %v3486 = vrot.slane %v3485, 1
        %v3487 = vadd.f32 %v3485, %v3486
        %v3488 = vrot.slane %v3334, 4
        %v3489 = vadd.f32 %v3334, %v3488
        %v3490 = vrot.slane %v3489, 2
        %v3491 = vadd.f32 %v3489, %v3490
        %v3492 = vrot.slane %v3491, 1
        %v3493 = vadd.f32 %v3491, %v3492
        %v3494 = vrot.slane %v3337, 4
        %v3495 = vadd.f32 %v3337, %v3494
        %v3496 = vrot.slane %v3495, 2
        %v3497 = vadd.f32 %v3495, %v3496
        %v3498 = vrot.slane %v3497, 1
        %v3499 = vadd.f32 %v3497, %v3498
        %v3500 = vrot.slane %v3342, 4
        %v3501 = vadd.f32 %v3342, %v3500
        %v3502 = vrot.slane %v3501, 2
        %v3503 = vadd.f32 %v3501, %v3502
        %v3504 = vrot.slane %v3503, 1
        %v3505 = vadd.f32 %v3503, %v3504
        %v3506 = vrot.slane %v3345, 4
        %v3507 = vadd.f32 %v3345, %v3506
        %v3508 = vrot.slane %v3507, 2
        %v3509 = vadd.f32 %v3507, %v3508
        %v3510 = vrot.slane %v3509, 1
        %v3511 = vadd.f32 %v3509, %v3510
        %v3512 = vrot.slane %v3350, 4
        %v3513 = vadd.f32 %v3350, %v3512
        %v3514 = vrot.slane %v3513, 2
        %v3515 = vadd.f32 %v3513, %v3514
        %v3516 = vrot.slane %v3515, 1
        %v3517 = vadd.f32 %v3515, %v3516
        %v3518 = vrot.slane %v3353, 4
        %v3519 = vadd.f32 %v3353, %v3518
        %v3520 = vrot.slane %v3519, 2
        %v3521 = vadd.f32 %v3519, %v3520
        %v3522 = vrot.slane %v3521, 1
        %v3523 = vadd.f32 %v3521, %v3522
        %v3524 = vrot.slane %v3358, 4
        %v3525 = vadd.f32 %v3358, %v3524
        %v3526 = vrot.slane %v3525, 2
        %v3527 = vadd.f32 %v3525, %v3526
        %v3528 = vrot.slane %v3527, 1
        %v3529 = vadd.f32 %v3527, %v3528
        %v3530 = vrot.slane %v3361, 4
        %v3531 = vadd.f32 %v3361, %v3530
        %v3532 = vrot.slane %v3531, 2
        %v3533 = vadd.f32 %v3531, %v3532
        %v3534 = vrot.slane %v3533, 1
        %v3535 = vadd.f32 %v3533, %v3534
        %v3536 = vrot.slane %v3366, 4
        %v3537 = vadd.f32 %v3366, %v3536
        %v3538 = vrot.slane %v3537, 2
        %v3539 = vadd.f32 %v3537, %v3538
        %v3540 = vrot.slane %v3539, 1
        %v3541 = vadd.f32 %v3539, %v3540
        %v3542 = vrot.slane %v3369, 4
        %v3543 = vadd.f32 %v3369, %v3542
        %v3544 = vrot.slane %v3543, 2
        %v3545 = vadd.f32 %v3543, %v3544
        %v3546 = vrot.slane %v3545, 1
        %v3547 = vadd.f32 %v3545, %v3546
        %v3548 = vrot.slane %v3374, 4
        %v3549 = vadd.f32 %v3374, %v3548
        %v3550 = vrot.slane %v3549, 2
        %v3551 = vadd.f32 %v3549, %v3550
        %v3552 = vrot.slane %v3551, 1
        %v3553 = vadd.f32 %v3551, %v3552
        %v3554 = vrot.slane %v3377, 4
        %v3555 = vadd.f32 %v3377, %v3554
        %v3556 = vrot.slane %v3555, 2
        %v3557 = vadd.f32 %v3555, %v3556
        %v3558 = vrot.slane %v3557, 1
        %v3559 = vadd.f32 %v3557, %v3558
        %v3560 = vrot.slane %v3382, 4
        %v3561 = vadd.f32 %v3382, %v3560
        %v3562 = vrot.slane %v3561, 2
        %v3563 = vadd.f32 %v3561, %v3562
        %v3564 = vrot.slane %v3563, 1
        %v3565 = vadd.f32 %v3563, %v3564
        %v3566 = vrot.slane %v3385, 4
        %v3567 = vadd.f32 %v3385, %v3566
        %v3568 = vrot.slane %v3567, 2
        %v3569 = vadd.f32 %v3567, %v3568
        %v3570 = vrot.slane %v3569, 1
        %v3571 = vadd.f32 %v3569, %v3570
        %v3572 = vrot.slane %v3390, 4
        %v3573 = vadd.f32 %v3390, %v3572
        %v3574 = vrot.slane %v3573, 2
        %v3575 = vadd.f32 %v3573, %v3574
        %v3576 = vrot.slane %v3575, 1
        %v3577 = vadd.f32 %v3575, %v3576
        %v3578 = vrot.slane %v3393, 4
        %v3579 = vadd.f32 %v3393, %v3578
        %v3580 = vrot.slane %v3579, 2
        %v3581 = vadd.f32 %v3579, %v3580
        %v3582 = vrot.slane %v3581, 1
        %v3583 = vadd.f32 %v3581, %v3582
        %v3584 = vrot.slane %v3398, 4
        %v3585 = vadd.f32 %v3398, %v3584
        %v3586 = vrot.slane %v3585, 2
        %v3587 = vadd.f32 %v3585, %v3586
        %v3588 = vrot.slane %v3587, 1
        %v3589 = vadd.f32 %v3587, %v3588
        %v3590 = vrot.slane %v3401, 4
        %v3591 = vadd.f32 %v3401, %v3590
        %v3592 = vrot.slane %v3591, 2
        %v3593 = vadd.f32 %v3591, %v3592
        %v3594 = vrot.slane %v3593, 1
        %v3595 = vadd.f32 %v3593, %v3594
        %v3596 = vmul.f32 %v3409, %v2418
        %v3597 = vmul.f32 %v3415, %v2418
        %v3598 = vmul.f32 %v3421, %v2418
        %v3599 = vmul.f32 %v3427, %v2418
        %v3600 = vmul.f32 %v3433, %v2418
        %v3601 = vmul.f32 %v3439, %v2418
        %v3602 = vmul.f32 %v3445, %v2418
        %v3603 = vmul.f32 %v3451, %v2418
        %v3604 = vmul.f32 %v3457, %v2418
        %v3605 = vmul.f32 %v3463, %v2418
        %v3606 = vmul.f32 %v3469, %v2418
        %v3607 = vmul.f32 %v3475, %v2418
        %v3608 = vmul.f32 %v3481, %v2418
        %v3609 = vmul.f32 %v3487, %v2418
        %v3610 = vmul.f32 %v3493, %v2418
        %v3611 = vmul.f32 %v3499, %v2418
        %v3612 = vmul.f32 %v3505, %v2418
        %v3613 = vmul.f32 %v3511, %v2418
        %v3614 = vmul.f32 %v3517, %v2418
        %v3615 = vmul.f32 %v3523, %v2418
        %v3616 = vmul.f32 %v3529, %v2418
        %v3617 = vmul.f32 %v3535, %v2418
        %v3618 = vmul.f32 %v3541, %v2418
        %v3619 = vmul.f32 %v3547, %v2418
        %v3620 = vmul.f32 %v3553, %v2418
        %v3621 = vmul.f32 %v3559, %v2418
        %v3622 = vmul.f32 %v3565, %v2418
        %v3623 = vmul.f32 %v3571, %v2418
        %v3624 = vmul.f32 %v3577, %v2418
        %v3625 = vmul.f32 %v3583, %v2418
        %v3626 = vmul.f32 %v3589, %v2418
        %v3627 = vmul.f32 %v3595, %v2418
        %v3628 = vsub.f32 %v3278, %v3596
        %v3629 = vsub.f32 %v3281, %v3597
        %v3630 = vsub.f32 %v3286, %v3598
        %v3631 = vsub.f32 %v3289, %v3599
        %v3632 = vsub.f32 %v3294, %v3600
        %v3633 = vsub.f32 %v3297, %v3601
        %v3634 = vsub.f32 %v3302, %v3602
        %v3635 = vsub.f32 %v3305, %v3603
        %v3636 = vsub.f32 %v3310, %v3604
        %v3637 = vsub.f32 %v3313, %v3605
        %v3638 = vsub.f32 %v3318, %v3606
        %v3639 = vsub.f32 %v3321, %v3607
        %v3640 = vsub.f32 %v3326, %v3608
        %v3641 = vsub.f32 %v3329, %v3609
        %v3642 = vsub.f32 %v3334, %v3610
        %v3643 = vsub.f32 %v3337, %v3611
        %v3644 = vsub.f32 %v3342, %v3612
        %v3645 = vsub.f32 %v3345, %v3613
        %v3646 = vsub.f32 %v3350, %v3614
        %v3647 = vsub.f32 %v3353, %v3615
        %v3648 = vsub.f32 %v3358, %v3616
        %v3649 = vsub.f32 %v3361, %v3617
        %v3650 = vsub.f32 %v3366, %v3618
        %v3651 = vsub.f32 %v3369, %v3619
        %v3652 = vsub.f32 %v3374, %v3620
        %v3653 = vsub.f32 %v3377, %v3621
        %v3654 = vsub.f32 %v3382, %v3622
        %v3655 = vsub.f32 %v3385, %v3623
        %v3656 = vsub.f32 %v3390, %v3624
        %v3657 = vsub.f32 %v3393, %v3625
        %v3658 = vsub.f32 %v3398, %v3626
        %v3659 = vsub.f32 %v3401, %v3627
        %v3660 = vmul.f32 %v3628, %v3628
        %v3661 = vmul.f32 %v3629, %v3629
        %v3662 = vmul.f32 %v3630, %v3630
        %v3663 = vmul.f32 %v3631, %v3631
        %v3664 = vmul.f32 %v3632, %v3632
        %v3665 = vmul.f32 %v3633, %v3633
        %v3666 = vmul.f32 %v3634, %v3634
        %v3667 = vmul.f32 %v3635, %v3635
        %v3668 = vmul.f32 %v3636, %v3636
        %v3669 = vmul.f32 %v3637, %v3637
        %v3670 = vmul.f32 %v3638, %v3638
        %v3671 = vmul.f32 %v3639, %v3639
        %v3672 = vmul.f32 %v3640, %v3640
        %v3673 = vmul.f32 %v3641, %v3641
        %v3674 = vmul.f32 %v3642, %v3642
        %v3675 = vmul.f32 %v3643, %v3643
        %v3676 = vmul.f32 %v3644, %v3644
        %v3677 = vmul.f32 %v3645, %v3645
        %v3678 = vmul.f32 %v3646, %v3646
        %v3679 = vmul.f32 %v3647, %v3647
        %v3680 = vmul.f32 %v3648, %v3648
        %v3681 = vmul.f32 %v3649, %v3649
        %v3682 = vmul.f32 %v3650, %v3650
        %v3683 = vmul.f32 %v3651, %v3651
        %v3684 = vmul.f32 %v3652, %v3652
        %v3685 = vmul.f32 %v3653, %v3653
        %v3686 = vmul.f32 %v3654, %v3654
        %v3687 = vmul.f32 %v3655, %v3655
        %v3688 = vmul.f32 %v3656, %v3656
        %v3689 = vmul.f32 %v3657, %v3657
        %v3690 = vmul.f32 %v3658, %v3658
        %v3691 = vmul.f32 %v3659, %v3659
        %v3692 = vrot.slane %v3660, 4
        %v3693 = vadd.f32 %v3660, %v3692
        %v3694 = vrot.slane %v3693, 2
        %v3695 = vadd.f32 %v3693, %v3694
        %v3696 = vrot.slane %v3695, 1
        %v3697 = vadd.f32 %v3695, %v3696
        %v3698 = vrot.slane %v3661, 4
        %v3699 = vadd.f32 %v3661, %v3698
        %v3700 = vrot.slane %v3699, 2
        %v3701 = vadd.f32 %v3699, %v3700
        %v3702 = vrot.slane %v3701, 1
        %v3703 = vadd.f32 %v3701, %v3702
        %v3704 = vrot.slane %v3662, 4
        %v3705 = vadd.f32 %v3662, %v3704
        %v3706 = vrot.slane %v3705, 2
        %v3707 = vadd.f32 %v3705, %v3706
        %v3708 = vrot.slane %v3707, 1
        %v3709 = vadd.f32 %v3707, %v3708
        %v3710 = vrot.slane %v3663, 4
        %v3711 = vadd.f32 %v3663, %v3710
        %v3712 = vrot.slane %v3711, 2
        %v3713 = vadd.f32 %v3711, %v3712
        %v3714 = vrot.slane %v3713, 1
        %v3715 = vadd.f32 %v3713, %v3714
        %v3716 = vrot.slane %v3664, 4
        %v3717 = vadd.f32 %v3664, %v3716
        %v3718 = vrot.slane %v3717, 2
        %v3719 = vadd.f32 %v3717, %v3718
        %v3720 = vrot.slane %v3719, 1
        %v3721 = vadd.f32 %v3719, %v3720
        %v3722 = vrot.slane %v3665, 4
        %v3723 = vadd.f32 %v3665, %v3722
        %v3724 = vrot.slane %v3723, 2
        %v3725 = vadd.f32 %v3723, %v3724
        %v3726 = vrot.slane %v3725, 1
        %v3727 = vadd.f32 %v3725, %v3726
        %v3728 = vrot.slane %v3666, 4
        %v3729 = vadd.f32 %v3666, %v3728
        %v3730 = vrot.slane %v3729, 2
        %v3731 = vadd.f32 %v3729, %v3730
        %v3732 = vrot.slane %v3731, 1
        %v3733 = vadd.f32 %v3731, %v3732
        %v3734 = vrot.slane %v3667, 4
        %v3735 = vadd.f32 %v3667, %v3734
        %v3736 = vrot.slane %v3735, 2
        %v3737 = vadd.f32 %v3735, %v3736
        %v3738 = vrot.slane %v3737, 1
        %v3739 = vadd.f32 %v3737, %v3738
        %v3740 = vrot.slane %v3668, 4
        %v3741 = vadd.f32 %v3668, %v3740
        %v3742 = vrot.slane %v3741, 2
        %v3743 = vadd.f32 %v3741, %v3742
        %v3744 = vrot.slane %v3743, 1
        %v3745 = vadd.f32 %v3743, %v3744
        %v3746 = vrot.slane %v3669, 4
        %v3747 = vadd.f32 %v3669, %v3746
        %v3748 = vrot.slane %v3747, 2
        %v3749 = vadd.f32 %v3747, %v3748
        %v3750 = vrot.slane %v3749, 1
        %v3751 = vadd.f32 %v3749, %v3750
        %v3752 = vrot.slane %v3670, 4
        %v3753 = vadd.f32 %v3670, %v3752
        %v3754 = vrot.slane %v3753, 2
        %v3755 = vadd.f32 %v3753, %v3754
        %v3756 = vrot.slane %v3755, 1
        %v3757 = vadd.f32 %v3755, %v3756
        %v3758 = vrot.slane %v3671, 4
        %v3759 = vadd.f32 %v3671, %v3758
        %v3760 = vrot.slane %v3759, 2
        %v3761 = vadd.f32 %v3759, %v3760
        %v3762 = vrot.slane %v3761, 1
        %v3763 = vadd.f32 %v3761, %v3762
        %v3764 = vrot.slane %v3672, 4
        %v3765 = vadd.f32 %v3672, %v3764
        %v3766 = vrot.slane %v3765, 2
        %v3767 = vadd.f32 %v3765, %v3766
        %v3768 = vrot.slane %v3767, 1
        %v3769 = vadd.f32 %v3767, %v3768
        %v3770 = vrot.slane %v3673, 4
        %v3771 = vadd.f32 %v3673, %v3770
        %v3772 = vrot.slane %v3771, 2
        %v3773 = vadd.f32 %v3771, %v3772
        %v3774 = vrot.slane %v3773, 1
        %v3775 = vadd.f32 %v3773, %v3774
        %v3776 = vrot.slane %v3674, 4
        %v3777 = vadd.f32 %v3674, %v3776
        %v3778 = vrot.slane %v3777, 2
        %v3779 = vadd.f32 %v3777, %v3778
        %v3780 = vrot.slane %v3779, 1
        %v3781 = vadd.f32 %v3779, %v3780
        %v3782 = vrot.slane %v3675, 4
        %v3783 = vadd.f32 %v3675, %v3782
        %v3784 = vrot.slane %v3783, 2
        %v3785 = vadd.f32 %v3783, %v3784
        %v3786 = vrot.slane %v3785, 1
        %v3787 = vadd.f32 %v3785, %v3786
        %v3788 = vrot.slane %v3676, 4
        %v3789 = vadd.f32 %v3676, %v3788
        %v3790 = vrot.slane %v3789, 2
        %v3791 = vadd.f32 %v3789, %v3790
        %v3792 = vrot.slane %v3791, 1
        %v3793 = vadd.f32 %v3791, %v3792
        %v3794 = vrot.slane %v3677, 4
        %v3795 = vadd.f32 %v3677, %v3794
        %v3796 = vrot.slane %v3795, 2
        %v3797 = vadd.f32 %v3795, %v3796
        %v3798 = vrot.slane %v3797, 1
        %v3799 = vadd.f32 %v3797, %v3798
        %v3800 = vrot.slane %v3678, 4
        %v3801 = vadd.f32 %v3678, %v3800
        %v3802 = vrot.slane %v3801, 2
        %v3803 = vadd.f32 %v3801, %v3802
        %v3804 = vrot.slane %v3803, 1
        %v3805 = vadd.f32 %v3803, %v3804
        %v3806 = vrot.slane %v3679, 4
        %v3807 = vadd.f32 %v3679, %v3806
        %v3808 = vrot.slane %v3807, 2
        %v3809 = vadd.f32 %v3807, %v3808
        %v3810 = vrot.slane %v3809, 1
        %v3811 = vadd.f32 %v3809, %v3810
        %v3812 = vrot.slane %v3680, 4
        %v3813 = vadd.f32 %v3680, %v3812
        %v3814 = vrot.slane %v3813, 2
        %v3815 = vadd.f32 %v3813, %v3814
        %v3816 = vrot.slane %v3815, 1
        %v3817 = vadd.f32 %v3815, %v3816
        %v3818 = vrot.slane %v3681, 4
        %v3819 = vadd.f32 %v3681, %v3818
        %v3820 = vrot.slane %v3819, 2
        %v3821 = vadd.f32 %v3819, %v3820
        %v3822 = vrot.slane %v3821, 1
        %v3823 = vadd.f32 %v3821, %v3822
        %v3824 = vrot.slane %v3682, 4
        %v3825 = vadd.f32 %v3682, %v3824
        %v3826 = vrot.slane %v3825, 2
        %v3827 = vadd.f32 %v3825, %v3826
        %v3828 = vrot.slane %v3827, 1
        %v3829 = vadd.f32 %v3827, %v3828
        %v3830 = vrot.slane %v3683, 4
        %v3831 = vadd.f32 %v3683, %v3830
        %v3832 = vrot.slane %v3831, 2
        %v3833 = vadd.f32 %v3831, %v3832
        %v3834 = vrot.slane %v3833, 1
        %v3835 = vadd.f32 %v3833, %v3834
        %v3836 = vrot.slane %v3684, 4
        %v3837 = vadd.f32 %v3684, %v3836
        %v3838 = vrot.slane %v3837, 2
        %v3839 = vadd.f32 %v3837, %v3838
        %v3840 = vrot.slane %v3839, 1
        %v3841 = vadd.f32 %v3839, %v3840
        %v3842 = vrot.slane %v3685, 4
        %v3843 = vadd.f32 %v3685, %v3842
        %v3844 = vrot.slane %v3843, 2
        %v3845 = vadd.f32 %v3843, %v3844
        %v3846 = vrot.slane %v3845, 1
        %v3847 = vadd.f32 %v3845, %v3846
        %v3848 = vrot.slane %v3686, 4
        %v3849 = vadd.f32 %v3686, %v3848
        %v3850 = vrot.slane %v3849, 2
        %v3851 = vadd.f32 %v3849, %v3850
        %v3852 = vrot.slane %v3851, 1
        %v3853 = vadd.f32 %v3851, %v3852
        %v3854 = vrot.slane %v3687, 4
        %v3855 = vadd.f32 %v3687, %v3854
        %v3856 = vrot.slane %v3855, 2
        %v3857 = vadd.f32 %v3855, %v3856
        %v3858 = vrot.slane %v3857, 1
        %v3859 = vadd.f32 %v3857, %v3858
        %v3860 = vrot.slane %v3688, 4
        %v3861 = vadd.f32 %v3688, %v3860
        %v3862 = vrot.slane %v3861, 2
        %v3863 = vadd.f32 %v3861, %v3862
        %v3864 = vrot.slane %v3863, 1
        %v3865 = vadd.f32 %v3863, %v3864
        %v3866 = vrot.slane %v3689, 4
        %v3867 = vadd.f32 %v3689, %v3866
        %v3868 = vrot.slane %v3867, 2
        %v3869 = vadd.f32 %v3867, %v3868
        %v3870 = vrot.slane %v3869, 1
        %v3871 = vadd.f32 %v3869, %v3870
        %v3872 = vrot.slane %v3690, 4
        %v3873 = vadd.f32 %v3690, %v3872
        %v3874 = vrot.slane %v3873, 2
        %v3875 = vadd.f32 %v3873, %v3874
        %v3876 = vrot.slane %v3875, 1
        %v3877 = vadd.f32 %v3875, %v3876
        %v3878 = vrot.slane %v3691, 4
        %v3879 = vadd.f32 %v3691, %v3878
        %v3880 = vrot.slane %v3879, 2
        %v3881 = vadd.f32 %v3879, %v3880
        %v3882 = vrot.slane %v3881, 1
        %v3883 = vadd.f32 %v3881, %v3882
        %v3884 = vmul.f32 %v3697, %v2418
        %v3885 = vmul.f32 %v3703, %v2418
        %v3886 = vmul.f32 %v3709, %v2418
        %v3887 = vmul.f32 %v3715, %v2418
        %v3888 = vmul.f32 %v3721, %v2418
        %v3889 = vmul.f32 %v3727, %v2418
        %v3890 = vmul.f32 %v3733, %v2418
        %v3891 = vmul.f32 %v3739, %v2418
        %v3892 = vmul.f32 %v3745, %v2418
        %v3893 = vmul.f32 %v3751, %v2418
        %v3894 = vmul.f32 %v3757, %v2418
        %v3895 = vmul.f32 %v3763, %v2418
        %v3896 = vmul.f32 %v3769, %v2418
        %v3897 = vmul.f32 %v3775, %v2418
        %v3898 = vmul.f32 %v3781, %v2418
        %v3899 = vmul.f32 %v3787, %v2418
        %v3900 = vmul.f32 %v3793, %v2418
        %v3901 = vmul.f32 %v3799, %v2418
        %v3902 = vmul.f32 %v3805, %v2418
        %v3903 = vmul.f32 %v3811, %v2418
        %v3904 = vmul.f32 %v3817, %v2418
        %v3905 = vmul.f32 %v3823, %v2418
        %v3906 = vmul.f32 %v3829, %v2418
        %v3907 = vmul.f32 %v3835, %v2418
        %v3908 = vmul.f32 %v3841, %v2418
        %v3909 = vmul.f32 %v3847, %v2418
        %v3910 = vmul.f32 %v3853, %v2418
        %v3911 = vmul.f32 %v3859, %v2418
        %v3912 = vmul.f32 %v3865, %v2418
        %v3913 = vmul.f32 %v3871, %v2418
        %v3914 = vmul.f32 %v3877, %v2418
        %v3915 = vmul.f32 %v3883, %v2418
        %v3916 = vadd.f32 %v3884, 1e-05
        %v3917 = vadd.f32 %v3885, 1e-05
        %v3918 = vadd.f32 %v3886, 1e-05
        %v3919 = vadd.f32 %v3887, 1e-05
        %v3920 = vadd.f32 %v3888, 1e-05
        %v3921 = vadd.f32 %v3889, 1e-05
        %v3922 = vadd.f32 %v3890, 1e-05
        %v3923 = vadd.f32 %v3891, 1e-05
        %v3924 = vadd.f32 %v3892, 1e-05
        %v3925 = vadd.f32 %v3893, 1e-05
        %v3926 = vadd.f32 %v3894, 1e-05
        %v3927 = vadd.f32 %v3895, 1e-05
        %v3928 = vadd.f32 %v3896, 1e-05
        %v3929 = vadd.f32 %v3897, 1e-05
        %v3930 = vadd.f32 %v3898, 1e-05
        %v3931 = vadd.f32 %v3899, 1e-05
        %v3932 = vadd.f32 %v3900, 1e-05
        %v3933 = vadd.f32 %v3901, 1e-05
        %v3934 = vadd.f32 %v3902, 1e-05
        %v3935 = vadd.f32 %v3903, 1e-05
        %v3936 = vadd.f32 %v3904, 1e-05
        %v3937 = vadd.f32 %v3905, 1e-05
        %v3938 = vadd.f32 %v3906, 1e-05
        %v3939 = vadd.f32 %v3907, 1e-05
        %v3940 = vadd.f32 %v3908, 1e-05
        %v3941 = vadd.f32 %v3909, 1e-05
        %v3942 = vadd.f32 %v3910, 1e-05
        %v3943 = vadd.f32 %v3911, 1e-05
        %v3944 = vadd.f32 %v3912, 1e-05
        %v3945 = vadd.f32 %v3913, 1e-05
        %v3946 = vadd.f32 %v3914, 1e-05
        %v3947 = vadd.f32 %v3915, 1e-05
        %v3948 = vrsqrt.pop %v3916
        %v3949 = vrsqrt.pop %v3917
        %v3950 = vrsqrt.pop %v3918
        %v3951 = vrsqrt.pop %v3919
        %v3952 = vrsqrt.pop %v3920
        %v3953 = vrsqrt.pop %v3921
        %v3954 = vrsqrt.pop %v3922
        %v3955 = vrsqrt.pop %v3923
        %v3956 = vrsqrt.pop %v3924
        %v3957 = vrsqrt.pop %v3925
        %v3958 = vrsqrt.pop %v3926
        %v3959 = vrsqrt.pop %v3927
        %v3960 = vrsqrt.pop %v3928
        %v3961 = vrsqrt.pop %v3929
        %v3962 = vrsqrt.pop %v3930
        %v3963 = vrsqrt.pop %v3931
        %v3964 = vrsqrt.pop %v3932
        %v3965 = vrsqrt.pop %v3933
        %v3966 = vrsqrt.pop %v3934
        %v3967 = vrsqrt.pop %v3935
        %v3968 = vrsqrt.pop %v3936
        %v3969 = vrsqrt.pop %v3937
        %v3970 = vrsqrt.pop %v3938
        %v3971 = vrsqrt.pop %v3939
        %v3972 = vrsqrt.pop %v3940
        %v3973 = vrsqrt.pop %v3941
        %v3974 = vrsqrt.pop %v3942
        %v3975 = vrsqrt.pop %v3943
        %v3976 = vrsqrt.pop %v3944
        %v3977 = vrsqrt.pop %v3945
        %v3978 = vrsqrt.pop %v3946
        %v3979 = vrsqrt.pop %v3947
        %v3980 = vmul.f32 %v295, %v3948
        %v3981 = vmul.f32 %v295, %v3949
        %v3982 = vmul.f32 %v295, %v3950
        %v3983 = vmul.f32 %v295, %v3951
        %v3984 = vmul.f32 %v295, %v3952
        %v3985 = vmul.f32 %v295, %v3953
        %v3986 = vmul.f32 %v295, %v3954
        %v3987 = vmul.f32 %v295, %v3955
        %v3988 = vmul.f32 %v295, %v3956
        %v3989 = vmul.f32 %v295, %v3957
        %v3990 = vmul.f32 %v295, %v3958
        %v3991 = vmul.f32 %v295, %v3959
        %v3992 = vmul.f32 %v295, %v3960
        %v3993 = vmul.f32 %v295, %v3961
        %v3994 = vmul.f32 %v295, %v3962
        %v3995 = vmul.f32 %v295, %v3963
        %v3996 = vmul.f32 %v295, %v3964
        %v3997 = vmul.f32 %v295, %v3965
        %v3998 = vmul.f32 %v295, %v3966
        %v3999 = vmul.f32 %v295, %v3967
        %v4000 = vmul.f32 %v295, %v3968
        %v4001 = vmul.f32 %v295, %v3969
        %v4002 = vmul.f32 %v295, %v3970
        %v4003 = vmul.f32 %v295, %v3971
        %v4004 = vmul.f32 %v295, %v3972
        %v4005 = vmul.f32 %v295, %v3973
        %v4006 = vmul.f32 %v295, %v3974
        %v4007 = vmul.f32 %v295, %v3975
        %v4008 = vmul.f32 %v295, %v3976
        %v4009 = vmul.f32 %v295, %v3977
        %v4010 = vmul.f32 %v295, %v3978
        %v4011 = vmul.f32 %v295, %v3979
        %v4012 = vlaneseq
        %v4013 = vshrl.u32 %v4012, 7
        %v4014 = vsub.s32 0, %v4013
        %v4015 = vrot.slane %v3980, %v4014
        %v4016 = vlaneseq
        %v4017 = vshrl.u32 %v4016, 7
        %v4018 = vsub.s32 0, %v4017
        %v4019 = vrot.slane %v3981, %v4018
        %v4020 = vlaneseq
        %v4021 = vshrl.u32 %v4020, 7
        %v4022 = vsub.s32 0, %v4021
        %v4023 = vrot.slane %v3982, %v4022
        %v4024 = vlaneseq
        %v4025 = vshrl.u32 %v4024, 7
        %v4026 = vsub.s32 0, %v4025
        %v4027 = vrot.slane %v3983, %v4026
        %v4028 = vlaneseq
        %v4029 = vshrl.u32 %v4028, 7
        %v4030 = vsub.s32 0, %v4029
        %v4031 = vrot.slane %v3984, %v4030
        %v4032 = vlaneseq
        %v4033 = vshrl.u32 %v4032, 7
        %v4034 = vsub.s32 0, %v4033
        %v4035 = vrot.slane %v3985, %v4034
        %v4036 = vlaneseq
        %v4037 = vshrl.u32 %v4036, 7
        %v4038 = vsub.s32 0, %v4037
        %v4039 = vrot.slane %v3986, %v4038
        %v4040 = vlaneseq
        %v4041 = vshrl.u32 %v4040, 7
        %v4042 = vsub.s32 0, %v4041
        %v4043 = vrot.slane %v3987, %v4042
        %v4044 = vlaneseq
        %v4045 = vshrl.u32 %v4044, 7
        %v4046 = vsub.s32 0, %v4045
        %v4047 = vrot.slane %v3988, %v4046
        %v4048 = vlaneseq
        %v4049 = vshrl.u32 %v4048, 7
        %v4050 = vsub.s32 0, %v4049
        %v4051 = vrot.slane %v3989, %v4050
        %v4052 = vlaneseq
        %v4053 = vshrl.u32 %v4052, 7
        %v4054 = vsub.s32 0, %v4053
        %v4055 = vrot.slane %v3990, %v4054
        %v4056 = vlaneseq
        %v4057 = vshrl.u32 %v4056, 7
        %v4058 = vsub.s32 0, %v4057
        %v4059 = vrot.slane %v3991, %v4058
        %v4060 = vlaneseq
        %v4061 = vshrl.u32 %v4060, 7
        %v4062 = vsub.s32 0, %v4061
        %v4063 = vrot.slane %v3992, %v4062
        %v4064 = vlaneseq
        %v4065 = vshrl.u32 %v4064, 7
        %v4066 = vsub.s32 0, %v4065
        %v4067 = vrot.slane %v3993, %v4066
        %v4068 = vlaneseq
        %v4069 = vshrl.u32 %v4068, 7
        %v4070 = vsub.s32 0, %v4069
        %v4071 = vrot.slane %v3994, %v4070
        %v4072 = vlaneseq
        %v4073 = vshrl.u32 %v4072, 7
        %v4074 = vsub.s32 0, %v4073
        %v4075 = vrot.slane %v3995, %v4074
        %v4076 = vlaneseq
        %v4077 = vshrl.u32 %v4076, 7
        %v4078 = vsub.s32 0, %v4077
        %v4079 = vrot.slane %v3996, %v4078
        %v4080 = vlaneseq
        %v4081 = vshrl.u32 %v4080, 7
        %v4082 = vsub.s32 0, %v4081
        %v4083 = vrot.slane %v3997, %v4082
        %v4084 = vlaneseq
        %v4085 = vshrl.u32 %v4084, 7
        %v4086 = vsub.s32 0, %v4085
        %v4087 = vrot.slane %v3998, %v4086
        %v4088 = vlaneseq
        %v4089 = vshrl.u32 %v4088, 7
        %v4090 = vsub.s32 0, %v4089
        %v4091 = vrot.slane %v3999, %v4090
        %v4092 = vlaneseq
        %v4093 = vshrl.u32 %v4092, 7
        %v4094 = vsub.s32 0, %v4093
        %v4095 = vrot.slane %v4000, %v4094
        %v4096 = vlaneseq
        %v4097 = vshrl.u32 %v4096, 7
        %v4098 = vsub.s32 0, %v4097
        %v4099 = vrot.slane %v4001, %v4098
        %v4100 = vlaneseq
        %v4101 = vshrl.u32 %v4100, 7
        %v4102 = vsub.s32 0, %v4101
        %v4103 = vrot.slane %v4002, %v4102
        %v4104 = vlaneseq
        %v4105 = vshrl.u32 %v4104, 7
        %v4106 = vsub.s32 0, %v4105
        %v4107 = vrot.slane %v4003, %v4106
        %v4108 = vlaneseq
        %v4109 = vshrl.u32 %v4108, 7
        %v4110 = vsub.s32 0, %v4109
        %v4111 = vrot.slane %v4004, %v4110
        %v4112 = vlaneseq
        %v4113 = vshrl.u32 %v4112, 7
        %v4114 = vsub.s32 0, %v4113
        %v4115 = vrot.slane %v4005, %v4114
        %v4116 = vlaneseq
        %v4117 = vshrl.u32 %v4116, 7
        %v4118 = vsub.s32 0, %v4117
        %v4119 = vrot.slane %v4006, %v4118
        %v4120 = vlaneseq
        %v4121 = vshrl.u32 %v4120, 7
        %v4122 = vsub.s32 0, %v4121
        %v4123 = vrot.slane %v4007, %v4122
        %v4124 = vlaneseq
        %v4125 = vshrl.u32 %v4124, 7
        %v4126 = vsub.s32 0, %v4125
        %v4127 = vrot.slane %v4008, %v4126
        %v4128 = vlaneseq
        %v4129 = vshrl.u32 %v4128, 7
        %v4130 = vsub.s32 0, %v4129
        %v4131 = vrot.slane %v4009, %v4130
        %v4132 = vlaneseq
        %v4133 = vshrl.u32 %v4132, 7
        %v4134 = vsub.s32 0, %v4133
        %v4135 = vrot.slane %v4010, %v4134
        %v4136 = vlaneseq
        %v4137 = vshrl.u32 %v4136, 7
        %v4138 = vsub.s32 0, %v4137
        %v4139 = vrot.slane %v4011, %v4138
        %v4140 = vmul.f32 %v3628, %v4015
        %v4141 = vmul.f32 %v3629, %v4019
        %v4142 = vmul.f32 %v3630, %v4023
        %v4143 = vmul.f32 %v3631, %v4027
        %v4144 = vmul.f32 %v3632, %v4031
        %v4145 = vmul.f32 %v3633, %v4035
        %v4146 = vmul.f32 %v3634, %v4039
        %v4147 = vmul.f32 %v3635, %v4043
        %v4148 = vmul.f32 %v3636, %v4047
        %v4149 = vmul.f32 %v3637, %v4051
        %v4150 = vmul.f32 %v3638, %v4055
        %v4151 = vmul.f32 %v3639, %v4059
        %v4152 = vmul.f32 %v3640, %v4063
        %v4153 = vmul.f32 %v3641, %v4067
        %v4154 = vmul.f32 %v3642, %v4071
        %v4155 = vmul.f32 %v3643, %v4075
        %v4156 = vmul.f32 %v3644, %v4079
        %v4157 = vmul.f32 %v3645, %v4083
        %v4158 = vmul.f32 %v3646, %v4087
        %v4159 = vmul.f32 %v3647, %v4091
        %v4160 = vmul.f32 %v3648, %v4095
        %v4161 = vmul.f32 %v3649, %v4099
        %v4162 = vmul.f32 %v3650, %v4103
        %v4163 = vmul.f32 %v3651, %v4107
        %v4164 = vmul.f32 %v3652, %v4111
        %v4165 = vmul.f32 %v3653, %v4115
        %v4166 = vmul.f32 %v3654, %v4119
        %v4167 = vmul.f32 %v3655, %v4123
        %v4168 = vmul.f32 %v3656, %v4127
        %v4169 = vmul.f32 %v3657, %v4131
        %v4170 = vmul.f32 %v3658, %v4135
        %v4171 = vmul.f32 %v3659, %v4139
        %v4172 = vlaneseq
        %v4173 = vshrl.u32 %v4172, 7
        %v4174 = vsub.s32 0, %v4173
        %v4175 = vrot.slane %v296, %v4174
        %v4176 = vadd.f32 %v4140, %v4175
        %v4177 = vadd.f32 %v4141, %v4175
        %v4178 = vadd.f32 %v4142, %v4175
        %v4179 = vadd.f32 %v4143, %v4175
        %v4180 = vadd.f32 %v4144, %v4175
        %v4181 = vadd.f32 %v4145, %v4175
        %v4182 = vadd.f32 %v4146, %v4175
        %v4183 = vadd.f32 %v4147, %v4175
        %v4184 = vadd.f32 %v4148, %v4175
        %v4185 = vadd.f32 %v4149, %v4175
        %v4186 = vadd.f32 %v4150, %v4175
        %v4187 = vadd.f32 %v4151, %v4175
        %v4188 = vadd.f32 %v4152, %v4175
        %v4189 = vadd.f32 %v4153, %v4175
        %v4190 = vadd.f32 %v4154, %v4175
        %v4191 = vadd.f32 %v4155, %v4175
        %v4192 = vadd.f32 %v4156, %v4175
        %v4193 = vadd.f32 %v4157, %v4175
        %v4194 = vadd.f32 %v4158, %v4175
        %v4195 = vadd.f32 %v4159, %v4175
        %v4196 = vadd.f32 %v4160, %v4175
        %v4197 = vadd.f32 %v4161, %v4175
        %v4198 = vadd.f32 %v4162, %v4175
        %v4199 = vadd.f32 %v4163, %v4175
        %v4200 = vadd.f32 %v4164, %v4175
        %v4201 = vadd.f32 %v4165, %v4175
        %v4202 = vadd.f32 %v4166, %v4175
        %v4203 = vadd.f32 %v4167, %v4175
        %v4204 = vadd.f32 %v4168, %v4175
        %v4205 = vadd.f32 %v4169, %v4175
        %v4206 = vadd.f32 %v4170, %v4175
        %v4207 = vadd.f32 %v4171, %v4175
        %v4208 = vand.u32 2147483647, %v4176
        %v4209 = vand.u32 2147483647, %v4177
        %v4210 = vand.u32 2147483647, %v4178
        %v4211 = vand.u32 2147483647, %v4179
        %v4212 = vand.u32 2147483647, %v4180
        %v4213 = vand.u32 2147483647, %v4181
        %v4214 = vand.u32 2147483647, %v4182
        %v4215 = vand.u32 2147483647, %v4183
        %v4216 = vand.u32 2147483647, %v4184
        %v4217 = vand.u32 2147483647, %v4185
        %v4218 = vand.u32 2147483647, %v4186
        %v4219 = vand.u32 2147483647, %v4187
        %v4220 = vand.u32 2147483647, %v4188
        %v4221 = vand.u32 2147483647, %v4189
        %v4222 = vand.u32 2147483647, %v4190
        %v4223 = vand.u32 2147483647, %v4191
        %v4224 = vand.u32 2147483647, %v4192
        %v4225 = vand.u32 2147483647, %v4193
        %v4226 = vand.u32 2147483647, %v4194
        %v4227 = vand.u32 2147483647, %v4195
        %v4228 = vand.u32 2147483647, %v4196
        %v4229 = vand.u32 2147483647, %v4197
        %v4230 = vand.u32 2147483647, %v4198
        %v4231 = vand.u32 2147483647, %v4199
        %v4232 = vand.u32 2147483647, %v4200
        %v4233 = vand.u32 2147483647, %v4201
        %v4234 = vand.u32 2147483647, %v4202
        %v4235 = vand.u32 2147483647, %v4203
        %v4236 = vand.u32 2147483647, %v4204
        %v4237 = vand.u32 2147483647, %v4205
        %v4238 = vand.u32 2147483647, %v4206
        %v4239 = vand.u32 2147483647, %v4207
        %v4240 = vadd.f32 %v4208, 1.0
        %v4241 = vadd.f32 %v4209, 1.0
        %v4242 = vadd.f32 %v4210, 1.0
        %v4243 = vadd.f32 %v4211, 1.0
        %v4244 = vadd.f32 %v4212, 1.0
        %v4245 = vadd.f32 %v4213, 1.0
        %v4246 = vadd.f32 %v4214, 1.0
        %v4247 = vadd.f32 %v4215, 1.0
        %v4248 = vadd.f32 %v4216, 1.0
        %v4249 = vadd.f32 %v4217, 1.0
        %v4250 = vadd.f32 %v4218, 1.0
        %v4251 = vadd.f32 %v4219, 1.0
        %v4252 = vadd.f32 %v4220, 1.0
        %v4253 = vadd.f32 %v4221, 1.0
        %v4254 = vadd.f32 %v4222, 1.0
        %v4255 = vadd.f32 %v4223, 1.0
        %v4256 = vadd.f32 %v4224, 1.0
        %v4257 = vadd.f32 %v4225, 1.0
        %v4258 = vadd.f32 %v4226, 1.0
        %v4259 = vadd.f32 %v4227, 1.0
        %v4260 = vadd.f32 %v4228, 1.0
        %v4261 = vadd.f32 %v4229, 1.0
        %v4262 = vadd.f32 %v4230, 1.0
        %v4263 = vadd.f32 %v4231, 1.0
        %v4264 = vadd.f32 %v4232, 1.0
        %v4265 = vadd.f32 %v4233, 1.0
        %v4266 = vadd.f32 %v4234, 1.0
        %v4267 = vadd.f32 %v4235, 1.0
        %v4268 = vadd.f32 %v4236, 1.0
        %v4269 = vadd.f32 %v4237, 1.0
        %v4270 = vadd.f32 %v4238, 1.0
        %v4271 = vadd.f32 %v4239, 1.0
        %v4272 = vrcp.pop %v4240
        %v4273 = vrcp.pop %v4241
        %v4274 = vrcp.pop %v4242
        %v4275 = vrcp.pop %v4243
        %v4276 = vrcp.pop %v4244
        %v4277 = vrcp.pop %v4245
        %v4278 = vrcp.pop %v4246
        %v4279 = vrcp.pop %v4247
        %v4280 = vrcp.pop %v4248
        %v4281 = vrcp.pop %v4249
        %v4282 = vrcp.pop %v4250
        %v4283 = vrcp.pop %v4251
        %v4284 = vrcp.pop %v4252
        %v4285 = vrcp.pop %v4253
        %v4286 = vrcp.pop %v4254
        %v4287 = vrcp.pop %v4255
        %v4288 = vrcp.pop %v4256
        %v4289 = vrcp.pop %v4257
        %v4290 = vrcp.pop %v4258
        %v4291 = vrcp.pop %v4259
        %v4292 = vrcp.pop %v4260
        %v4293 = vrcp.pop %v4261
        %v4294 = vrcp.pop %v4262
        %v4295 = vrcp.pop %v4263
        %v4296 = vrcp.pop %v4264
        %v4297 = vrcp.pop %v4265
        %v4298 = vrcp.pop %v4266
        %v4299 = vrcp.pop %v4267
        %v4300 = vrcp.pop %v4268
        %v4301 = vrcp.pop %v4269
        %v4302 = vrcp.pop %v4270
        %v4303 = vrcp.pop %v4271
        %v4304 = vmul.f32 %v4176, %v4272
        %v4305 = vmul.f32 %v4177, %v4273
        %v4306 = vmul.f32 %v4178, %v4274
        %v4307 = vmul.f32 %v4179, %v4275
        %v4308 = vmul.f32 %v4180, %v4276
        %v4309 = vmul.f32 %v4181, %v4277
        %v4310 = vmul.f32 %v4182, %v4278
        %v4311 = vmul.f32 %v4183, %v4279
        %v4312 = vmul.f32 %v4184, %v4280
        %v4313 = vmul.f32 %v4185, %v4281
        %v4314 = vmul.f32 %v4186, %v4282
        %v4315 = vmul.f32 %v4187, %v4283
        %v4316 = vmul.f32 %v4188, %v4284
        %v4317 = vmul.f32 %v4189, %v4285
        %v4318 = vmul.f32 %v4190, %v4286
        %v4319 = vmul.f32 %v4191, %v4287
        %v4320 = vmul.f32 %v4192, %v4288
        %v4321 = vmul.f32 %v4193, %v4289
        %v4322 = vmul.f32 %v4194, %v4290
        %v4323 = vmul.f32 %v4195, %v4291
        %v4324 = vmul.f32 %v4196, %v4292
        %v4325 = vmul.f32 %v4197, %v4293
        %v4326 = vmul.f32 %v4198, %v4294
        %v4327 = vmul.f32 %v4199, %v4295
        %v4328 = vmul.f32 %v4200, %v4296
        %v4329 = vmul.f32 %v4201, %v4297
        %v4330 = vmul.f32 %v4202, %v4298
        %v4331 = vmul.f32 %v4203, %v4299
        %v4332 = vmul.f32 %v4204, %v4300
        %v4333 = vmul.f32 %v4205, %v4301
        %v4334 = vmul.f32 %v4206, %v4302
        %v4335 = vmul.f32 %v4207, %v4303
        %v4336 = vpack.c.bf16 %v4305, %v4304
        %v4337 = vpack.c.bf16 %v4307, %v4306
        %v4338 = vpack.c.bf16 %v4309, %v4308
        %v4339 = vpack.c.bf16 %v4311, %v4310
        %v4340 = vpack.c.bf16 %v4313, %v4312
        %v4341 = vpack.c.bf16 %v4315, %v4314
        %v4342 = vpack.c.bf16 %v4317, %v4316
        %v4343 = vpack.c.bf16 %v4319, %v4318
        %v4344 = vpack.c.bf16 %v4321, %v4320
        %v4345 = vpack.c.bf16 %v4323, %v4322
        %v4346 = vpack.c.bf16 %v4325, %v4324
        %v4347 = vpack.c.bf16 %v4327, %v4326
        %v4348 = vpack.c.bf16 %v4329, %v4328
        %v4349 = vpack.c.bf16 %v4331, %v4330
        %v4350 = vpack.c.bf16 %v4333, %v4332
        %v4351 = vpack.c.bf16 %v4335, %v4334
        %v4352 = vld [vmem:[#allocation8] sm:$0xf]
        %v4353 = vld [vmem:[#allocation8 + $0x4] sm:$0xf]
        %v4354 = vld [vmem:[#allocation8 + $0x8] sm:$0xf]
        %v4355 = vld [vmem:[#allocation8 + $0xc] sm:$0xf]
        %v4356 = vld [vmem:[#allocation8 + $0x10] sm:$0xf]
        %v4357 = vld [vmem:[#allocation8 + $0x14] sm:$0xf]
        %v4358 = vld [vmem:[#allocation8 + $0x18] sm:$0xf]
        %v4359 = vld [vmem:[#allocation8 + $0x1c] sm:$0xf]
        %v4360 = vld [vmem:[#allocation8 + $0x20] sm:$0xf]
        %v4361 = vld [vmem:[#allocation8 + $0x24] sm:$0xf]
        %v4362 = vld [vmem:[#allocation8 + $0x28] sm:$0xf]
        %v4363 = vld [vmem:[#allocation8 + $0x2c] sm:$0xf]
        %v4364 = vld [vmem:[#allocation8 + $0x30] sm:$0xf]
        %v4365 = vld [vmem:[#allocation8 + $0x34] sm:$0xf]
        %v4366 = vld [vmem:[#allocation8 + $0x38] sm:$0xf]
        %v4367 = vld [vmem:[#allocation8 + $0x3c] sm:$0xf]
        %v4368 = vlaneseq
        %v4369 = vshrl.u32 %v4368, 7
        %v4370 = vsub.s32 0, %v4369
        %v4371 = vrot.slane %v297, %v4370
        %v4388 = vunpack.c.l.b16 %v4352
        %v4389 = vunpack.c.l.b16 %v4353
        %v4390 = vunpack.c.l.b16 %v4354
        %v4391 = vunpack.c.l.b16 %v4355
        %v4392 = vunpack.c.l.b16 %v4356
        %v4393 = vunpack.c.l.b16 %v4357
        %v4394 = vunpack.c.l.b16 %v4358
        %v4395 = vunpack.c.l.b16 %v4359
        %v4396 = vunpack.c.l.b16 %v4360
        %v4397 = vunpack.c.l.b16 %v4361
        %v4398 = vunpack.c.l.b16 %v4362
        %v4399 = vunpack.c.l.b16 %v4363
        %v4400 = vunpack.c.l.b16 %v4364
        %v4401 = vunpack.c.l.b16 %v4365
        %v4402 = vunpack.c.l.b16 %v4366
        %v4403 = vunpack.c.l.b16 %v4367
        %v4404 = vpack.c.b16 %v4389, %v4388
        %v4405 = vpack.c.b16 %v4391, %v4390
        %v4406 = vpack.c.b16 %v4393, %v4392
        %v4407 = vpack.c.b16 %v4395, %v4394
        %v4408 = vpack.c.b16 %v4397, %v4396
        %v4409 = vpack.c.b16 %v4399, %v4398
        %v4410 = vpack.c.b16 %v4401, %v4400
        %v4411 = vpack.c.b16 %v4403, %v4402
        %4420 = vmatprep.subr.bf16.mxu0 0
        %4421 = vmatpush1.bf16.msra.mxu0 %v4404
        %4422 = vmatprep.subr.bf16.mxu0 0
        %4423 = vmatpush1.bf16.msra.mxu0 %v4405
        %4424 = vmatprep.subr.bf16.mxu0 0
        %4425 = vmatpush1.bf16.msra.mxu0 %v4406
        %4426 = vmatprep.subr.bf16.mxu0 0
        %4427 = vmatpush1.bf16.msra.mxu0 %v4407
        %4428 = vmatprep.subr.bf16.mxu0 0
        %4429 = vmatpush1.bf16.msra.mxu0 %v4408
        %4430 = vmatprep.subr.bf16.mxu0 0
        %4431 = vmatpush1.bf16.msra.mxu0 %v4409
        %4432 = vmatprep.subr.bf16.mxu0 0
        %4433 = vmatpush1.bf16.msra.mxu0 %v4410
        %4434 = vmatprep.subr.bf16.mxu0 0
        %4435 = vmatpush1.bf16.msra.mxu0 %v4411
        %4436 = vmatprep.subr.bf16.mxu0 0
        %4437 = vmatpush1.bf16.msra.mxu0 0
        %4438 = vmatprep.subr.bf16.mxu0 0
        %4439 = vmatpush1.bf16.msra.mxu0 0
        %4440 = vmatprep.subr.bf16.mxu0 0
        %4441 = vmatpush1.bf16.msra.mxu0 0
        %4442 = vmatprep.subr.bf16.mxu0 0
        %4443 = vmatpush1.bf16.msra.mxu0 0
        %4444 = vmatprep.subr.bf16.mxu0 0
        %4445 = vmatpush1.bf16.msra.mxu0 0
        %4446 = vmatprep.subr.bf16.mxu0 0
        %4447 = vmatpush1.bf16.msra.mxu0 0
        %4448 = vmatprep.subr.bf16.mxu0 0
        %4449 = vmatpush1.bf16.msra.mxu0 0
        %4450 = vmatprep.subr.bf16.mxu0 0
        %4451 = vmatpush1.bf16.msra.mxu0 0
        %4452 = vmatprep.mubr.bf16.mxu0 0
        %4453 = vmatmul.mubr.bf16.gmra.mrb[0].mxu0 %v4336
        %v4454 = vpop.f32.mrb[0].mxu0
        %v4455 = vadd.f32 %v4371, %v4454
        %v4456 = vpop.f32.mrb[0].mxu0
        %v4457 = vpop.f32.mrb[0].mxu0
        %v4458 = vadd.f32 %v4371, %v4457
        %v4459 = vpop.f32.mrb[0].mxu0
        %4460 = vmatprep.mubr.bf16.mxu0 0
        %4461 = vmatmul.mubr.bf16.gmra.mrb[0].mxu0 %v4337
        %v4462 = vpop.f32.mrb[0].mxu0
        %v4463 = vadd.f32 %v4371, %v4462
        %v4464 = vpop.f32.mrb[0].mxu0
        %v4465 = vpop.f32.mrb[0].mxu0
        %v4466 = vadd.f32 %v4371, %v4465
        %v4467 = vpop.f32.mrb[0].mxu0
        %4468 = vmatprep.mubr.bf16.mxu0 0
        %4469 = vmatmul.mubr.bf16.gmra.mrb[0].mxu0 %v4338
        %v4470 = vpop.f32.mrb[0].mxu0
        %v4471 = vadd.f32 %v4371, %v4470
        %v4472 = vpop.f32.mrb[0].mxu0
        %v4473 = vpop.f32.mrb[0].mxu0
        %v4474 = vadd.f32 %v4371, %v4473
        %v4475 = vpop.f32.mrb[0].mxu0
        %4476 = vmatprep.mubr.bf16.mxu0 0
        %4477 = vmatmul.mubr.bf16.gmra.mrb[0].mxu0 %v4339
        %v4478 = vpop.f32.mrb[0].mxu0
        %v4479 = vadd.f32 %v4371, %v4478
        %v4480 = vpop.f32.mrb[0].mxu0
        %v4481 = vpop.f32.mrb[0].mxu0
        %v4482 = vadd.f32 %v4371, %v4481
        %v4483 = vpop.f32.mrb[0].mxu0
        %4484 = vmatprep.mubr.bf16.mxu0 0
        %4485 = vmatmul.mubr.bf16.gmra.mrb[0].mxu0 %v4340
        %v4486 = vpop.f32.mrb[0].mxu0
        %v4487 = vadd.f32 %v4371, %v4486
        %v4488 = vpop.f32.mrb[0].mxu0
        %v4489 = vpop.f32.mrb[0].mxu0
        %v4490 = vadd.f32 %v4371, %v4489
        %v4491 = vpop.f32.mrb[0].mxu0
        %4492 = vmatprep.mubr.bf16.mxu0 0
        %4493 = vmatmul.mubr.bf16.gmra.mrb[0].mxu0 %v4341
        %v4494 = vpop.f32.mrb[0].mxu0
        %v4495 = vadd.f32 %v4371, %v4494
        %v4496 = vpop.f32.mrb[0].mxu0
        %v4497 = vpop.f32.mrb[0].mxu0
        %v4498 = vadd.f32 %v4371, %v4497
        %v4499 = vpop.f32.mrb[0].mxu0
        %4500 = vmatprep.mubr.bf16.mxu0 0
        %4501 = vmatmul.mubr.bf16.gmra.mrb[0].mxu0 %v4342
        %v4502 = vpop.f32.mrb[0].mxu0
        %v4503 = vadd.f32 %v4371, %v4502
        %v4504 = vpop.f32.mrb[0].mxu0
        %v4505 = vpop.f32.mrb[0].mxu0
        %v4506 = vadd.f32 %v4371, %v4505
        %v4507 = vpop.f32.mrb[0].mxu0
        %4508 = vmatprep.mubr.bf16.mxu0 0
        %4509 = vmatmul.mubr.bf16.gmra.mrb[0].mxu0 %v4343
        %v4510 = vpop.f32.mrb[0].mxu0
        %v4511 = vadd.f32 %v4371, %v4510
        %v4512 = vpop.f32.mrb[0].mxu0
        %v4513 = vpop.f32.mrb[0].mxu0
        %v4514 = vadd.f32 %v4371, %v4513
        %v4515 = vpop.f32.mrb[0].mxu0
        %4516 = vmatprep.mubr.bf16.mxu0 0
        %4517 = vmatmul.mubr.bf16.gmra.mrb[0].mxu0 %v4344
        %v4518 = vpop.f32.mrb[0].mxu0
        %v4519 = vadd.f32 %v4371, %v4518
        %v4520 = vpop.f32.mrb[0].mxu0
        %v4521 = vpop.f32.mrb[0].mxu0
        %v4522 = vadd.f32 %v4371, %v4521
        %v4523 = vpop.f32.mrb[0].mxu0
        %4524 = vmatprep.mubr.bf16.mxu0 0
        %4525 = vmatmul.mubr.bf16.gmra.mrb[0].mxu0 %v4345
        %v4526 = vpop.f32.mrb[0].mxu0
        %v4527 = vadd.f32 %v4371, %v4526
        %v4528 = vpop.f32.mrb[0].mxu0
        %v4529 = vpop.f32.mrb[0].mxu0
        %v4530 = vadd.f32 %v4371, %v4529
        %v4531 = vpop.f32.mrb[0].mxu0
        %4532 = vmatprep.mubr.bf16.mxu0 0
        %4533 = vmatmul.mubr.bf16.gmra.mrb[0].mxu0 %v4346
        %v4534 = vpop.f32.mrb[0].mxu0
        %v4535 = vadd.f32 %v4371, %v4534
        %v4536 = vpop.f32.mrb[0].mxu0
        %v4537 = vpop.f32.mrb[0].mxu0
        %v4538 = vadd.f32 %v4371, %v4537
        %v4539 = vpop.f32.mrb[0].mxu0
        %4540 = vmatprep.mubr.bf16.mxu0 0
        %4541 = vmatmul.mubr.bf16.gmra.mrb[0].mxu0 %v4347
        %v4542 = vpop.f32.mrb[0].mxu0
        %v4543 = vadd.f32 %v4371, %v4542
        %v4544 = vpop.f32.mrb[0].mxu0
        %v4545 = vpop.f32.mrb[0].mxu0
        %v4546 = vadd.f32 %v4371, %v4545
        %v4547 = vpop.f32.mrb[0].mxu0
        %4548 = vmatprep.mubr.bf16.mxu0 0
        %4549 = vmatmul.mubr.bf16.gmra.mrb[0].mxu0 %v4348
        %v4550 = vpop.f32.mrb[0].mxu0
        %v4551 = vadd.f32 %v4371, %v4550
        %v4552 = vpop.f32.mrb[0].mxu0
        %v4553 = vpop.f32.mrb[0].mxu0
        %v4554 = vadd.f32 %v4371, %v4553
        %v4555 = vpop.f32.mrb[0].mxu0
        %4556 = vmatprep.mubr.bf16.mxu0 0
        %4557 = vmatmul.mubr.bf16.gmra.mrb[0].mxu0 %v4349
        %v4558 = vpop.f32.mrb[0].mxu0
        %v4559 = vadd.f32 %v4371, %v4558
        %v4560 = vpop.f32.mrb[0].mxu0
        %v4561 = vpop.f32.mrb[0].mxu0
        %v4562 = vadd.f32 %v4371, %v4561
        %v4563 = vpop.f32.mrb[0].mxu0
        %4564 = vmatprep.mubr.bf16.mxu0 0
        %4565 = vmatmul.mubr.bf16.gmra.mrb[0].mxu0 %v4350
        %v4566 = vpop.f32.mrb[0].mxu0
        %v4567 = vadd.f32 %v4371, %v4566
        %v4568 = vpop.f32.mrb[0].mxu0
        %v4569 = vpop.f32.mrb[0].mxu0
        %v4570 = vadd.f32 %v4371, %v4569
        %v4571 = vpop.f32.mrb[0].mxu0
        %4572 = vmatprep.mubr.bf16.mxu0 0
        %4573 = vmatmul.mubr.bf16.gmra.mrb[0].mxu0 %v4351
        %v4574 = vpop.f32.mrb[0].mxu0
        %v4575 = vadd.f32 %v4371, %v4574
        %v4576 = vpop.f32.mrb[0].mxu0
        %v4577 = vpop.f32.mrb[0].mxu0
        %v4578 = vadd.f32 %v4371, %v4577
        %v4579 = vpop.f32.mrb[0].mxu0
        %4580 = vdwg.mxu0
        %4581 = vst [vmem:[%s287] sm:$0xff] %v4455
        %4582 = vst [vmem:[%s287 + $0x8] sm:$0xff] %v4458
        %4583 = vst [vmem:[%s287 + $0x10] sm:$0xff] %v4463
        %4584 = vst [vmem:[%s287 + $0x18] sm:$0xff] %v4466
        %4585 = vst [vmem:[%s287 + $0x20] sm:$0xff] %v4471
        %4586 = vst [vmem:[%s287 + $0x28] sm:$0xff] %v4474
        %4587 = vst [vmem:[%s287 + $0x30] sm:$0xff] %v4479
        %4588 = vst [vmem:[%s287 + $0x38] sm:$0xff] %v4482
        %4589 = vst [vmem:[%s287 + $0x40] sm:$0xff] %v4487
        %4590 = vst [vmem:[%s287 + $0x48] sm:$0xff] %v4490
        %4591 = vst [vmem:[%s287 + $0x50] sm:$0xff] %v4495
        %4592 = vst [vmem:[%s287 + $0x58] sm:$0xff] %v4498
        %4593 = vst [vmem:[%s287 + $0x60] sm:$0xff] %v4503
        %4594 = vst [vmem:[%s287 + $0x68] sm:$0xff] %v4506
        %4595 = vst [vmem:[%s287 + $0x70] sm:$0xff] %v4511
        %4596 = vst [vmem:[%s287 + $0x78] sm:$0xff] %v4514
        %4597 = vst [vmem:[%s287 + $0x80] sm:$0xff] %v4519
        %4598 = vst [vmem:[%s287 + $0x88] sm:$0xff] %v4522
        %4599 = vst [vmem:[%s287 + $0x90] sm:$0xff] %v4527
        %4600 = vst [vmem:[%s287 + $0x98] sm:$0xff] %v4530
        %4601 = vst [vmem:[%s287 + $0xa0] sm:$0xff] %v4535
        %4602 = vst [vmem:[%s287 + $0xa8] sm:$0xff] %v4538
        %4603 = vst [vmem:[%s287 + $0xb0] sm:$0xff] %v4543
        %4604 = vst [vmem:[%s287 + $0xb8] sm:$0xff] %v4546
        %4605 = vst [vmem:[%s287 + $0xc0] sm:$0xff] %v4551
        %4606 = vst [vmem:[%s287 + $0xc8] sm:$0xff] %v4554
        %4607 = vst [vmem:[%s287 + $0xd0] sm:$0xff] %v4559
        %4608 = vst [vmem:[%s287 + $0xd8] sm:$0xff] %v4562
        %4609 = vst [vmem:[%s287 + $0xe0] sm:$0xff] %v4567
        %4610 = vst [vmem:[%s287 + $0xe8] sm:$0xff] %v4570
        %4611 = vst [vmem:[%s287 + $0xf0] sm:$0xff] %v4575
        %4612 = vst [vmem:[%s287 + $0xf8] sm:$0xff] %v4578
        %s4613 = sand.u32 %s142, 1
        %s4614 = scalar_lea.sflag [#allocation4], %s4613
        %s4615 = sand.u32 %s142, 1
        %s4616 = smul.addr %s4615, 256
        %s4617 = scalar_lea.vmem [#allocation10], %s4616
        // Predicated region
        $region57: #{tpu_custom_call.1} parent=39 // pred_check
          %p4618 = pneg %p152
        $region58: #{tpu_custom_call.1} parent=39 // pred_check_branch
          %4620 = sbr.rel (%p4618) target = $region60
        $region59: #{tpu_custom_call.1} parent=39 // pred_region
          %s4621 = smul.u32 32, %s24
          %s4623 = ssub.s32 4096, 4096
          %4624 = vsyncadd %s4614, %s4623
          %s4625 = smul.addr %s4621, 128
          %s4626 = scalar_lea.hbm %s5, %s4625
          %s4627 = sshll.u32 %s4617, 4
          %s4628 = int_to_ptr.vmem [resolvable:$true] %s4627
          %4633 = dma.vmem_to_hbm [thread:$0]  %s4628, 4096, %s4626, %s4614, 128, 128, 8
        $region60: #{tpu_custom_call.1} parent=39 // pred_fallthru
          _
      $region40: #{tpu_custom_call.1} parent=5 // pred_fallthru
        _
      %p4634 = scmp.le.s32.totalorder 2, %s19
      // Predicated region
      $region61: #{tpu_custom_call.1} parent=5 // pred_check
        %p4635 = pneg %p4634
      $region62: #{tpu_custom_call.1} parent=5 // pred_check_branch
        %4637 = sbr.rel (%p4635) target = $region64
      $region63: #{tpu_custom_call.1} parent=5 // pred_region
        %s4638 = ssub.s32 %s19, 2
        // Predicated region
        $region65: #{tpu_custom_call.1} parent=63 // pred_check
          %p4639 = pneg %p158
        $region66: #{tpu_custom_call.1} parent=63 // pred_check_branch
          %4641 = sbr.rel (%p4639) target = $region68
        $region67: #{tpu_custom_call.1} parent=63 // pred_region
          %s4642 = sand.u32 %s143, 1
          %s4643 = scalar_lea.sflag [#allocation4], %s4642
          %s4644 = sand.u32 %s143, 1
          %s4645 = smul.addr %s4644, 256
          %s4646 = scalar_lea.vmem [#allocation10], %s4645
          %4647 = dma.done %s4643, 4096
        $region68: #{tpu_custom_call.1} parent=63 // pred_fallthru
          _
      $region64: #{tpu_custom_call.1} parent=5 // pred_fallthru
        _
    $region6: #{tpu_custom_call.1} parent=1 // loop_footer
      %s23 = sadd.s32 1, %s19
    $region7: #{tpu_custom_call.1} parent=1 // loop_footer_branch
      %18 = sbr.rel target = $region3
    $region8: #{tpu_custom_call.1} parent=1 // loop_exit
      _
    %4648 = vsyncpa [#allocation3], 1
    %s4649 = scalar_lea.sflag [#allocation3], 1
    %4650 = vsyncpa %s4649, 1
    %4651 = vsyncpa [#allocation6], 1
    %4652 = vsyncpa [#allocation9], 1
    %4653 = vsyncpa [#allocation4], 1
    %s4654 = scalar_lea.sflag [#allocation4], 1
    %4655 = vsyncpa %s4654, 1

</llo_original>
